<compile_context>
chip_gen: v7x
topology: tpu7x:2x2x1
jax: 0.10.0
libtpu: 0.0.40
codegen_flags: <defaults>
</compile_context>

<pallas_src>
import numpy as np
import jax
import jax.numpy as jnp
from jax.experimental import pallas as pl
from jax.experimental.pallas import tpu as pltpu

# ---- static configuration (small shapes consistent with the module) ----
L = 8                 # seq_len == len_max_seq == tcn_in
C = 32                # in_channels == d_model  (d_model=None path)
N_HEAD = 4
D_K = 8
D_V = C // N_HEAD
HD = N_HEAD * D_K
KSIZE = 4             # TemporalConvNet kernel_size
TCN_CHANNELS = (12, 6, 3, 1)
OUT_DIM = C + HD      # 64
LN_EPS = 1e-5
BN_EPS = 1e-5
INV_TEMP = 1.0 / float(np.sqrt(D_K))

# per-grid-step batching
TCN_LANES = 128           # one TCN lane tile
PACK = TCN_LANES // C     # samples per 128-lane TCN tile (4)
GROUP = 8                 # samples per grid step (must be a multiple of PACK)
NPACK = GROUP // PACK
GL = GROUP * L            # sublane-batched rows per grid step (64)
OUT_LANES = 128           # lane-dense output; wrapper slices to OUT_DIM

assert GROUP % PACK == 0


def _pad8(n):
    return ((n + 7) // 8) * 8


def _ceil(n, m):
    return ((n + m - 1) // m) * m


_CI = [L] + list(TCN_CHANNELS[:-1])          # real in-channels per TCN block
CI_PAD = [_pad8(c) for c in _CI]             # [8, 16, 8, 8]
CO_PAD = [_pad8(c) for c in TCN_CHANNELS]    # [16, 8, 8, 8]


# ----------------------------------------------------------------------------
# packed-parameter layout: entries are co-located inside shared 8-row-aligned
# row groups of a single (PBUF_ROWS, 128) f32 buffer, at 32-lane-aligned column
# offsets, and sliced at static offsets inside the kernel.
# ----------------------------------------------------------------------------
def _build_layout():
    groups = [
        [('lnw', 1, C), ('bfc2', 1, HD), ('bk', 1, HD)],
        [('add', GL, C), ('rtmat', GL, GROUP)],
        [('wk', C, HD), ('wfc2', C, HD), ('sind', HD, N_HEAD)],
        [('rmat', GROUP, GL), ('sind_t', N_HEAD, C)],
    ]
    for i in range(len(TCN_CHANNELS)):
        cip, cop = CI_PAD[i], CO_PAD[i]
        # conv1 + residual-downsample fused into one weight/bias (2*cop rows)
        groups.append([(f'wf_{i}', 2 * cop, KSIZE * cip), (f'bf_{i}', 2 * cop, 1)])
        groups.append([(f'w2_{i}', cop, KSIZE * cop), (f'b2_{i}', cop, 1)])
    layout, row_off = {}, 0
    for g in groups:
        col, rmax = 0, 0
        for name, r, c in g:
            assert col + c <= 128, (name, col, c)
            layout[name] = (row_off, col, r, c)
            col = _ceil(col + c, 32)
            rmax = max(rmax, r)
        row_off += _pad8(rmax)
    return layout, row_off


LAYOUT, PBUF_ROWS = _build_layout()


# ----------------------------------------------------------------------------
# positional encoding table (glue, numpy, deterministic)
# ----------------------------------------------------------------------------
def get_sinusoid_encoding_table(positions, d_hid, T=1000):
    if isinstance(positions, int):
        positions = list(range(positions))

    def cal_angle(position, hid_idx):
        return position / np.power(T, 2 * (hid_idx // 2) / d_hid)

    table = np.array([[cal_angle(p, j) for j in range(d_hid)] for p in positions],
                     dtype=np.float64)
    table[:, 0::2] = np.sin(table[:, 0::2])
    table[:, 1::2] = np.cos(table[:, 1::2])
    return table.astype(np.float32)


# ----------------------------------------------------------------------------
# pure-JAX per-sample reference (semantics of the PyTorch module, host-side)
# ----------------------------------------------------------------------------
def _shift_right_zero(x, s):
    n = x.shape[-1]
    if s == 0:
        return x
    if s >= n:
        return jnp.zeros_like(x)
    pad = jnp.zeros(x.shape[:-1] + (s,), x.dtype)
    return jnp.concatenate([pad, x[:, : n - s]], axis=-1)


def _causal_conv_ref(x, w, b, dilation):
    acc = None
    for k in range(KSIZE):
        shift = (KSIZE - 1 - k) * dilation
        xs = _shift_right_zero(x, shift)
        term = jnp.dot(w[k], xs, preferred_element_type=jnp.float32)
        acc = term if acc is None else acc + term
    return acc + b


def _temporal_block_ref(x, w1, b1, w2, b2, wd, bd, dilation):
    h = jnp.maximum(_causal_conv_ref(x, w1, b1, dilation), 0.0)
    h = jnp.maximum(_causal_conv_ref(h, w2, b2, dilation), 0.0)
    res = jnp.dot(wd, x, preferred_element_type=jnp.float32) + bd
    return jnp.maximum(h + res, 0.0)


def _tae_sample_ref(x, pos, lnw, lnb, *rest):
    """x: (L, C).  Returns (1, C + N_HEAD*D_K)."""
    n_tcn = 6 * len(TCN_CHANNELS)
    tcn = rest[:n_tcn]
    bn_scale, bn_shift, w_fc2, b_fc2, w_k, b_k = rest[n_tcn:]

    mu = jnp.mean(x, axis=-1, keepdims=True)
    var = jnp.mean(jnp.square(x - mu), axis=-1, keepdims=True)
    xn = (x - mu) * jax.lax.rsqrt(var + LN_EPS) * lnw + lnb
    e = xn + pos                                                      # (L, C)

    # fc1_q: TemporalConvNet over (channels=L, length=C)
    # TODO(synk): TemporalConvNet source was not provided; standard Bai et al.
    # TCN assumed (causal dilated convs, residual 1x1 downsample, weight-norm
    # folded into the weights, dropout disabled in eval).
    h = e
    for i in range(len(TCN_CHANNELS)):
        w1, b1, w2, b2, wd, bd = tcn[6 * i: 6 * i + 6]
        h = _temporal_block_ref(h, w1, b1, w2, b2, wd, bd, 2 ** i)
    q = h                                                             # (1, C)

    q_orig = jnp.dot(q * bn_scale + bn_shift, w_fc2,
                     preferred_element_type=jnp.float32) + b_fc2      # (1, HD)
    kmat = jnp.dot(e, w_k, preferred_element_type=jnp.float32) + b_k  # (L, HD)

    pieces = []
    for hh in range(N_HEAD):
        qh = q_orig[:, hh * D_K:(hh + 1) * D_K]
        kh = kmat[:, hh * D_K:(hh + 1) * D_K]
        scores = jnp.dot(qh, kh.T, preferred_element_type=jnp.float32) * INV_TEMP
        scores = scores - jnp.max(scores, axis=-1, keepdims=True)
        p = jnp.exp(scores)
        p = p / jnp.sum(p, axis=-1, keepdims=True)
        vh = e[:, hh * D_V:(hh + 1) * D_V]
        pieces.append(jnp.dot(p, vh, preferred_element_type=jnp.float32))
    pieces.append(q_orig)
    return jnp.concatenate(pieces, axis=-1)                           # (1, OUT_DIM)


# ----------------------------------------------------------------------------
# Pallas kernel: one grid step == GROUP samples
# ----------------------------------------------------------------------------
def _tae_kernel(x_ref, p_ref, o_ref):
    def P(name):
        r0, c0, r, c = LAYOUT[name]
        return p_ref[r0:r0 + r, c0:c0 + c]      # lazy, point-of-use static slices

    x = x_ref[...]                                                    # (GL, C)

    # inlayernorm over channels (+ folded LN-bias + positional encoding)
    mu = jnp.mean(x, axis=-1, keepdims=True)
    xc = x - mu
    var = jnp.mean(xc * xc, axis=-1, keepdims=True)
    e = xc * jax.lax.rsqrt(var + LN_EPS) * P('lnw') + P('add')        # (GL, C)

    # fc1_k for every (sample, position) row at once
    kmat = jnp.dot(e, P('wk'), preferred_element_type=jnp.float32) + P('bk')   # (GL, HD)

    # ---- fc1_q: TemporalConvNet (channels=L, length=C), 4 samples per lane tile ----
    lane = jax.lax.broadcasted_iota(jnp.int32, (1, TCN_LANES), 1)
    lane_in_sample = (lane & (C - 1)) if (C & (C - 1)) == 0 else (lane % C)

    def shift_tap(v, s):
        # causal shift per 32-lane sample slab: roll (XLU) + point-of-use mask
        if s == 0:
            return v
        if s >= C:
            return jnp.zeros_like(v)
        return jnp.where(lane_in_sample >= s, pltpu.roll(v, s, axis=1), 0.0)

    def conv_taps(v, dil):
        return jnp.concatenate(
            [shift_tap(v, (KSIZE - 1 - k) * dil) for k in range(KSIZE)], axis=0)

    q_rows = []
    for pk in range(NPACK):                       # independent 128-lane packs -> pipeline
        h = jnp.concatenate(
            [e[(pk * PACK + j) * L:(pk * PACK + j + 1) * L, :] for j in range(PACK)],
            axis=-1)                                                  # (L, 128)
        for i in range(len(TCN_CHANNELS)):
            dil = 2 ** i
            cop = CO_PAD[i]
            # fused conv1 + residual downsample: one matmul -> (2*cop, 128)
            fused = jnp.dot(P(f'wf_{i}'), conv_taps(h, dil),
                            preferred_element_type=jnp.float32) + P(f'bf_{i}')
            z = jnp.maximum(fused[:cop, :], 0.0)
            res = fused[cop:, :]
            z = jnp.maximum(jnp.dot(P(f'w2_{i}'), conv_taps(z, dil),
                                    preferred_element_type=jnp.float32) + P(f'b2_{i}'),
                            0.0)
            h = jnp.maximum(z + res, 0.0)                             # (cop, 128)
        # last block has a single real output channel -> row 0, per-sample lane slabs
        q_rows += [h[0:1, j * C:(j + 1) * C] for j in range(PACK)]
    q = jnp.concatenate(q_rows, axis=0)                               # (GROUP, C)

    # fc2: eval-mode BatchNorm1d folded into the Linear
    q_orig = jnp.dot(q, P('wfc2'), preferred_element_type=jnp.float32) + P('bfc2')  # (GROUP, HD)

    # ---- scaled dot-product attention: all heads & the whole group at once ----
    q_b = jnp.dot(P('rtmat'), q_orig, preferred_element_type=jnp.float32)           # (GL, HD)
    scores = jnp.dot(kmat * q_b, P('sind'), preferred_element_type=jnp.float32)     # (GL, H)
    # per-(sample, head) max -> exp never fully underflows and den >= 1 (no eps needed)
    m = jnp.max(scores.reshape(GROUP, L, N_HEAD), axis=1)                            # (GROUP, H)
    p_attn = jnp.exp(scores - jnp.dot(P('rtmat'), m, preferred_element_type=jnp.float32))
    p_full = jnp.dot(p_attn, P('sind_t'), preferred_element_type=jnp.float32)        # (GL, C)
    # fused numerator + denominator in one matmul: (GROUP, 2C)
    nd = jnp.dot(P('rmat'), jnp.concatenate([p_full * e, p_full], axis=-1),
                 preferred_element_type=jnp.float32)
    attn_out = nd[:, :C] / nd[:, C:]

    # final torch.cat((attn_out, q_orig), -1), lane-dense (padded to 128 lanes)
    o_ref[...] = jnp.concatenate(
        [attn_out, q_orig, jnp.zeros((GROUP, OUT_LANES - OUT_DIM), jnp.float32)], axis=-1)


# ----------------------------------------------------------------------------
# wrapper
# ----------------------------------------------------------------------------
def temporal_attention_encoder(x, pbuf):
    bt = x.shape[0]
    assert bt % GROUP == 0, "batch must be a multiple of GROUP"
    ng = bt // GROUP
    x2d = x.astype(jnp.float32).reshape(bt * L, C)
    # TODO(synk): if this encoder is invoked repeatedly, keep pbuf resident across
    # calls (cross-call prefetch / memory-space constraint) instead of re-DMAing it.
    out = pl.pallas_call(
        _tae_kernel,
        out_shape=jax.ShapeDtypeStruct((bt, OUT_LANES), jnp.float32),
        grid_spec=pltpu.PrefetchScalarGridSpec(
            num_scalar_prefetch=0,
            grid=(ng,),
            in_specs=[pl.BlockSpec((GL, C), lambda g: (g, 0)),
                      pl.BlockSpec((PBUF_ROWS, 128), lambda g: (0, 0))],
            out_specs=pl.BlockSpec((GROUP, OUT_LANES), lambda g: (g, 0)),
        ),
        compiler_params=pltpu.CompilerParams(
            dimension_semantics=("parallel",)),
    )(x2d, pbuf)
    return out[:, :OUT_DIM]


# ----------------------------------------------------------------------------
# host-side parameter packing (folds + single flat buffer)
# ----------------------------------------------------------------------------
def pack_params(params):
    buf = np.zeros((PBUF_ROWS, 128), np.float32)

    def put(name, arr):
        r0, c0, r, c = LAYOUT[name]
        buf[r0:r0 + r, c0:c0 + c] = np.asarray(arr, np.float32).reshape(r, c)

    def emb(a, shape):
        out = np.zeros(shape, np.float32)
        a = np.asarray(a, np.float32)
        out[tuple(slice(0, s) for s in a.shape)] = a
        return out

    pos, lnw, lnb = params[0], params[1], params[2]
    n_tcn = 6 * len(TCN_CHANNELS)
    tcn = params[3:3 + n_tcn]
    bn_scale, bn_shift, w_fc2, b_fc2, w_k, b_k = params[3 + n_tcn:]

    put('lnw', lnw)
    # fold LayerNorm bias + positional encoding, tiled over the per-step group rows
    put('add', np.tile(np.asarray(lnb, np.float32) + np.asarray(pos, np.float32), (GROUP, 1)))

    # TCN: flatten taps into one weight per conv, pad channels to x8, and fuse the
    # residual downsample (shift-0 tap block) as extra output rows of conv1.
    for i in range(len(TCN_CHANNELS)):
        w1, b1, w2, b2, wd, bd = tcn[6 * i: 6 * i + 6]
        cip, cop = CI_PAD[i], CO_PAD[i]
        w1f = emb(w1, (KSIZE, cop, cip)).transpose(1, 0, 2).reshape(cop, KSIZE * cip)
        wdf = np.zeros((cop, KSIZE * cip), np.float32)
        wdf[:, (KSIZE - 1) * cip:(KSIZE - 1) * cip + cip] = emb(wd, (cop, cip))
        put(f'wf_{i}', np.concatenate([w1f, wdf], axis=0))
        put(f'bf_{i}', np.concatenate([emb(b1, (cop, 1)), emb(bd, (cop, 1))], axis=0))
        put(f'w2_{i}', emb(w2, (KSIZE, cop, cop)).transpose(1, 0, 2).reshape(cop, KSIZE * cop))
        put(f'b2_{i}', emb(b2, (cop, 1)))

    # fold eval-mode BatchNorm1d (scale/shift) into the fc2 Linear
    scale = np.asarray(bn_scale, np.float32)
    shift = np.asarray(bn_shift, np.float32)
    w2f = np.asarray(w_fc2, np.float32)
    put('wfc2', w2f * scale.reshape(C, 1))
    put('bfc2', shift @ w2f + np.asarray(b_fc2, np.float32))
    put('wk', w_k)
    put('bk', b_k)

    # constant one-hot grouping / broadcast matrices
    heads = np.arange(HD) // D_K
    put('sind', (heads[:, None] == np.arange(N_HEAD)[None, :]).astype(np.float32) * INV_TEMP)
    vgrp = np.arange(C) // D_V
    put('sind_t', (np.arange(N_HEAD)[:, None] == vgrp[None, :]).astype(np.float32))
    rows = np.arange(GL) // L
    rmat = (np.arange(GROUP)[:, None] == rows[None, :]).astype(np.float32)
    put('rmat', rmat)
    put('rtmat', rmat.T)

    return jnp.asarray(buf)


# ----------------------------------------------------------------------------
# deterministic synthetic parameter init (shapes from the module __init__)
# ----------------------------------------------------------------------------
def init_params(key):
    keys = iter(jax.random.split(key, 64))

    def nrm(shape, std=0.1):
        return std * jax.random.normal(next(keys), shape, jnp.float32)

    params = []
    sin_tab = get_sinusoid_encoding_table(L + 1, C // N_HEAD, T=1000)
    pos_full = np.concatenate([sin_tab] * N_HEAD, axis=1)              # (L+1, C)
    params.append(jnp.asarray(pos_full[1:L + 1]))                       # (L, C)
    params.append(1.0 + nrm((1, C)))                                    # LN weight
    params.append(nrm((1, C)))                                          # LN bias
    ci = L
    for co in TCN_CHANNELS:
        params.append(nrm((KSIZE, co, ci), std=0.2))                    # conv1 w (per tap)
        params.append(nrm((co, 1)))                                     # conv1 b
        params.append(nrm((KSIZE, co, co), std=0.2))                    # conv2 w
        params.append(nrm((co, 1)))                                     # conv2 b
        params.append(nrm((co, ci), std=0.2))                           # downsample w
        params.append(nrm((co, 1)))                                     # downsample b
        ci = co
    gamma = 1.0 + nrm((1, C))
    beta = nrm((1, C))
    rmean = nrm((1, C))
    rvar = 1.0 + jnp.abs(nrm((1, C)))
    scale = gamma / jnp.sqrt(rvar + BN_EPS)
    params.append(scale)                                                # bn_scale
    params.append(beta - rmean * scale)                                 # bn_shift
    params.append(nrm((C, HD), std=float(np.sqrt(2.0 / D_K))))          # fc2 W^T
    params.append(nrm((1, HD)))                                         # fc2 b
    params.append(nrm((C, HD), std=float(np.sqrt(2.0 / D_K))))          # fc1_k W^T
    params.append(nrm((1, HD)))                                         # fc1_k b
    return params


if __name__ == "__main__":
    B = 16                                    # 2 grid steps of GROUP=8 samples
    key = jax.random.PRNGKey(0)
    kx, kp = jax.random.split(key)
    x = jax.random.normal(kx, (B, L, C), jnp.float32)
    params = init_params(kp)
    pbuf = pack_params(params)

    out = temporal_attention_encoder(x, pbuf)
    out = jax.block_until_ready(out)

    # pure-JAX reference (original math on the unpacked/unfolded params)
    ref = jnp.stack([_tae_sample_ref(x[b], *params) for b in range(B)], axis=0)[:, 0, :]
    ref = jax.block_until_ready(ref)
    np.testing.assert_allclose(np.asarray(out), np.asarray(ref), rtol=1e-4, atol=1e-4)
    assert out.shape == (B, OUT_DIM)
    print("KERNEL_OK")
</pallas_src>

<mosaic_0001>
module attributes {stable_mosaic.version = 11 : i64} {
  func.func @_tae_kernel(%arg0: i32, %arg1: memref<64x32xf32, #tpu.memory_space<vmem>>, %arg2: memref<232x128xf32, #tpu.memory_space<vmem>>, %arg3: memref<8x128xf32, #tpu.memory_space<vmem>>) attributes {dimension_semantics = [#tpu.dimension_semantics<parallel>], iteration_bounds = array<i64: 2>, scalar_prefetch = 0 : i64, scratch_operands = 0 : i64, tpu.core_type = #tpu.core_type<tc>, window_params = [{transform_indices = @transform_0, window_bounds = array<i64: 64, 32>}, {pipeline_mode = #tpu.pipeline_mode<synchronous>, transform_indices = @transform_1, window_bounds = array<i64: 232, 128>}, {transform_indices = @transform_2, window_bounds = array<i64: 8, 128>}]} {
    %c0 = arith.constant 0 : index
    %c0_0 = arith.constant 0 : index
    %0 = vector.load %arg1[%c0, %c0_0] : memref<64x32xf32, #tpu.memory_space<vmem>>, vector<64x32xf32>
    %cst = arith.constant dense<0.000000e+00> : vector<64xf32>
    %1 = vector.multi_reduction <add>, %0, %cst [1] : vector<64x32xf32> to vector<64xf32>
    %2 = vector.shape_cast %1 : vector<64xf32> to vector<64x1xf32>
    %cst_1 = arith.constant 3.200000e+01 : f32
    %3 = vector.broadcast %cst_1 : f32 to vector<64x1xf32>
    %4 = arith.divf %2, %3 : vector<64x1xf32>
    %5 = vector.broadcast %4 : vector<64x1xf32> to vector<64x32xf32>
    %6 = arith.subf %0, %5 : vector<64x32xf32>
    %7 = arith.mulf %6, %6 : vector<64x32xf32>
    %cst_2 = arith.constant dense<0.000000e+00> : vector<64xf32>
    %8 = vector.multi_reduction <add>, %7, %cst_2 [1] : vector<64x32xf32> to vector<64xf32>
    %9 = vector.shape_cast %8 : vector<64xf32> to vector<64x1xf32>
    %cst_3 = arith.constant 3.200000e+01 : f32
    %10 = vector.broadcast %cst_3 : f32 to vector<64x1xf32>
    %11 = arith.divf %9, %10 : vector<64x1xf32>
    %cst_4 = arith.constant 9.99999974E-6 : f32
    %12 = vector.broadcast %cst_4 : f32 to vector<64x1xf32>
    %13 = arith.addf %11, %12 : vector<64x1xf32>
    %14 = math.rsqrt %13 : vector<64x1xf32>
    %15 = vector.broadcast %14 : vector<64x1xf32> to vector<64x32xf32>
    %16 = arith.mulf %6, %15 : vector<64x32xf32>
    %c0_5 = arith.constant 0 : index
    %c0_6 = arith.constant 0 : index
    %17 = vector.load %arg2[%c0_5, %c0_6] : memref<232x128xf32, #tpu.memory_space<vmem>>, vector<1x32xf32>
    %18 = vector.broadcast %17 : vector<1x32xf32> to vector<64x32xf32>
    %19 = arith.mulf %16, %18 : vector<64x32xf32>
    %c8 = arith.constant 8 : index
    %c0_7 = arith.constant 0 : index
    %20 = vector.load %arg2[%c8, %c0_7] : memref<232x128xf32, #tpu.memory_space<vmem>>, vector<64x32xf32>
    %21 = arith.addf %19, %20 : vector<64x32xf32>
    %c72 = arith.constant 72 : index
    %c0_8 = arith.constant 0 : index
    %22 = vector.load %arg2[%c72, %c0_8] : memref<232x128xf32, #tpu.memory_space<vmem>>, vector<32x32xf32>
    %cst_9 = arith.constant dense<0.000000e+00> : vector<64x32xf32>
    %23 = tpu.matmul %21, %22, %cst_9 {dimension_numbers = #tpu.dot_dimension_numbers<[1], [0], [0], [1], [0, 0, 1, 1], [], []>} : vector<64x32xf32>, vector<32x32xf32>, vector<64x32xf32> -> vector<64x32xf32>
    %c0_10 = arith.constant 0 : index
    %c64 = arith.constant 64 : index
    %24 = vector.load %arg2[%c0_10, %c64] : memref<232x128xf32, #tpu.memory_space<vmem>>, vector<1x32xf32>
    %25 = vector.broadcast %24 : vector<1x32xf32> to vector<64x32xf32>
    %26 = arith.addf %23, %25 : vector<64x32xf32>
    %27 = tpu.iota {dimensions = array<i32: 1>} : vector<1x128xi32>
    %c31_i32 = arith.constant 31 : i32
    %28 = vector.broadcast %c31_i32 : i32 to vector<1x128xi32>
    %29 = arith.andi %27, %28 : vector<1x128xi32>
    %30 = vector.extract_strided_slice %21 {offsets = [0, 0], sizes = [8, 32], strides = [1, 1]} : vector<64x32xf32> to vector<8x32xf32>
    %31 = vector.extract_strided_slice %21 {offsets = [8, 0], sizes = [8, 32], strides = [1, 1]} : vector<64x32xf32> to vector<8x32xf32>
    %32 = vector.extract_strided_slice %21 {offsets = [16, 0], sizes = [8, 32], strides = [1, 1]} : vector<64x32xf32> to vector<8x32xf32>
    %33 = vector.extract_strided_slice %21 {offsets = [24, 0], sizes = [8, 32], strides = [1, 1]} : vector<64x32xf32> to vector<8x32xf32>
    %34 = tpu.concatenate %30, %31, %32, %33 in 1 : vector<8x32xf32>, vector<8x32xf32>, vector<8x32xf32>, vector<8x32xf32> -> vector<8x128xf32>
    %c112 = arith.constant 112 : index
    %c0_11 = arith.constant 0 : index
    %35 = vector.load %arg2[%c112, %c0_11] : memref<232x128xf32, #tpu.memory_space<vmem>>, vector<32x32xf32>
    %c3_i32 = arith.constant 3 : i32
    %36 = vector.broadcast %c3_i32 : i32 to vector<1x128xi32>
    %37 = arith.cmpi sge, %29, %36 : vector<1x128xi32>
    %c3_i32_12 = arith.constant 3 : i32
    %38 = tpu.dynamic_rotate %34 by %c3_i32_12 dim 1 : vector<8x128xf32>, i32 -> vector<8x128xf32>
    %cst_13 = arith.constant 0.000000e+00 : f32
    %39 = vector.shape_cast %37 : vector<1x128xi1> to vector<1x128xi1>
    %40 = vector.broadcast %39 : vector<1x128xi1> to vector<8x128xi1>
    %41 = vector.broadcast %cst_13 : f32 to vector<8x128xf32>
    %42 = arith.select %40, %38, %41 : vector<8x128xi1>, vector<8x128xf32>
    %c2_i32 = arith.constant 2 : i32
    %43 = vector.broadcast %c2_i32 : i32 to vector<1x128xi32>
    %44 = arith.cmpi sge, %29, %43 : vector<1x128xi32>
    %c2_i32_14 = arith.constant 2 : i32
    %45 = tpu.dynamic_rotate %34 by %c2_i32_14 dim 1 : vector<8x128xf32>, i32 -> vector<8x128xf32>
    %cst_15 = arith.constant 0.000000e+00 : f32
    %46 = vector.shape_cast %44 : vector<1x128xi1> to vector<1x128xi1>
    %47 = vector.broadcast %46 : vector<1x128xi1> to vector<8x128xi1>
    %48 = vector.broadcast %cst_15 : f32 to vector<8x128xf32>
    %49 = arith.select %47, %45, %48 : vector<8x128xi1>, vector<8x128xf32>
    %c1_i32 = arith.constant 1 : i32
    %50 = vector.broadcast %c1_i32 : i32 to vector<1x128xi32>
    %51 = arith.cmpi sge, %29, %50 : vector<1x128xi32>
    %c1_i32_16 = arith.constant 1 : i32
    %52 = tpu.dynamic_rotate %34 by %c1_i32_16 dim 1 : vector<8x128xf32>, i32 -> vector<8x128xf32>
    %cst_17 = arith.constant 0.000000e+00 : f32
    %53 = vector.shape_cast %51 : vector<1x128xi1> to vector<1x128xi1>
    %54 = vector.broadcast %53 : vector<1x128xi1> to vector<8x128xi1>
    %55 = vector.broadcast %cst_17 : f32 to vector<8x128xf32>
    %56 = arith.select %54, %52, %55 : vector<8x128xi1>, vector<8x128xf32>
    %57 = tpu.concatenate %42, %49, %56, %34 in 0 : vector<8x128xf32>, vector<8x128xf32>, vector<8x128xf32>, vector<8x128xf32> -> vector<32x128xf32>
    %cst_18 = arith.constant dense<0.000000e+00> : vector<32x128xf32>
    %58 = tpu.matmul %35, %57, %cst_18 {dimension_numbers = #tpu.dot_dimension_numbers<[1], [0], [0], [1], [0, 0, 1, 1], [], []>} : vector<32x32xf32>, vector<32x128xf32>, vector<32x128xf32> -> vector<32x128xf32>
    %c112_19 = arith.constant 112 : index
    %c32 = arith.constant 32 : index
    %59 = vector.load %arg2[%c112_19, %c32] : memref<232x128xf32, #tpu.memory_space<vmem>>, vector<32x1xf32>
    %60 = vector.broadcast %59 : vector<32x1xf32> to vector<32x128xf32>
    %61 = arith.addf %58, %60 : vector<32x128xf32>
    %62 = vector.extract_strided_slice %61 {offsets = [0, 0], sizes = [16, 128], strides = [1, 1]} : vector<32x128xf32> to vector<16x128xf32>
    %cst_20 = arith.constant 0.000000e+00 : f32
    %63 = vector.broadcast %cst_20 : f32 to vector<16x128xf32>
    %64 = arith.maximumf %62, %63 : vector<16x128xf32>
    %65 = vector.extract_strided_slice %61 {offsets = [16, 0], sizes = [16, 128], strides = [1, 1]} : vector<32x128xf32> to vector<16x128xf32>
    %c144 = arith.constant 144 : index
    %c0_21 = arith.constant 0 : index
    %66 = vector.load %arg2[%c144, %c0_21] : memref<232x128xf32, #tpu.memory_space<vmem>>, vector<16x64xf32>
    %c3_i32_22 = arith.constant 3 : i32
    %67 = vector.broadcast %c3_i32_22 : i32 to vector<1x128xi32>
    %68 = arith.cmpi sge, %29, %67 : vector<1x128xi32>
    %c3_i32_23 = arith.constant 3 : i32
    %69 = tpu.dynamic_rotate %64 by %c3_i32_23 dim 1 : vector<16x128xf32>, i32 -> vector<16x128xf32>
    %cst_24 = arith.constant 0.000000e+00 : f32
    %70 = vector.shape_cast %68 : vector<1x128xi1> to vector<1x128xi1>
    %71 = vector.broadcast %70 : vector<1x128xi1> to vector<16x128xi1>
    %72 = vector.broadcast %cst_24 : f32 to vector<16x128xf32>
    %73 = arith.select %71, %69, %72 : vector<16x128xi1>, vector<16x128xf32>
    %c2_i32_25 = arith.constant 2 : i32
    %74 = vector.broadcast %c2_i32_25 : i32 to vector<1x128xi32>
    %75 = arith.cmpi sge, %29, %74 : vector<1x128xi32>
    %c2_i32_26 = arith.constant 2 : i32
    %76 = tpu.dynamic_rotate %64 by %c2_i32_26 dim 1 : vector<16x128xf32>, i32 -> vector<16x128xf32>
    %cst_27 = arith.constant 0.000000e+00 : f32
    %77 = vector.shape_cast %75 : vector<1x128xi1> to vector<1x128xi1>
    %78 = vector.broadcast %77 : vector<1x128xi1> to vector<16x128xi1>
    %79 = vector.broadcast %cst_27 : f32 to vector<16x128xf32>
    %80 = arith.select %78, %76, %79 : vector<16x128xi1>, vector<16x128xf32>
    %c1_i32_28 = arith.constant 1 : i32
    %81 = vector.broadcast %c1_i32_28 : i32 to vector<1x128xi32>
    %82 = arith.cmpi sge, %29, %81 : vector<1x128xi32>
    %c1_i32_29 = arith.constant 1 : i32
    %83 = tpu.dynamic_rotate %64 by %c1_i32_29 dim 1 : vector<16x128xf32>, i32 -> vector<16x128xf32>
    %cst_30 = arith.constant 0.000000e+00 : f32
    %84 = vector.shape_cast %82 : vector<1x128xi1> to vector<1x128xi1>
    %85 = vector.broadcast %84 : vector<1x128xi1> to vector<16x128xi1>
    %86 = vector.broadcast %cst_30 : f32 to vector<16x128xf32>
    %87 = arith.select %85, %83, %86 : vector<16x128xi1>, vector<16x128xf32>
    %88 = tpu.concatenate %73, %80, %87, %64 in 0 : vector<16x128xf32>, vector<16x128xf32>, vector<16x128xf32>, vector<16x128xf32> -> vector<64x128xf32>
    %cst_31 = arith.constant dense<0.000000e+00> : vector<16x128xf32>
    %89 = tpu.matmul %66, %88, %cst_31 {dimension_numbers = #tpu.dot_dimension_numbers<[1], [0], [0], [1], [0, 0, 1, 1], [], []>} : vector<16x64xf32>, vector<64x128xf32>, vector<16x128xf32> -> vector<16x128xf32>
    %c144_32 = arith.constant 144 : index
    %c64_33 = arith.constant 64 : index
    %90 = vector.load %arg2[%c144_32, %c64_33] : memref<232x128xf32, #tpu.memory_space<vmem>>, vector<16x1xf32>
    %91 = vector.broadcast %90 : vector<16x1xf32> to vector<16x128xf32>
    %92 = arith.addf %89, %91 : vector<16x128xf32>
    %cst_34 = arith.constant 0.000000e+00 : f32
    %93 = vector.broadcast %cst_34 : f32 to vector<16x128xf32>
    %94 = arith.maximumf %92, %93 : vector<16x128xf32>
    %95 = arith.addf %94, %65 : vector<16x128xf32>
    %cst_35 = arith.constant 0.000000e+00 : f32
    %96 = vector.broadcast %cst_35 : f32 to vector<16x128xf32>
    %97 = arith.maximumf %95, %96 : vector<16x128xf32>
    %c160 = arith.constant 160 : index
    %c0_36 = arith.constant 0 : index
    %98 = vector.load %arg2[%c160, %c0_36] : memref<232x128xf32, #tpu.memory_space<vmem>>, vector<16x64xf32>
    %c6_i32 = arith.constant 6 : i32
    %99 = vector.broadcast %c6_i32 : i32 to vector<1x128xi32>
    %100 = arith.cmpi sge, %29, %99 : vector<1x128xi32>
    %c6_i32_37 = arith.constant 6 : i32
    %101 = tpu.dynamic_rotate %97 by %c6_i32_37 dim 1 : vector<16x128xf32>, i32 -> vector<16x128xf32>
    %cst_38 = arith.constant 0.000000e+00 : f32
    %102 = vector.shape_cast %100 : vector<1x128xi1> to vector<1x128xi1>
    %103 = vector.broadcast %102 : vector<1x128xi1> to vector<16x128xi1>
    %104 = vector.broadcast %cst_38 : f32 to vector<16x128xf32>
    %105 = arith.select %103, %101, %104 : vector<16x128xi1>, vector<16x128xf32>
    %c4_i32 = arith.constant 4 : i32
    %106 = vector.broadcast %c4_i32 : i32 to vector<1x128xi32>
    %107 = arith.cmpi sge, %29, %106 : vector<1x128xi32>
    %c4_i32_39 = arith.constant 4 : i32
    %108 = tpu.dynamic_rotate %97 by %c4_i32_39 dim 1 : vector<16x128xf32>, i32 -> vector<16x128xf32>
    %cst_40 = arith.constant 0.000000e+00 : f32
    %109 = vector.shape_cast %107 : vector<1x128xi1> to vector<1x128xi1>
    %110 = vector.broadcast %109 : vector<1x128xi1> to vector<16x128xi1>
    %111 = vector.broadcast %cst_40 : f32 to vector<16x128xf32>
    %112 = arith.select %110, %108, %111 : vector<16x128xi1>, vector<16x128xf32>
    %c2_i32_41 = arith.constant 2 : i32
    %113 = vector.broadcast %c2_i32_41 : i32 to vector<1x128xi32>
    %114 = arith.cmpi sge, %29, %113 : vector<1x128xi32>
    %c2_i32_42 = arith.constant 2 : i32
    %115 = tpu.dynamic_rotate %97 by %c2_i32_42 dim 1 : vector<16x128xf32>, i32 -> vector<16x128xf32>
    %cst_43 = arith.constant 0.000000e+00 : f32
    %116 = vector.shape_cast %114 : vector<1x128xi1> to vector<1x128xi1>
    %117 = vector.broadcast %116 : vector<1x128xi1> to vector<16x128xi1>
    %118 = vector.broadcast %cst_43 : f32 to vector<16x128xf32>
    %119 = arith.select %117, %115, %118 : vector<16x128xi1>, vector<16x128xf32>
    %120 = tpu.concatenate %105, %112, %119, %97 in 0 : vector<16x128xf32>, vector<16x128xf32>, vector<16x128xf32>, vector<16x128xf32> -> vector<64x128xf32>
    %cst_44 = arith.constant dense<0.000000e+00> : vector<16x128xf32>
    %121 = tpu.matmul %98, %120, %cst_44 {dimension_numbers = #tpu.dot_dimension_numbers<[1], [0], [0], [1], [0, 0, 1, 1], [], []>} : vector<16x64xf32>, vector<64x128xf32>, vector<16x128xf32> -> vector<16x128xf32>
    %c160_45 = arith.constant 160 : index
    %c64_46 = arith.constant 64 : index
    %122 = vector.load %arg2[%c160_45, %c64_46] : memref<232x128xf32, #tpu.memory_space<vmem>>, vector<16x1xf32>
    %123 = vector.broadcast %122 : vector<16x1xf32> to vector<16x128xf32>
    %124 = arith.addf %121, %123 : vector<16x128xf32>
    %125 = vector.extract_strided_slice %124 {offsets = [0, 0], sizes = [8, 128], strides = [1, 1]} : vector<16x128xf32> to vector<8x128xf32>
    %cst_47 = arith.constant 0.000000e+00 : f32
    %126 = vector.broadcast %cst_47 : f32 to vector<8x128xf32>
    %127 = arith.maximumf %125, %126 : vector<8x128xf32>
    %128 = vector.extract_strided_slice %124 {offsets = [8, 0], sizes = [8, 128], strides = [1, 1]} : vector<16x128xf32> to vector<8x128xf32>
    %c176 = arith.constant 176 : index
    %c0_48 = arith.constant 0 : index
    %129 = vector.load %arg2[%c176, %c0_48] : memref<232x128xf32, #tpu.memory_space<vmem>>, vector<8x32xf32>
    %c6_i32_49 = arith.constant 6 : i32
    %130 = vector.broadcast %c6_i32_49 : i32 to vector<1x128xi32>
    %131 = arith.cmpi sge, %29, %130 : vector<1x128xi32>
    %c6_i32_50 = arith.constant 6 : i32
    %132 = tpu.dynamic_rotate %127 by %c6_i32_50 dim 1 : vector<8x128xf32>, i32 -> vector<8x128xf32>
    %cst_51 = arith.constant 0.000000e+00 : f32
    %133 = vector.shape_cast %131 : vector<1x128xi1> to vector<1x128xi1>
    %134 = vector.broadcast %133 : vector<1x128xi1> to vector<8x128xi1>
    %135 = vector.broadcast %cst_51 : f32 to vector<8x128xf32>
    %136 = arith.select %134, %132, %135 : vector<8x128xi1>, vector<8x128xf32>
    %c4_i32_52 = arith.constant 4 : i32
    %137 = vector.broadcast %c4_i32_52 : i32 to vector<1x128xi32>
    %138 = arith.cmpi sge, %29, %137 : vector<1x128xi32>
    %c4_i32_53 = arith.constant 4 : i32
    %139 = tpu.dynamic_rotate %127 by %c4_i32_53 dim 1 : vector<8x128xf32>, i32 -> vector<8x128xf32>
    %cst_54 = arith.constant 0.000000e+00 : f32
    %140 = vector.shape_cast %138 : vector<1x128xi1> to vector<1x128xi1>
    %141 = vector.broadcast %140 : vector<1x128xi1> to vector<8x128xi1>
    %142 = vector.broadcast %cst_54 : f32 to vector<8x128xf32>
    %143 = arith.select %141, %139, %142 : vector<8x128xi1>, vector<8x128xf32>
    %c2_i32_55 = arith.constant 2 : i32
    %144 = vector.broadcast %c2_i32_55 : i32 to vector<1x128xi32>
    %145 = arith.cmpi sge, %29, %144 : vector<1x128xi32>
    %c2_i32_56 = arith.constant 2 : i32
    %146 = tpu.dynamic_rotate %127 by %c2_i32_56 dim 1 : vector<8x128xf32>, i32 -> vector<8x128xf32>
    %cst_57 = arith.constant 0.000000e+00 : f32
    %147 = vector.shape_cast %145 : vector<1x128xi1> to vector<1x128xi1>
    %148 = vector.broadcast %147 : vector<1x128xi1> to vector<8x128xi1>
    %149 = vector.broadcast %cst_57 : f32 to vector<8x128xf32>
    %150 = arith.select %148, %146, %149 : vector<8x128xi1>, vector<8x128xf32>
    %151 = tpu.concatenate %136, %143, %150, %127 in 0 : vector<8x128xf32>, vector<8x128xf32>, vector<8x128xf32>, vector<8x128xf32> -> vector<32x128xf32>
    %cst_58 = arith.constant dense<0.000000e+00> : vector<8x128xf32>
    %152 = tpu.matmul %129, %151, %cst_58 {dimension_numbers = #tpu.dot_dimension_numbers<[1], [0], [0], [1], [0, 0, 1, 1], [], []>} : vector<8x32xf32>, vector<32x128xf32>, vector<8x128xf32> -> vector<8x128xf32>
    %c176_59 = arith.constant 176 : index
    %c32_60 = arith.constant 32 : index
    %153 = vector.load %arg2[%c176_59, %c32_60] : memref<232x128xf32, #tpu.memory_space<vmem>>, vector<8x1xf32>
    %154 = vector.broadcast %153 : vector<8x1xf32> to vector<8x128xf32>
    %155 = arith.addf %152, %154 : vector<8x128xf32>
    %cst_61 = arith.constant 0.000000e+00 : f32
    %156 = vector.broadcast %cst_61 : f32 to vector<8x128xf32>
    %157 = arith.maximumf %155, %156 : vector<8x128xf32>
    %158 = arith.addf %157, %128 : vector<8x128xf32>
    %cst_62 = arith.constant 0.000000e+00 : f32
    %159 = vector.broadcast %cst_62 : f32 to vector<8x128xf32>
    %160 = arith.maximumf %158, %159 : vector<8x128xf32>
    %c184 = arith.constant 184 : index
    %c0_63 = arith.constant 0 : index
    %161 = vector.load %arg2[%c184, %c0_63] : memref<232x128xf32, #tpu.memory_space<vmem>>, vector<16x32xf32>
    %c12_i32 = arith.constant 12 : i32
    %162 = vector.broadcast %c12_i32 : i32 to vector<1x128xi32>
    %163 = arith.cmpi sge, %29, %162 : vector<1x128xi32>
    %c12_i32_64 = arith.constant 12 : i32
    %164 = tpu.dynamic_rotate %160 by %c12_i32_64 dim 1 : vector<8x128xf32>, i32 -> vector<8x128xf32>
    %cst_65 = arith.constant 0.000000e+00 : f32
    %165 = vector.shape_cast %163 : vector<1x128xi1> to vector<1x128xi1>
    %166 = vector.broadcast %165 : vector<1x128xi1> to vector<8x128xi1>
    %167 = vector.broadcast %cst_65 : f32 to vector<8x128xf32>
    %168 = arith.select %166, %164, %167 : vector<8x128xi1>, vector<8x128xf32>
    %c8_i32 = arith.constant 8 : i32
    %169 = vector.broadcast %c8_i32 : i32 to vector<1x128xi32>
    %170 = arith.cmpi sge, %29, %169 : vector<1x128xi32>
    %c8_i32_66 = arith.constant 8 : i32
    %171 = tpu.dynamic_rotate %160 by %c8_i32_66 dim 1 : vector<8x128xf32>, i32 -> vector<8x128xf32>
    %cst_67 = arith.constant 0.000000e+00 : f32
    %172 = vector.shape_cast %170 : vector<1x128xi1> to vector<1x128xi1>
    %173 = vector.broadcast %172 : vector<1x128xi1> to vector<8x128xi1>
    %174 = vector.broadcast %cst_67 : f32 to vector<8x128xf32>
    %175 = arith.select %173, %171, %174 : vector<8x128xi1>, vector<8x128xf32>
    %c4_i32_68 = arith.constant 4 : i32
    %176 = vector.broadcast %c4_i32_68 : i32 to vector<1x128xi32>
    %177 = arith.cmpi sge, %29, %176 : vector<1x128xi32>
    %c4_i32_69 = arith.constant 4 : i32
    %178 = tpu.dynamic_rotate %160 by %c4_i32_69 dim 1 : vector<8x128xf32>, i32 -> vector<8x128xf32>
    %cst_70 = arith.constant 0.000000e+00 : f32
    %179 = vector.shape_cast %177 : vector<1x128xi1> to vector<1x128xi1>
    %180 = vector.broadcast %179 : vector<1x128xi1> to vector<8x128xi1>
    %181 = vector.broadcast %cst_70 : f32 to vector<8x128xf32>
    %182 = arith.select %180, %178, %181 : vector<8x128xi1>, vector<8x128xf32>
    %183 = tpu.concatenate %168, %175, %182, %160 in 0 : vector<8x128xf32>, vector<8x128xf32>, vector<8x128xf32>, vector<8x128xf32> -> vector<32x128xf32>
    %cst_71 = arith.constant dense<0.000000e+00> : vector<16x128xf32>
    %184 = tpu.matmul %161, %183, %cst_71 {dimension_numbers = #tpu.dot_dimension_numbers<[1], [0], [0], [1], [0, 0, 1, 1], [], []>} : vector<16x32xf32>, vector<32x128xf32>, vector<16x128xf32> -> vector<16x128xf32>
    %c184_72 = arith.constant 184 : index
    %c32_73 = arith.constant 32 : index
    %185 = vector.load %arg2[%c184_72, %c32_73] : memref<232x128xf32, #tpu.memory_space<vmem>>, vector<16x1xf32>
    %186 = vector.broadcast %185 : vector<16x1xf32> to vector<16x128xf32>
    %187 = arith.addf %184, %186 : vector<16x128xf32>
    %188 = vector.extract_strided_slice %187 {offsets = [0, 0], sizes = [8, 128], strides = [1, 1]} : vector<16x128xf32> to vector<8x128xf32>
    %cst_74 = arith.constant 0.000000e+00 : f32
    %189 = vector.broadcast %cst_74 : f32 to vector<8x128xf32>
    %190 = arith.maximumf %188, %189 : vector<8x128xf32>
    %191 = vector.extract_strided_slice %187 {offsets = [8, 0], sizes = [8, 128], strides = [1, 1]} : vector<16x128xf32> to vector<8x128xf32>
    %c200 = arith.constant 200 : index
    %c0_75 = arith.constant 0 : index
    %192 = vector.load %arg2[%c200, %c0_75] : memref<232x128xf32, #tpu.memory_space<vmem>>, vector<8x32xf32>
    %c12_i32_76 = arith.constant 12 : i32
    %193 = vector.broadcast %c12_i32_76 : i32 to vector<1x128xi32>
    %194 = arith.cmpi sge, %29, %193 : vector<1x128xi32>
    %c12_i32_77 = arith.constant 12 : i32
    %195 = tpu.dynamic_rotate %190 by %c12_i32_77 dim 1 : vector<8x128xf32>, i32 -> vector<8x128xf32>
    %cst_78 = arith.constant 0.000000e+00 : f32
    %196 = vector.shape_cast %194 : vector<1x128xi1> to vector<1x128xi1>
    %197 = vector.broadcast %196 : vector<1x128xi1> to vector<8x128xi1>
    %198 = vector.broadcast %cst_78 : f32 to vector<8x128xf32>
    %199 = arith.select %197, %195, %198 : vector<8x128xi1>, vector<8x128xf32>
    %c8_i32_79 = arith.constant 8 : i32
    %200 = vector.broadcast %c8_i32_79 : i32 to vector<1x128xi32>
    %201 = arith.cmpi sge, %29, %200 : vector<1x128xi32>
    %c8_i32_80 = arith.constant 8 : i32
    %202 = tpu.dynamic_rotate %190 by %c8_i32_80 dim 1 : vector<8x128xf32>, i32 -> vector<8x128xf32>
    %cst_81 = arith.constant 0.000000e+00 : f32
    %203 = vector.shape_cast %201 : vector<1x128xi1> to vector<1x128xi1>
    %204 = vector.broadcast %203 : vector<1x128xi1> to vector<8x128xi1>
    %205 = vector.broadcast %cst_81 : f32 to vector<8x128xf32>
    %206 = arith.select %204, %202, %205 : vector<8x128xi1>, vector<8x128xf32>
    %c4_i32_82 = arith.constant 4 : i32
    %207 = vector.broadcast %c4_i32_82 : i32 to vector<1x128xi32>
    %208 = arith.cmpi sge, %29, %207 : vector<1x128xi32>
    %c4_i32_83 = arith.constant 4 : i32
    %209 = tpu.dynamic_rotate %190 by %c4_i32_83 dim 1 : vector<8x128xf32>, i32 -> vector<8x128xf32>
    %cst_84 = arith.constant 0.000000e+00 : f32
    %210 = vector.shape_cast %208 : vector<1x128xi1> to vector<1x128xi1>
    %211 = vector.broadcast %210 : vector<1x128xi1> to vector<8x128xi1>
    %212 = vector.broadcast %cst_84 : f32 to vector<8x128xf32>
    %213 = arith.select %211, %209, %212 : vector<8x128xi1>, vector<8x128xf32>
    %214 = tpu.concatenate %199, %206, %213, %190 in 0 : vector<8x128xf32>, vector<8x128xf32>, vector<8x128xf32>, vector<8x128xf32> -> vector<32x128xf32>
    %cst_85 = arith.constant dense<0.000000e+00> : vector<8x128xf32>
    %215 = tpu.matmul %192, %214, %cst_85 {dimension_numbers = #tpu.dot_dimension_numbers<[1], [0], [0], [1], [0, 0, 1, 1], [], []>} : vector<8x32xf32>, vector<32x128xf32>, vector<8x128xf32> -> vector<8x128xf32>
    %c200_86 = arith.constant 200 : index
    %c32_87 = arith.constant 32 : index
    %216 = vector.load %arg2[%c200_86, %c32_87] : memref<232x128xf32, #tpu.memory_space<vmem>>, vector<8x1xf32>
    %217 = vector.broadcast %216 : vector<8x1xf32> to vector<8x128xf32>
    %218 = arith.addf %215, %217 : vector<8x128xf32>
    %cst_88 = arith.constant 0.000000e+00 : f32
    %219 = vector.broadcast %cst_88 : f32 to vector<8x128xf32>
    %220 = arith.maximumf %218, %219 : vector<8x128xf32>
    %221 = arith.addf %220, %191 : vector<8x128xf32>
    %cst_89 = arith.constant 0.000000e+00 : f32
    %222 = vector.broadcast %cst_89 : f32 to vector<8x128xf32>
    %223 = arith.maximumf %221, %222 : vector<8x128xf32>
    %c208 = arith.constant 208 : index
    %c0_90 = arith.constant 0 : index
    %224 = vector.load %arg2[%c208, %c0_90] : memref<232x128xf32, #tpu.memory_space<vmem>>, vector<16x32xf32>
    %c24_i32 = arith.constant 24 : i32
    %225 = vector.broadcast %c24_i32 : i32 to vector<1x128xi32>
    %226 = arith.cmpi sge, %29, %225 : vector<1x128xi32>
    %c24_i32_91 = arith.constant 24 : i32
    %227 = tpu.dynamic_rotate %223 by %c24_i32_91 dim 1 : vector<8x128xf32>, i32 -> vector<8x128xf32>
    %cst_92 = arith.constant 0.000000e+00 : f32
    %228 = vector.shape_cast %226 : vector<1x128xi1> to vector<1x128xi1>
    %229 = vector.broadcast %228 : vector<1x128xi1> to vector<8x128xi1>
    %230 = vector.broadcast %cst_92 : f32 to vector<8x128xf32>
    %231 = arith.select %229, %227, %230 : vector<8x128xi1>, vector<8x128xf32>
    %c16_i32 = arith.constant 16 : i32
    %232 = vector.broadcast %c16_i32 : i32 to vector<1x128xi32>
    %233 = arith.cmpi sge, %29, %232 : vector<1x128xi32>
    %c16_i32_93 = arith.constant 16 : i32
    %234 = tpu.dynamic_rotate %223 by %c16_i32_93 dim 1 : vector<8x128xf32>, i32 -> vector<8x128xf32>
    %cst_94 = arith.constant 0.000000e+00 : f32
    %235 = vector.shape_cast %233 : vector<1x128xi1> to vector<1x128xi1>
    %236 = vector.broadcast %235 : vector<1x128xi1> to vector<8x128xi1>
    %237 = vector.broadcast %cst_94 : f32 to vector<8x128xf32>
    %238 = arith.select %236, %234, %237 : vector<8x128xi1>, vector<8x128xf32>
    %c8_i32_95 = arith.constant 8 : i32
    %239 = vector.broadcast %c8_i32_95 : i32 to vector<1x128xi32>
    %240 = arith.cmpi sge, %29, %239 : vector<1x128xi32>
    %c8_i32_96 = arith.constant 8 : i32
    %241 = tpu.dynamic_rotate %223 by %c8_i32_96 dim 1 : vector<8x128xf32>, i32 -> vector<8x128xf32>
    %cst_97 = arith.constant 0.000000e+00 : f32
    %242 = vector.shape_cast %240 : vector<1x128xi1> to vector<1x128xi1>
    %243 = vector.broadcast %242 : vector<1x128xi1> to vector<8x128xi1>
    %244 = vector.broadcast %cst_97 : f32 to vector<8x128xf32>
    %245 = arith.select %243, %241, %244 : vector<8x128xi1>, vector<8x128xf32>
    %246 = tpu.concatenate %231, %238, %245, %223 in 0 : vector<8x128xf32>, vector<8x128xf32>, vector<8x128xf32>, vector<8x128xf32> -> vector<32x128xf32>
    %cst_98 = arith.constant dense<0.000000e+00> : vector<16x128xf32>
    %247 = tpu.matmul %224, %246, %cst_98 {dimension_numbers = #tpu.dot_dimension_numbers<[1], [0], [0], [1], [0, 0, 1, 1], [], []>} : vector<16x32xf32>, vector<32x128xf32>, vector<16x128xf32> -> vector<16x128xf32>
    %c208_99 = arith.constant 208 : index
    %c32_100 = arith.constant 32 : index
    %248 = vector.load %arg2[%c208_99, %c32_100] : memref<232x128xf32, #tpu.memory_space<vmem>>, vector<16x1xf32>
    %249 = vector.broadcast %248 : vector<16x1xf32> to vector<16x128xf32>
    %250 = arith.addf %247, %249 : vector<16x128xf32>
    %251 = vector.extract_strided_slice %250 {offsets = [0, 0], sizes = [8, 128], strides = [1, 1]} : vector<16x128xf32> to vector<8x128xf32>
    %cst_101 = arith.constant 0.000000e+00 : f32
    %252 = vector.broadcast %cst_101 : f32 to vector<8x128xf32>
    %253 = arith.maximumf %251, %252 : vector<8x128xf32>
    %254 = vector.extract_strided_slice %250 {offsets = [8, 0], sizes = [8, 128], strides = [1, 1]} : vector<16x128xf32> to vector<8x128xf32>
    %c224 = arith.constant 224 : index
    %c0_102 = arith.constant 0 : index
    %255 = vector.load %arg2[%c224, %c0_102] : memref<232x128xf32, #tpu.memory_space<vmem>>, vector<8x32xf32>
    %c24_i32_103 = arith.constant 24 : i32
    %256 = vector.broadcast %c24_i32_103 : i32 to vector<1x128xi32>
    %257 = arith.cmpi sge, %29, %256 : vector<1x128xi32>
    %c24_i32_104 = arith.constant 24 : i32
    %258 = tpu.dynamic_rotate %253 by %c24_i32_104 dim 1 : vector<8x128xf32>, i32 -> vector<8x128xf32>
    %cst_105 = arith.constant 0.000000e+00 : f32
    %259 = vector.shape_cast %257 : vector<1x128xi1> to vector<1x128xi1>
    %260 = vector.broadcast %259 : vector<1x128xi1> to vector<8x128xi1>
    %261 = vector.broadcast %cst_105 : f32 to vector<8x128xf32>
    %262 = arith.select %260, %258, %261 : vector<8x128xi1>, vector<8x128xf32>
    %c16_i32_106 = arith.constant 16 : i32
    %263 = vector.broadcast %c16_i32_106 : i32 to vector<1x128xi32>
    %264 = arith.cmpi sge, %29, %263 : vector<1x128xi32>
    %c16_i32_107 = arith.constant 16 : i32
    %265 = tpu.dynamic_rotate %253 by %c16_i32_107 dim 1 : vector<8x128xf32>, i32 -> vector<8x128xf32>
    %cst_108 = arith.constant 0.000000e+00 : f32
    %266 = vector.shape_cast %264 : vector<1x128xi1> to vector<1x128xi1>
    %267 = vector.broadcast %266 : vector<1x128xi1> to vector<8x128xi1>
    %268 = vector.broadcast %cst_108 : f32 to vector<8x128xf32>
    %269 = arith.select %267, %265, %268 : vector<8x128xi1>, vector<8x128xf32>
    %c8_i32_109 = arith.constant 8 : i32
    %270 = vector.broadcast %c8_i32_109 : i32 to vector<1x128xi32>
    %271 = arith.cmpi sge, %29, %270 : vector<1x128xi32>
    %c8_i32_110 = arith.constant 8 : i32
    %272 = tpu.dynamic_rotate %253 by %c8_i32_110 dim 1 : vector<8x128xf32>, i32 -> vector<8x128xf32>
    %cst_111 = arith.constant 0.000000e+00 : f32
    %273 = vector.shape_cast %271 : vector<1x128xi1> to vector<1x128xi1>
    %274 = vector.broadcast %273 : vector<1x128xi1> to vector<8x128xi1>
    %275 = vector.broadcast %cst_111 : f32 to vector<8x128xf32>
    %276 = arith.select %274, %272, %275 : vector<8x128xi1>, vector<8x128xf32>
    %277 = tpu.concatenate %262, %269, %276, %253 in 0 : vector<8x128xf32>, vector<8x128xf32>, vector<8x128xf32>, vector<8x128xf32> -> vector<32x128xf32>
    %cst_112 = arith.constant dense<0.000000e+00> : vector<8x128xf32>
    %278 = tpu.matmul %255, %277, %cst_112 {dimension_numbers = #tpu.dot_dimension_numbers<[1], [0], [0], [1], [0, 0, 1, 1], [], []>} : vector<8x32xf32>, vector<32x128xf32>, vector<8x128xf32> -> vector<8x128xf32>
    %c224_113 = arith.constant 224 : index
    %c32_114 = arith.constant 32 : index
    %279 = vector.load %arg2[%c224_113, %c32_114] : memref<232x128xf32, #tpu.memory_space<vmem>>, vector<8x1xf32>
    %280 = vector.broadcast %279 : vector<8x1xf32> to vector<8x128xf32>
    %281 = arith.addf %278, %280 : vector<8x128xf32>
    %cst_115 = arith.constant 0.000000e+00 : f32
    %282 = vector.broadcast %cst_115 : f32 to vector<8x128xf32>
    %283 = arith.maximumf %281, %282 : vector<8x128xf32>
    %284 = arith.addf %283, %254 : vector<8x128xf32>
    %cst_116 = arith.constant 0.000000e+00 : f32
    %285 = vector.broadcast %cst_116 : f32 to vector<8x128xf32>
    %286 = arith.maximumf %284, %285 : vector<8x128xf32>
    %287 = vector.extract_strided_slice %286 {offsets = [0, 0], sizes = [1, 32], strides = [1, 1]} : vector<8x128xf32> to vector<1x32xf32>
    %288 = vector.extract_strided_slice %286 {offsets = [0, 32], sizes = [1, 32], strides = [1, 1]} : vector<8x128xf32> to vector<1x32xf32>
    %289 = vector.extract_strided_slice %286 {offsets = [0, 64], sizes = [1, 32], strides = [1, 1]} : vector<8x128xf32> to vector<1x32xf32>
    %290 = vector.extract_strided_slice %286 {offsets = [0, 96], sizes = [1, 32], strides = [1, 1]} : vector<8x128xf32> to vector<1x32xf32>
    %291 = vector.extract_strided_slice %21 {offsets = [32, 0], sizes = [8, 32], strides = [1, 1]} : vector<64x32xf32> to vector<8x32xf32>
    %292 = vector.extract_strided_slice %21 {offsets = [40, 0], sizes = [8, 32], strides = [1, 1]} : vector<64x32xf32> to vector<8x32xf32>
    %293 = vector.extract_strided_slice %21 {offsets = [48, 0], sizes = [8, 32], strides = [1, 1]} : vector<64x32xf32> to vector<8x32xf32>
    %294 = vector.extract_strided_slice %21 {offsets = [56, 0], sizes = [8, 32], strides = [1, 1]} : vector<64x32xf32> to vector<8x32xf32>
    %295 = tpu.concatenate %291, %292, %293, %294 in 1 : vector<8x32xf32>, vector<8x32xf32>, vector<8x32xf32>, vector<8x32xf32> -> vector<8x128xf32>
    %c112_117 = arith.constant 112 : index
    %c0_118 = arith.constant 0 : index
    %296 = vector.load %arg2[%c112_117, %c0_118] : memref<232x128xf32, #tpu.memory_space<vmem>>, vector<32x32xf32>
    %c3_i32_119 = arith.constant 3 : i32
    %297 = vector.broadcast %c3_i32_119 : i32 to vector<1x128xi32>
    %298 = arith.cmpi sge, %29, %297 : vector<1x128xi32>
    %c3_i32_120 = arith.constant 3 : i32
    %299 = tpu.dynamic_rotate %295 by %c3_i32_120 dim 1 : vector<8x128xf32>, i32 -> vector<8x128xf32>
    %cst_121 = arith.constant 0.000000e+00 : f32
    %300 = vector.shape_cast %298 : vector<1x128xi1> to vector<1x128xi1>
    %301 = vector.broadcast %300 : vector<1x128xi1> to vector<8x128xi1>
    %302 = vector.broadcast %cst_121 : f32 to vector<8x128xf32>
    %303 = arith.select %301, %299, %302 : vector<8x128xi1>, vector<8x128xf32>
    %c2_i32_122 = arith.constant 2 : i32
    %304 = vector.broadcast %c2_i32_122 : i32 to vector<1x128xi32>
    %305 = arith.cmpi sge, %29, %304 : vector<1x128xi32>
    %c2_i32_123 = arith.constant 2 : i32
    %306 = tpu.dynamic_rotate %295 by %c2_i32_123 dim 1 : vector<8x128xf32>, i32 -> vector<8x128xf32>
    %cst_124 = arith.constant 0.000000e+00 : f32
    %307 = vector.shape_cast %305 : vector<1x128xi1> to vector<1x128xi1>
    %308 = vector.broadcast %307 : vector<1x128xi1> to vector<8x128xi1>
    %309 = vector.broadcast %cst_124 : f32 to vector<8x128xf32>
    %310 = arith.select %308, %306, %309 : vector<8x128xi1>, vector<8x128xf32>
    %c1_i32_125 = arith.constant 1 : i32
    %311 = vector.broadcast %c1_i32_125 : i32 to vector<1x128xi32>
    %312 = arith.cmpi sge, %29, %311 : vector<1x128xi32>
    %c1_i32_126 = arith.constant 1 : i32
    %313 = tpu.dynamic_rotate %295 by %c1_i32_126 dim 1 : vector<8x128xf32>, i32 -> vector<8x128xf32>
    %cst_127 = arith.constant 0.000000e+00 : f32
    %314 = vector.shape_cast %312 : vector<1x128xi1> to vector<1x128xi1>
    %315 = vector.broadcast %314 : vector<1x128xi1> to vector<8x128xi1>
    %316 = vector.broadcast %cst_127 : f32 to vector<8x128xf32>
    %317 = arith.select %315, %313, %316 : vector<8x128xi1>, vector<8x128xf32>
    %318 = tpu.concatenate %303, %310, %317, %295 in 0 : vector<8x128xf32>, vector<8x128xf32>, vector<8x128xf32>, vector<8x128xf32> -> vector<32x128xf32>
    %cst_128 = arith.constant dense<0.000000e+00> : vector<32x128xf32>
    %319 = tpu.matmul %296, %318, %cst_128 {dimension_numbers = #tpu.dot_dimension_numbers<[1], [0], [0], [1], [0, 0, 1, 1], [], []>} : vector<32x32xf32>, vector<32x128xf32>, vector<32x128xf32> -> vector<32x128xf32>
    %c112_129 = arith.constant 112 : index
    %c32_130 = arith.constant 32 : index
    %320 = vector.load %arg2[%c112_129, %c32_130] : memref<232x128xf32, #tpu.memory_space<vmem>>, vector<32x1xf32>
    %321 = vector.broadcast %320 : vector<32x1xf32> to vector<32x128xf32>
    %322 = arith.addf %319, %321 : vector<32x128xf32>
    %323 = vector.extract_strided_slice %322 {offsets = [0, 0], sizes = [16, 128], strides = [1, 1]} : vector<32x128xf32> to vector<16x128xf32>
    %cst_131 = arith.constant 0.000000e+00 : f32
    %324 = vector.broadcast %cst_131 : f32 to vector<16x128xf32>
    %325 = arith.maximumf %323, %324 : vector<16x128xf32>
    %326 = vector.extract_strided_slice %322 {offsets = [16, 0], sizes = [16, 128], strides = [1, 1]} : vector<32x128xf32> to vector<16x128xf32>
    %c144_132 = arith.constant 144 : index
    %c0_133 = arith.constant 0 : index
    %327 = vector.load %arg2[%c144_132, %c0_133] : memref<232x128xf32, #tpu.memory_space<vmem>>, vector<16x64xf32>
    %c3_i32_134 = arith.constant 3 : i32
    %328 = vector.broadcast %c3_i32_134 : i32 to vector<1x128xi32>
    %329 = arith.cmpi sge, %29, %328 : vector<1x128xi32>
    %c3_i32_135 = arith.constant 3 : i32
    %330 = tpu.dynamic_rotate %325 by %c3_i32_135 dim 1 : vector<16x128xf32>, i32 -> vector<16x128xf32>
    %cst_136 = arith.constant 0.000000e+00 : f32
    %331 = vector.shape_cast %329 : vector<1x128xi1> to vector<1x128xi1>
    %332 = vector.broadcast %331 : vector<1x128xi1> to vector<16x128xi1>
    %333 = vector.broadcast %cst_136 : f32 to vector<16x128xf32>
    %334 = arith.select %332, %330, %333 : vector<16x128xi1>, vector<16x128xf32>
    %c2_i32_137 = arith.constant 2 : i32
    %335 = vector.broadcast %c2_i32_137 : i32 to vector<1x128xi32>
    %336 = arith.cmpi sge, %29, %335 : vector<1x128xi32>
    %c2_i32_138 = arith.constant 2 : i32
    %337 = tpu.dynamic_rotate %325 by %c2_i32_138 dim 1 : vector<16x128xf32>, i32 -> vector<16x128xf32>
    %cst_139 = arith.constant 0.000000e+00 : f32
    %338 = vector.shape_cast %336 : vector<1x128xi1> to vector<1x128xi1>
    %339 = vector.broadcast %338 : vector<1x128xi1> to vector<16x128xi1>
    %340 = vector.broadcast %cst_139 : f32 to vector<16x128xf32>
    %341 = arith.select %339, %337, %340 : vector<16x128xi1>, vector<16x128xf32>
    %c1_i32_140 = arith.constant 1 : i32
    %342 = vector.broadcast %c1_i32_140 : i32 to vector<1x128xi32>
    %343 = arith.cmpi sge, %29, %342 : vector<1x128xi32>
    %c1_i32_141 = arith.constant 1 : i32
    %344 = tpu.dynamic_rotate %325 by %c1_i32_141 dim 1 : vector<16x128xf32>, i32 -> vector<16x128xf32>
    %cst_142 = arith.constant 0.000000e+00 : f32
    %345 = vector.shape_cast %343 : vector<1x128xi1> to vector<1x128xi1>
    %346 = vector.broadcast %345 : vector<1x128xi1> to vector<16x128xi1>
    %347 = vector.broadcast %cst_142 : f32 to vector<16x128xf32>
    %348 = arith.select %346, %344, %347 : vector<16x128xi1>, vector<16x128xf32>
    %349 = tpu.concatenate %334, %341, %348, %325 in 0 : vector<16x128xf32>, vector<16x128xf32>, vector<16x128xf32>, vector<16x128xf32> -> vector<64x128xf32>
    %cst_143 = arith.constant dense<0.000000e+00> : vector<16x128xf32>
    %350 = tpu.matmul %327, %349, %cst_143 {dimension_numbers = #tpu.dot_dimension_numbers<[1], [0], [0], [1], [0, 0, 1, 1], [], []>} : vector<16x64xf32>, vector<64x128xf32>, vector<16x128xf32> -> vector<16x128xf32>
    %c144_144 = arith.constant 144 : index
    %c64_145 = arith.constant 64 : index
    %351 = vector.load %arg2[%c144_144, %c64_145] : memref<232x128xf32, #tpu.memory_space<vmem>>, vector<16x1xf32>
    %352 = vector.broadcast %351 : vector<16x1xf32> to vector<16x128xf32>
    %353 = arith.addf %350, %352 : vector<16x128xf32>
    %cst_146 = arith.constant 0.000000e+00 : f32
    %354 = vector.broadcast %cst_146 : f32 to vector<16x128xf32>
    %355 = arith.maximumf %353, %354 : vector<16x128xf32>
    %356 = arith.addf %355, %326 : vector<16x128xf32>
    %cst_147 = arith.constant 0.000000e+00 : f32
    %357 = vector.broadcast %cst_147 : f32 to vector<16x128xf32>
    %358 = arith.maximumf %356, %357 : vector<16x128xf32>
    %c160_148 = arith.constant 160 : index
    %c0_149 = arith.constant 0 : index
    %359 = vector.load %arg2[%c160_148, %c0_149] : memref<232x128xf32, #tpu.memory_space<vmem>>, vector<16x64xf32>
    %c6_i32_150 = arith.constant 6 : i32
    %360 = vector.broadcast %c6_i32_150 : i32 to vector<1x128xi32>
    %361 = arith.cmpi sge, %29, %360 : vector<1x128xi32>
    %c6_i32_151 = arith.constant 6 : i32
    %362 = tpu.dynamic_rotate %358 by %c6_i32_151 dim 1 : vector<16x128xf32>, i32 -> vector<16x128xf32>
    %cst_152 = arith.constant 0.000000e+00 : f32
    %363 = vector.shape_cast %361 : vector<1x128xi1> to vector<1x128xi1>
    %364 = vector.broadcast %363 : vector<1x128xi1> to vector<16x128xi1>
    %365 = vector.broadcast %cst_152 : f32 to vector<16x128xf32>
    %366 = arith.select %364, %362, %365 : vector<16x128xi1>, vector<16x128xf32>
    %c4_i32_153 = arith.constant 4 : i32
    %367 = vector.broadcast %c4_i32_153 : i32 to vector<1x128xi32>
    %368 = arith.cmpi sge, %29, %367 : vector<1x128xi32>
    %c4_i32_154 = arith.constant 4 : i32
    %369 = tpu.dynamic_rotate %358 by %c4_i32_154 dim 1 : vector<16x128xf32>, i32 -> vector<16x128xf32>
    %cst_155 = arith.constant 0.000000e+00 : f32
    %370 = vector.shape_cast %368 : vector<1x128xi1> to vector<1x128xi1>
    %371 = vector.broadcast %370 : vector<1x128xi1> to vector<16x128xi1>
    %372 = vector.broadcast %cst_155 : f32 to vector<16x128xf32>
    %373 = arith.select %371, %369, %372 : vector<16x128xi1>, vector<16x128xf32>
    %c2_i32_156 = arith.constant 2 : i32
    %374 = vector.broadcast %c2_i32_156 : i32 to vector<1x128xi32>
    %375 = arith.cmpi sge, %29, %374 : vector<1x128xi32>
    %c2_i32_157 = arith.constant 2 : i32
    %376 = tpu.dynamic_rotate %358 by %c2_i32_157 dim 1 : vector<16x128xf32>, i32 -> vector<16x128xf32>
    %cst_158 = arith.constant 0.000000e+00 : f32
    %377 = vector.shape_cast %375 : vector<1x128xi1> to vector<1x128xi1>
    %378 = vector.broadcast %377 : vector<1x128xi1> to vector<16x128xi1>
    %379 = vector.broadcast %cst_158 : f32 to vector<16x128xf32>
    %380 = arith.select %378, %376, %379 : vector<16x128xi1>, vector<16x128xf32>
    %381 = tpu.concatenate %366, %373, %380, %358 in 0 : vector<16x128xf32>, vector<16x128xf32>, vector<16x128xf32>, vector<16x128xf32> -> vector<64x128xf32>
    %cst_159 = arith.constant dense<0.000000e+00> : vector<16x128xf32>
    %382 = tpu.matmul %359, %381, %cst_159 {dimension_numbers = #tpu.dot_dimension_numbers<[1], [0], [0], [1], [0, 0, 1, 1], [], []>} : vector<16x64xf32>, vector<64x128xf32>, vector<16x128xf32> -> vector<16x128xf32>
    %c160_160 = arith.constant 160 : index
    %c64_161 = arith.constant 64 : index
    %383 = vector.load %arg2[%c160_160, %c64_161] : memref<232x128xf32, #tpu.memory_space<vmem>>, vector<16x1xf32>
    %384 = vector.broadcast %383 : vector<16x1xf32> to vector<16x128xf32>
    %385 = arith.addf %382, %384 : vector<16x128xf32>
    %386 = vector.extract_strided_slice %385 {offsets = [0, 0], sizes = [8, 128], strides = [1, 1]} : vector<16x128xf32> to vector<8x128xf32>
    %cst_162 = arith.constant 0.000000e+00 : f32
    %387 = vector.broadcast %cst_162 : f32 to vector<8x128xf32>
    %388 = arith.maximumf %386, %387 : vector<8x128xf32>
    %389 = vector.extract_strided_slice %385 {offsets = [8, 0], sizes = [8, 128], strides = [1, 1]} : vector<16x128xf32> to vector<8x128xf32>
    %c176_163 = arith.constant 176 : index
    %c0_164 = arith.constant 0 : index
    %390 = vector.load %arg2[%c176_163, %c0_164] : memref<232x128xf32, #tpu.memory_space<vmem>>, vector<8x32xf32>
    %c6_i32_165 = arith.constant 6 : i32
    %391 = vector.broadcast %c6_i32_165 : i32 to vector<1x128xi32>
    %392 = arith.cmpi sge, %29, %391 : vector<1x128xi32>
    %c6_i32_166 = arith.constant 6 : i32
    %393 = tpu.dynamic_rotate %388 by %c6_i32_166 dim 1 : vector<8x128xf32>, i32 -> vector<8x128xf32>
    %cst_167 = arith.constant 0.000000e+00 : f32
    %394 = vector.shape_cast %392 : vector<1x128xi1> to vector<1x128xi1>
    %395 = vector.broadcast %394 : vector<1x128xi1> to vector<8x128xi1>
    %396 = vector.broadcast %cst_167 : f32 to vector<8x128xf32>
    %397 = arith.select %395, %393, %396 : vector<8x128xi1>, vector<8x128xf32>
    %c4_i32_168 = arith.constant 4 : i32
    %398 = vector.broadcast %c4_i32_168 : i32 to vector<1x128xi32>
    %399 = arith.cmpi sge, %29, %398 : vector<1x128xi32>
    %c4_i32_169 = arith.constant 4 : i32
    %400 = tpu.dynamic_rotate %388 by %c4_i32_169 dim 1 : vector<8x128xf32>, i32 -> vector<8x128xf32>
    %cst_170 = arith.constant 0.000000e+00 : f32
    %401 = vector.shape_cast %399 : vector<1x128xi1> to vector<1x128xi1>
    %402 = vector.broadcast %401 : vector<1x128xi1> to vector<8x128xi1>
    %403 = vector.broadcast %cst_170 : f32 to vector<8x128xf32>
    %404 = arith.select %402, %400, %403 : vector<8x128xi1>, vector<8x128xf32>
    %c2_i32_171 = arith.constant 2 : i32
    %405 = vector.broadcast %c2_i32_171 : i32 to vector<1x128xi32>
    %406 = arith.cmpi sge, %29, %405 : vector<1x128xi32>
    %c2_i32_172 = arith.constant 2 : i32
    %407 = tpu.dynamic_rotate %388 by %c2_i32_172 dim 1 : vector<8x128xf32>, i32 -> vector<8x128xf32>
    %cst_173 = arith.constant 0.000000e+00 : f32
    %408 = vector.shape_cast %406 : vector<1x128xi1> to vector<1x128xi1>
    %409 = vector.broadcast %408 : vector<1x128xi1> to vector<8x128xi1>
    %410 = vector.broadcast %cst_173 : f32 to vector<8x128xf32>
    %411 = arith.select %409, %407, %410 : vector<8x128xi1>, vector<8x128xf32>
    %412 = tpu.concatenate %397, %404, %411, %388 in 0 : vector<8x128xf32>, vector<8x128xf32>, vector<8x128xf32>, vector<8x128xf32> -> vector<32x128xf32>
    %cst_174 = arith.constant dense<0.000000e+00> : vector<8x128xf32>
    %413 = tpu.matmul %390, %412, %cst_174 {dimension_numbers = #tpu.dot_dimension_numbers<[1], [0], [0], [1], [0, 0, 1, 1], [], []>} : vector<8x32xf32>, vector<32x128xf32>, vector<8x128xf32> -> vector<8x128xf32>
    %c176_175 = arith.constant 176 : index
    %c32_176 = arith.constant 32 : index
    %414 = vector.load %arg2[%c176_175, %c32_176] : memref<232x128xf32, #tpu.memory_space<vmem>>, vector<8x1xf32>
    %415 = vector.broadcast %414 : vector<8x1xf32> to vector<8x128xf32>
    %416 = arith.addf %413, %415 : vector<8x128xf32>
    %cst_177 = arith.constant 0.000000e+00 : f32
    %417 = vector.broadcast %cst_177 : f32 to vector<8x128xf32>
    %418 = arith.maximumf %416, %417 : vector<8x128xf32>
    %419 = arith.addf %418, %389 : vector<8x128xf32>
    %cst_178 = arith.constant 0.000000e+00 : f32
    %420 = vector.broadcast %cst_178 : f32 to vector<8x128xf32>
    %421 = arith.maximumf %419, %420 : vector<8x128xf32>
    %c184_179 = arith.constant 184 : index
    %c0_180 = arith.constant 0 : index
    %422 = vector.load %arg2[%c184_179, %c0_180] : memref<232x128xf32, #tpu.memory_space<vmem>>, vector<16x32xf32>
    %c12_i32_181 = arith.constant 12 : i32
    %423 = vector.broadcast %c12_i32_181 : i32 to vector<1x128xi32>
    %424 = arith.cmpi sge, %29, %423 : vector<1x128xi32>
    %c12_i32_182 = arith.constant 12 : i32
    %425 = tpu.dynamic_rotate %421 by %c12_i32_182 dim 1 : vector<8x128xf32>, i32 -> vector<8x128xf32>
    %cst_183 = arith.constant 0.000000e+00 : f32
    %426 = vector.shape_cast %424 : vector<1x128xi1> to vector<1x128xi1>
    %427 = vector.broadcast %426 : vector<1x128xi1> to vector<8x128xi1>
    %428 = vector.broadcast %cst_183 : f32 to vector<8x128xf32>
    %429 = arith.select %427, %425, %428 : vector<8x128xi1>, vector<8x128xf32>
    %c8_i32_184 = arith.constant 8 : i32
    %430 = vector.broadcast %c8_i32_184 : i32 to vector<1x128xi32>
    %431 = arith.cmpi sge, %29, %430 : vector<1x128xi32>
    %c8_i32_185 = arith.constant 8 : i32
    %432 = tpu.dynamic_rotate %421 by %c8_i32_185 dim 1 : vector<8x128xf32>, i32 -> vector<8x128xf32>
    %cst_186 = arith.constant 0.000000e+00 : f32
    %433 = vector.shape_cast %431 : vector<1x128xi1> to vector<1x128xi1>
    %434 = vector.broadcast %433 : vector<1x128xi1> to vector<8x128xi1>
    %435 = vector.broadcast %cst_186 : f32 to vector<8x128xf32>
    %436 = arith.select %434, %432, %435 : vector<8x128xi1>, vector<8x128xf32>
    %c4_i32_187 = arith.constant 4 : i32
    %437 = vector.broadcast %c4_i32_187 : i32 to vector<1x128xi32>
    %438 = arith.cmpi sge, %29, %437 : vector<1x128xi32>
    %c4_i32_188 = arith.constant 4 : i32
    %439 = tpu.dynamic_rotate %421 by %c4_i32_188 dim 1 : vector<8x128xf32>, i32 -> vector<8x128xf32>
    %cst_189 = arith.constant 0.000000e+00 : f32
    %440 = vector.shape_cast %438 : vector<1x128xi1> to vector<1x128xi1>
    %441 = vector.broadcast %440 : vector<1x128xi1> to vector<8x128xi1>
    %442 = vector.broadcast %cst_189 : f32 to vector<8x128xf32>
    %443 = arith.select %441, %439, %442 : vector<8x128xi1>, vector<8x128xf32>
    %444 = tpu.concatenate %429, %436, %443, %421 in 0 : vector<8x128xf32>, vector<8x128xf32>, vector<8x128xf32>, vector<8x128xf32> -> vector<32x128xf32>
    %cst_190 = arith.constant dense<0.000000e+00> : vector<16x128xf32>
    %445 = tpu.matmul %422, %444, %cst_190 {dimension_numbers = #tpu.dot_dimension_numbers<[1], [0], [0], [1], [0, 0, 1, 1], [], []>} : vector<16x32xf32>, vector<32x128xf32>, vector<16x128xf32> -> vector<16x128xf32>
    %c184_191 = arith.constant 184 : index
    %c32_192 = arith.constant 32 : index
    %446 = vector.load %arg2[%c184_191, %c32_192] : memref<232x128xf32, #tpu.memory_space<vmem>>, vector<16x1xf32>
    %447 = vector.broadcast %446 : vector<16x1xf32> to vector<16x128xf32>
    %448 = arith.addf %445, %447 : vector<16x128xf32>
    %449 = vector.extract_strided_slice %448 {offsets = [0, 0], sizes = [8, 128], strides = [1, 1]} : vector<16x128xf32> to vector<8x128xf32>
    %cst_193 = arith.constant 0.000000e+00 : f32
    %450 = vector.broadcast %cst_193 : f32 to vector<8x128xf32>
    %451 = arith.maximumf %449, %450 : vector<8x128xf32>
    %452 = vector.extract_strided_slice %448 {offsets = [8, 0], sizes = [8, 128], strides = [1, 1]} : vector<16x128xf32> to vector<8x128xf32>
    %c200_194 = arith.constant 200 : index
    %c0_195 = arith.constant 0 : index
    %453 = vector.load %arg2[%c200_194, %c0_195] : memref<232x128xf32, #tpu.memory_space<vmem>>, vector<8x32xf32>
    %c12_i32_196 = arith.constant 12 : i32
    %454 = vector.broadcast %c12_i32_196 : i32 to vector<1x128xi32>
    %455 = arith.cmpi sge, %29, %454 : vector<1x128xi32>
    %c12_i32_197 = arith.constant 12 : i32
    %456 = tpu.dynamic_rotate %451 by %c12_i32_197 dim 1 : vector<8x128xf32>, i32 -> vector<8x128xf32>
    %cst_198 = arith.constant 0.000000e+00 : f32
    %457 = vector.shape_cast %455 : vector<1x128xi1> to vector<1x128xi1>
    %458 = vector.broadcast %457 : vector<1x128xi1> to vector<8x128xi1>
    %459 = vector.broadcast %cst_198 : f32 to vector<8x128xf32>
    %460 = arith.select %458, %456, %459 : vector<8x128xi1>, vector<8x128xf32>
    %c8_i32_199 = arith.constant 8 : i32
    %461 = vector.broadcast %c8_i32_199 : i32 to vector<1x128xi32>
    %462 = arith.cmpi sge, %29, %461 : vector<1x128xi32>
    %c8_i32_200 = arith.constant 8 : i32
    %463 = tpu.dynamic_rotate %451 by %c8_i32_200 dim 1 : vector<8x128xf32>, i32 -> vector<8x128xf32>
    %cst_201 = arith.constant 0.000000e+00 : f32
    %464 = vector.shape_cast %462 : vector<1x128xi1> to vector<1x128xi1>
    %465 = vector.broadcast %464 : vector<1x128xi1> to vector<8x128xi1>
    %466 = vector.broadcast %cst_201 : f32 to vector<8x128xf32>
    %467 = arith.select %465, %463, %466 : vector<8x128xi1>, vector<8x128xf32>
    %c4_i32_202 = arith.constant 4 : i32
    %468 = vector.broadcast %c4_i32_202 : i32 to vector<1x128xi32>
    %469 = arith.cmpi sge, %29, %468 : vector<1x128xi32>
    %c4_i32_203 = arith.constant 4 : i32
    %470 = tpu.dynamic_rotate %451 by %c4_i32_203 dim 1 : vector<8x128xf32>, i32 -> vector<8x128xf32>
    %cst_204 = arith.constant 0.000000e+00 : f32
    %471 = vector.shape_cast %469 : vector<1x128xi1> to vector<1x128xi1>
    %472 = vector.broadcast %471 : vector<1x128xi1> to vector<8x128xi1>
    %473 = vector.broadcast %cst_204 : f32 to vector<8x128xf32>
    %474 = arith.select %472, %470, %473 : vector<8x128xi1>, vector<8x128xf32>
    %475 = tpu.concatenate %460, %467, %474, %451 in 0 : vector<8x128xf32>, vector<8x128xf32>, vector<8x128xf32>, vector<8x128xf32> -> vector<32x128xf32>
    %cst_205 = arith.constant dense<0.000000e+00> : vector<8x128xf32>
    %476 = tpu.matmul %453, %475, %cst_205 {dimension_numbers = #tpu.dot_dimension_numbers<[1], [0], [0], [1], [0, 0, 1, 1], [], []>} : vector<8x32xf32>, vector<32x128xf32>, vector<8x128xf32> -> vector<8x128xf32>
    %c200_206 = arith.constant 200 : index
    %c32_207 = arith.constant 32 : index
    %477 = vector.load %arg2[%c200_206, %c32_207] : memref<232x128xf32, #tpu.memory_space<vmem>>, vector<8x1xf32>
    %478 = vector.broadcast %477 : vector<8x1xf32> to vector<8x128xf32>
    %479 = arith.addf %476, %478 : vector<8x128xf32>
    %cst_208 = arith.constant 0.000000e+00 : f32
    %480 = vector.broadcast %cst_208 : f32 to vector<8x128xf32>
    %481 = arith.maximumf %479, %480 : vector<8x128xf32>
    %482 = arith.addf %481, %452 : vector<8x128xf32>
    %cst_209 = arith.constant 0.000000e+00 : f32
    %483 = vector.broadcast %cst_209 : f32 to vector<8x128xf32>
    %484 = arith.maximumf %482, %483 : vector<8x128xf32>
    %c208_210 = arith.constant 208 : index
    %c0_211 = arith.constant 0 : index
    %485 = vector.load %arg2[%c208_210, %c0_211] : memref<232x128xf32, #tpu.memory_space<vmem>>, vector<16x32xf32>
    %c24_i32_212 = arith.constant 24 : i32
    %486 = vector.broadcast %c24_i32_212 : i32 to vector<1x128xi32>
    %487 = arith.cmpi sge, %29, %486 : vector<1x128xi32>
    %c24_i32_213 = arith.constant 24 : i32
    %488 = tpu.dynamic_rotate %484 by %c24_i32_213 dim 1 : vector<8x128xf32>, i32 -> vector<8x128xf32>
    %cst_214 = arith.constant 0.000000e+00 : f32
    %489 = vector.shape_cast %487 : vector<1x128xi1> to vector<1x128xi1>
    %490 = vector.broadcast %489 : vector<1x128xi1> to vector<8x128xi1>
    %491 = vector.broadcast %cst_214 : f32 to vector<8x128xf32>
    %492 = arith.select %490, %488, %491 : vector<8x128xi1>, vector<8x128xf32>
    %c16_i32_215 = arith.constant 16 : i32
    %493 = vector.broadcast %c16_i32_215 : i32 to vector<1x128xi32>
    %494 = arith.cmpi sge, %29, %493 : vector<1x128xi32>
    %c16_i32_216 = arith.constant 16 : i32
    %495 = tpu.dynamic_rotate %484 by %c16_i32_216 dim 1 : vector<8x128xf32>, i32 -> vector<8x128xf32>
    %cst_217 = arith.constant 0.000000e+00 : f32
    %496 = vector.shape_cast %494 : vector<1x128xi1> to vector<1x128xi1>
    %497 = vector.broadcast %496 : vector<1x128xi1> to vector<8x128xi1>
    %498 = vector.broadcast %cst_217 : f32 to vector<8x128xf32>
    %499 = arith.select %497, %495, %498 : vector<8x128xi1>, vector<8x128xf32>
    %c8_i32_218 = arith.constant 8 : i32
    %500 = vector.broadcast %c8_i32_218 : i32 to vector<1x128xi32>
    %501 = arith.cmpi sge, %29, %500 : vector<1x128xi32>
    %c8_i32_219 = arith.constant 8 : i32
    %502 = tpu.dynamic_rotate %484 by %c8_i32_219 dim 1 : vector<8x128xf32>, i32 -> vector<8x128xf32>
    %cst_220 = arith.constant 0.000000e+00 : f32
    %503 = vector.shape_cast %501 : vector<1x128xi1> to vector<1x128xi1>
    %504 = vector.broadcast %503 : vector<1x128xi1> to vector<8x128xi1>
    %505 = vector.broadcast %cst_220 : f32 to vector<8x128xf32>
    %506 = arith.select %504, %502, %505 : vector<8x128xi1>, vector<8x128xf32>
    %507 = tpu.concatenate %492, %499, %506, %484 in 0 : vector<8x128xf32>, vector<8x128xf32>, vector<8x128xf32>, vector<8x128xf32> -> vector<32x128xf32>
    %cst_221 = arith.constant dense<0.000000e+00> : vector<16x128xf32>
    %508 = tpu.matmul %485, %507, %cst_221 {dimension_numbers = #tpu.dot_dimension_numbers<[1], [0], [0], [1], [0, 0, 1, 1], [], []>} : vector<16x32xf32>, vector<32x128xf32>, vector<16x128xf32> -> vector<16x128xf32>
    %c208_222 = arith.constant 208 : index
    %c32_223 = arith.constant 32 : index
    %509 = vector.load %arg2[%c208_222, %c32_223] : memref<232x128xf32, #tpu.memory_space<vmem>>, vector<16x1xf32>
    %510 = vector.broadcast %509 : vector<16x1xf32> to vector<16x128xf32>
    %511 = arith.addf %508, %510 : vector<16x128xf32>
    %512 = vector.extract_strided_slice %511 {offsets = [0, 0], sizes = [8, 128], strides = [1, 1]} : vector<16x128xf32> to vector<8x128xf32>
    %cst_224 = arith.constant 0.000000e+00 : f32
    %513 = vector.broadcast %cst_224 : f32 to vector<8x128xf32>
    %514 = arith.maximumf %512, %513 : vector<8x128xf32>
    %515 = vector.extract_strided_slice %511 {offsets = [8, 0], sizes = [8, 128], strides = [1, 1]} : vector<16x128xf32> to vector<8x128xf32>
    %c224_225 = arith.constant 224 : index
    %c0_226 = arith.constant 0 : index
    %516 = vector.load %arg2[%c224_225, %c0_226] : memref<232x128xf32, #tpu.memory_space<vmem>>, vector<8x32xf32>
    %c24_i32_227 = arith.constant 24 : i32
    %517 = vector.broadcast %c24_i32_227 : i32 to vector<1x128xi32>
    %518 = arith.cmpi sge, %29, %517 : vector<1x128xi32>
    %c24_i32_228 = arith.constant 24 : i32
    %519 = tpu.dynamic_rotate %514 by %c24_i32_228 dim 1 : vector<8x128xf32>, i32 -> vector<8x128xf32>
    %cst_229 = arith.constant 0.000000e+00 : f32
    %520 = vector.shape_cast %518 : vector<1x128xi1> to vector<1x128xi1>
    %521 = vector.broadcast %520 : vector<1x128xi1> to vector<8x128xi1>
    %522 = vector.broadcast %cst_229 : f32 to vector<8x128xf32>
    %523 = arith.select %521, %519, %522 : vector<8x128xi1>, vector<8x128xf32>
    %c16_i32_230 = arith.constant 16 : i32
    %524 = vector.broadcast %c16_i32_230 : i32 to vector<1x128xi32>
    %525 = arith.cmpi sge, %29, %524 : vector<1x128xi32>
    %c16_i32_231 = arith.constant 16 : i32
    %526 = tpu.dynamic_rotate %514 by %c16_i32_231 dim 1 : vector<8x128xf32>, i32 -> vector<8x128xf32>
    %cst_232 = arith.constant 0.000000e+00 : f32
    %527 = vector.shape_cast %525 : vector<1x128xi1> to vector<1x128xi1>
    %528 = vector.broadcast %527 : vector<1x128xi1> to vector<8x128xi1>
    %529 = vector.broadcast %cst_232 : f32 to vector<8x128xf32>
    %530 = arith.select %528, %526, %529 : vector<8x128xi1>, vector<8x128xf32>
    %c8_i32_233 = arith.constant 8 : i32
    %531 = vector.broadcast %c8_i32_233 : i32 to vector<1x128xi32>
    %532 = arith.cmpi sge, %29, %531 : vector<1x128xi32>
    %c8_i32_234 = arith.constant 8 : i32
    %533 = tpu.dynamic_rotate %514 by %c8_i32_234 dim 1 : vector<8x128xf32>, i32 -> vector<8x128xf32>
    %cst_235 = arith.constant 0.000000e+00 : f32
    %534 = vector.shape_cast %532 : vector<1x128xi1> to vector<1x128xi1>
    %535 = vector.broadcast %534 : vector<1x128xi1> to vector<8x128xi1>
    %536 = vector.broadcast %cst_235 : f32 to vector<8x128xf32>
    %537 = arith.select %535, %533, %536 : vector<8x128xi1>, vector<8x128xf32>
    %538 = tpu.concatenate %523, %530, %537, %514 in 0 : vector<8x128xf32>, vector<8x128xf32>, vector<8x128xf32>, vector<8x128xf32> -> vector<32x128xf32>
    %cst_236 = arith.constant dense<0.000000e+00> : vector<8x128xf32>
    %539 = tpu.matmul %516, %538, %cst_236 {dimension_numbers = #tpu.dot_dimension_numbers<[1], [0], [0], [1], [0, 0, 1, 1], [], []>} : vector<8x32xf32>, vector<32x128xf32>, vector<8x128xf32> -> vector<8x128xf32>
    %c224_237 = arith.constant 224 : index
    %c32_238 = arith.constant 32 : index
    %540 = vector.load %arg2[%c224_237, %c32_238] : memref<232x128xf32, #tpu.memory_space<vmem>>, vector<8x1xf32>
    %541 = vector.broadcast %540 : vector<8x1xf32> to vector<8x128xf32>
    %542 = arith.addf %539, %541 : vector<8x128xf32>
    %cst_239 = arith.constant 0.000000e+00 : f32
    %543 = vector.broadcast %cst_239 : f32 to vector<8x128xf32>
    %544 = arith.maximumf %542, %543 : vector<8x128xf32>
    %545 = arith.addf %544, %515 : vector<8x128xf32>
    %cst_240 = arith.constant 0.000000e+00 : f32
    %546 = vector.broadcast %cst_240 : f32 to vector<8x128xf32>
    %547 = arith.maximumf %545, %546 : vector<8x128xf32>
    %548 = vector.extract_strided_slice %547 {offsets = [0, 0], sizes = [1, 32], strides = [1, 1]} : vector<8x128xf32> to vector<1x32xf32>
    %549 = vector.extract_strided_slice %547 {offsets = [0, 32], sizes = [1, 32], strides = [1, 1]} : vector<8x128xf32> to vector<1x32xf32>
    %550 = vector.extract_strided_slice %547 {offsets = [0, 64], sizes = [1, 32], strides = [1, 1]} : vector<8x128xf32> to vector<1x32xf32>
    %551 = vector.extract_strided_slice %547 {offsets = [0, 96], sizes = [1, 32], strides = [1, 1]} : vector<8x128xf32> to vector<1x32xf32>
    %552 = tpu.concatenate %287, %288, %289, %290, %548, %549, %550, %551 in 0 : vector<1x32xf32>, vector<1x32xf32>, vector<1x32xf32>, vector<1x32xf32>, vector<1x32xf32>, vector<1x32xf32>, vector<1x32xf32>, vector<1x32xf32> -> vector<8x32xf32>
    %c72_241 = arith.constant 72 : index
    %c32_242 = arith.constant 32 : index
    %553 = vector.load %arg2[%c72_241, %c32_242] : memref<232x128xf32, #tpu.memory_space<vmem>>, vector<32x32xf32>
    %cst_243 = arith.constant dense<0.000000e+00> : vector<8x32xf32>
    %554 = tpu.matmul %552, %553, %cst_243 {dimension_numbers = #tpu.dot_dimension_numbers<[1], [0], [0], [1], [0, 0, 1, 1], [], []>} : vector<8x32xf32>, vector<32x32xf32>, vector<8x32xf32> -> vector<8x32xf32>
    %c0_244 = arith.constant 0 : index
    %c32_245 = arith.constant 32 : index
    %555 = vector.load %arg2[%c0_244, %c32_245] : memref<232x128xf32, #tpu.memory_space<vmem>>, vector<1x32xf32>
    %556 = vector.broadcast %555 : vector<1x32xf32> to vector<8x32xf32>
    %557 = arith.addf %554, %556 : vector<8x32xf32>
    %c8_246 = arith.constant 8 : index
    %c32_247 = arith.constant 32 : index
    %558 = vector.load %arg2[%c8_246, %c32_247] : memref<232x128xf32, #tpu.memory_space<vmem>>, vector<64x8xf32>
    %cst_248 = arith.constant dense<0.000000e+00> : vector<64x32xf32>
    %559 = tpu.matmul %558, %557, %cst_248 {dimension_numbers = #tpu.dot_dimension_numbers<[1], [0], [0], [1], [0, 0, 1, 1], [], []>} : vector<64x8xf32>, vector<8x32xf32>, vector<64x32xf32> -> vector<64x32xf32>
    %560 = arith.mulf %26, %559 : vector<64x32xf32>
    %c72_249 = arith.constant 72 : index
    %c64_250 = arith.constant 64 : index
    %561 = vector.load %arg2[%c72_249, %c64_250] : memref<232x128xf32, #tpu.memory_space<vmem>>, vector<32x4xf32>
    %cst_251 = arith.constant dense<0.000000e+00> : vector<64x4xf32>
    %562 = tpu.matmul %560, %561, %cst_251 {dimension_numbers = #tpu.dot_dimension_numbers<[1], [0], [0], [1], [0, 0, 1, 1], [], []>} : vector<64x32xf32>, vector<32x4xf32>, vector<64x4xf32> -> vector<64x4xf32>
    %563 = vector.shape_cast %562 : vector<64x4xf32> to vector<8x8x4xf32>
    %cst_252 = arith.constant dense<0xFF800000> : vector<8x4xf32>
    %564 = vector.multi_reduction <maximumf>, %563, %cst_252 [1] : vector<8x8x4xf32> to vector<8x4xf32>
    %c8_253 = arith.constant 8 : index
    %c32_254 = arith.constant 32 : index
    %565 = vector.load %arg2[%c8_253, %c32_254] : memref<232x128xf32, #tpu.memory_space<vmem>>, vector<64x8xf32>
    %cst_255 = arith.constant dense<0.000000e+00> : vector<64x4xf32>
    %566 = tpu.matmul %565, %564, %cst_255 {dimension_numbers = #tpu.dot_dimension_numbers<[1], [0], [0], [1], [0, 0, 1, 1], [], []>} : vector<64x8xf32>, vector<8x4xf32>, vector<64x4xf32> -> vector<64x4xf32>
    %567 = arith.subf %562, %566 : vector<64x4xf32>
    %568 = math.exp %567 : vector<64x4xf32>
    %c104 = arith.constant 104 : index
    %c64_256 = arith.constant 64 : index
    %569 = vector.load %arg2[%c104, %c64_256] : memref<232x128xf32, #tpu.memory_space<vmem>>, vector<4x32xf32>
    %cst_257 = arith.constant dense<0.000000e+00> : vector<64x32xf32>
    %570 = tpu.matmul %568, %569, %cst_257 {dimension_numbers = #tpu.dot_dimension_numbers<[1], [0], [0], [1], [0, 0, 1, 1], [], []>} : vector<64x4xf32>, vector<4x32xf32>, vector<64x32xf32> -> vector<64x32xf32>
    %c104_258 = arith.constant 104 : index
    %c0_259 = arith.constant 0 : index
    %571 = vector.load %arg2[%c104_258, %c0_259] : memref<232x128xf32, #tpu.memory_space<vmem>>, vector<8x64xf32>
    %572 = arith.mulf %570, %21 : vector<64x32xf32>
    %573 = tpu.concatenate %572, %570 in 1 : vector<64x32xf32>, vector<64x32xf32> -> vector<64x64xf32>
    %cst_260 = arith.constant dense<0.000000e+00> : vector<8x64xf32>
    %574 = tpu.matmul %571, %573, %cst_260 {dimension_numbers = #tpu.dot_dimension_numbers<[1], [0], [0], [1], [0, 0, 1, 1], [], []>} : vector<8x64xf32>, vector<64x64xf32>, vector<8x64xf32> -> vector<8x64xf32>
    %575 = vector.extract_strided_slice %574 {offsets = [0, 0], sizes = [8, 32], strides = [1, 1]} : vector<8x64xf32> to vector<8x32xf32>
    %576 = vector.extract_strided_slice %574 {offsets = [0, 32], sizes = [8, 32], strides = [1, 1]} : vector<8x64xf32> to vector<8x32xf32>
    %577 = arith.divf %575, %576 : vector<8x32xf32>
    %cst_261 = arith.constant 0.000000e+00 : f32
    %578 = vector.broadcast %cst_261 : f32 to vector<8x64xf32>
    %579 = tpu.concatenate %577, %557, %578 in 1 : vector<8x32xf32>, vector<8x32xf32>, vector<8x64xf32> -> vector<8x128xf32>
    %c0_262 = arith.constant 0 : index
    %c0_263 = arith.constant 0 : index
    %580 = vector.load %arg3[%c0_262, %c0_263] : memref<8x128xf32, #tpu.memory_space<vmem>>, vector<8x128xf32>
    tpu.vector_store %arg3[%c0_262, %c0_263], %579 {strides = array<i32>} : memref<8x128xf32, #tpu.memory_space<vmem>>, vector<8x128xf32>,
    return
  }
  func.func @transform_0(%arg0: i32) -> (i32, i32) {
    %c0_i32 = arith.constant 0 : i32
    %c0_i32_0 = arith.constant 0 : i32
    return %arg0, %c0_i32 : i32, i32
  }
  func.func @transform_1(%arg0: i32) -> (i32, i32) {
    %c0_i32 = arith.constant 0 : i32
    %c0_i32_0 = arith.constant 0 : i32
    %c0_i32_1 = arith.constant 0 : i32
    return %c0_i32, %c0_i32_0 : i32, i32
  }
  func.func @transform_2(%arg0: i32) -> (i32, i32) {
    %c0_i32 = arith.constant 0 : i32
    %c0_i32_0 = arith.constant 0 : i32
    return %arg0, %c0_i32 : i32, i32
  }
}

</mosaic_0001>

<llo_original>
// kernel: tpu_custom_call.1
$region0: #{tpu_custom_call.1}
  #allocation0 [shape = 'u32[]', space=smem, size = 0x4, offset = 0x4, fixed_abs, tag = 'smem constant byte address 0x4 - core index']
  #allocation1 [shape = 'u32[144,128]{1,0:T(1,128)}', space=vmem, size = 0x12000, scoped, tag = 'internal scratch']
  %s0 = inlined_call_operand.vmem [shape: f32[128,32], index: 0, kind: input, shape index: {}]
  %s1 = inlined_call_operand.hbm [shape: f32[232,128], index: 1, kind: input, shape index: {}]
  %s2 = inlined_call_operand.hbm [shape: f32[16,128], index: 2, kind: output, shape index: {}]
  %s3 = sld [smem:[#allocation0]]
  $region45: #{tpu_custom_call.1} parent=0
    _
  %s5 = ssub.s32 1, %s3
  %s6 = scalar_select 0, %s5, %s3
  $region1: #{tpu_custom_call.1} parent=0
    #allocation2 [shape = 'u8[118784]{0}', space=vmem, size = 0x1d000, scoped, tag = 'input window, operand 1, single buffered']
    #allocation3 [shape = 's32[2]{0}', space=sflag, size = 0x8, scoped, tag = 'scoped memory for tpu_custom_call.1']
    #allocation4 [shape = 's32[2]{0}', space=sflag, size = 0x8, scoped, tag = 'scoped memory for tpu_custom_call.1']
    #allocation5 [shape = 'u8[8192]{0}', space=vmem, size = 0x2000, scoped, tag = 'output window, operand 0']
    %7 = vsyncpa [#allocation3], 0
    %8 = vsyncpa [#allocation4], 0
    %s9 = scalar_lea.sflag [#allocation4], 1
    %10 = vsyncpa %s9, 0
    loop: start=0, step=1, limit=4
    $region2: #{tpu_custom_call.1} parent=1 // loop_pre_header
      _
    $region3: #{tpu_custom_call.1} parent=1 // loop_header
      %s12 = sphi 0, %s16
      %p13 = scmp.ge.s32.totalorder %s12, 4
      %s22 = sphi 0, %s24
      %s25 = sphi 0, %s22
      %s26 = sphi 0, %s25
      %s42 = sphi 0, %s26
      %s46 = sphi 0, %s46
      %s48 = sphi 0, %s46
      %s49 = sphi 0, %s48
      %s63 = sphi 0, %s49
      %s69 = sphi 0, %s71
      %s72 = sphi 0, %s69
      %s73 = sphi 0, %s72
      %s89 = sphi 0, %s73
    $region4: #{tpu_custom_call.1} parent=1 // loop_header_branch
      %15 = sbr.rel (%p13) target = $region8
    $region5: #{tpu_custom_call.1} parent=1 // loop_body
      %s17 = ssub.s32 %s12, 1
      %s18 = ssub.s32 %s12, 2
      %s19 = sadd.s32 %s12, 1
      %s20 = ssub.s32 %s12, %s19
      %p21 = scmp.eq.s32.totalorder %s20, 0
      %s23 = sadd.s32 %s22, 1
      %s24 = scalar_select %p21, %s22, %s23
      %p27 = pneg %p21
      %p28 = scmp.eq.s32.totalorder %s12, 1
      %p29 = por %p27, %p28
      %p30 = scmp.ne.s32.totalorder %s22, %s25
      %p31 = scmp.eq.s32.totalorder %s12, 0
      %p32 = por %p30, %p31
      %p33 = scmp.ne.s32.totalorder %s22, %s25
      %p34 = scmp.eq.s32.totalorder %s17, 1
      %p35 = por %p33, %p34
      %p36 = scmp.ne.s32.totalorder %s25, %s26
      %p37 = scmp.eq.s32.totalorder %s17, 0
      %p38 = por %p36, %p37
      %p39 = scmp.ne.s32.totalorder %s25, %s26
      %p40 = scmp.eq.s32.totalorder %s18, 1
      %p41 = por %p39, %p40
      %p43 = scmp.ne.s32.totalorder %s26, %s42
      %p44 = scmp.eq.s32.totalorder %s18, 0
      %p45 = por %p43, %p44
      %s47 = sadd.s32 %s46, 1
      %p50 = scmp.eq.s32.totalorder %s12, 1
      %p51 = scmp.ne.s32.totalorder %s46, %s48
      %p52 = scmp.eq.s32.totalorder %s12, 0
      %p53 = por %p51, %p52
      %p54 = scmp.ne.s32.totalorder %s46, %s48
      %p55 = scmp.eq.s32.totalorder %s17, 1
      %p56 = por %p54, %p55
      %p57 = scmp.ne.s32.totalorder %s48, %s49
      %p58 = scmp.eq.s32.totalorder %s17, 0
      %p59 = por %p57, %p58
      %p60 = scmp.ne.s32.totalorder %s48, %s49
      %p61 = scmp.eq.s32.totalorder %s18, 1
      %p62 = por %p60, %p61
      %p64 = scmp.ne.s32.totalorder %s49, %s63
      %p65 = scmp.eq.s32.totalorder %s18, 0
      %p66 = por %p64, %p65
      %s67 = ssub.s32 %s12, %s19
      %p68 = scmp.eq.s32.totalorder %s67, 0
      %s70 = sadd.s32 %s69, 1
      %s71 = scalar_select %p68, %s69, %s70
      %p74 = pneg %p68
      %p75 = scmp.eq.s32.totalorder %s12, 1
      %p76 = por %p74, %p75
      %p77 = scmp.ne.s32.totalorder %s69, %s72
      %p78 = scmp.eq.s32.totalorder %s12, 0
      %p79 = por %p77, %p78
      %p80 = scmp.ne.s32.totalorder %s69, %s72
      %p81 = scmp.eq.s32.totalorder %s17, 1
      %p82 = por %p80, %p81
      %p83 = scmp.ne.s32.totalorder %s72, %s73
      %p84 = scmp.eq.s32.totalorder %s17, 0
      %p85 = por %p83, %p84
      %p86 = scmp.ne.s32.totalorder %s72, %s73
      %p87 = scmp.eq.s32.totalorder %s18, 1
      %p88 = por %p86, %p87
      %p90 = scmp.ne.s32.totalorder %s73, %s89
      %p91 = scmp.eq.s32.totalorder %s18, 0
      %p92 = por %p90, %p91
      %p93 = scmp.le.s32.totalorder 1, %s12
      %p94 = scmp.lt.s32.totalorder %s12, 3
      %p95 = pnand %p93, %p94
      %p96 = pneg %p95
      // Predicated region
      $region9: #{tpu_custom_call.1} parent=5 // pred_check
        _
      $region10: #{tpu_custom_call.1} parent=5 // pred_check_branch
        %98 = sbr.rel (%p95) target = $region12
      $region11: #{tpu_custom_call.1} parent=5 // pred_region
        %s99 = ssub.s32 %s12, 1
        // Predicated region
        $region13: #{tpu_custom_call.1} parent=11 // pred_check
          %p100 = pneg %p59
        $region14: #{tpu_custom_call.1} parent=11 // pred_check_branch
          %102 = sbr.rel (%p100) target = $region16
        $region15: #{tpu_custom_call.1} parent=11 // pred_region
          %s104 = ssub.s32 3712, 3712
          %105 = vsyncadd [#allocation3], %s104
          %s106 = sshll.u32 [#allocation2], 4
          %s107 = int_to_ptr.vmem [resolvable:$true] %s106
          %112 = dma.hbm_to_vmem [thread:$0]  %s1, 3712, %s107, [#allocation3], 128, 128, 8
        $region16: #{tpu_custom_call.1} parent=11 // pred_fallthru
          _
      $region12: #{tpu_custom_call.1} parent=5 // pred_fallthru
        _
      %p113 = scmp.lt.s32.totalorder %s12, 2
      // Predicated region
      $region17: #{tpu_custom_call.1} parent=5 // pred_check
        %p114 = pneg %p113
      $region18: #{tpu_custom_call.1} parent=5 // pred_check_branch
        %116 = sbr.rel (%p114) target = $region20
      $region19: #{tpu_custom_call.1} parent=5 // pred_region
        // Predicated region
        $region21: #{tpu_custom_call.1} parent=19 // pred_check
          %p117 = pneg %p32
        $region22: #{tpu_custom_call.1} parent=19 // pred_check_branch
          %119 = sbr.rel (%p117) target = $region24
        $region23: #{tpu_custom_call.1} parent=19 // pred_region
          %s120 = smul.u32 8, %s12
          %p121 = scmp.lt.s32.totalorder %s120, 15
          %s122 = scalar_select %p121, %s120, 15
          %s123 = smul.addr %s122, 8
          %s124 = scalar_lea.vmem %s0, %s123
          %s125 = smul.u32 8, %s12
        $region24: #{tpu_custom_call.1} parent=19 // pred_fallthru
          _
      $region20: #{tpu_custom_call.1} parent=5 // pred_fallthru
        _
      %p126 = scmp.le.s32.totalorder 1, %s12
      %p127 = scmp.lt.s32.totalorder %s12, 3
      %p128 = pnand %p126, %p127
      %p129 = pneg %p128
      // Predicated region
      $region25: #{tpu_custom_call.1} parent=5 // pred_check
        _
      $region26: #{tpu_custom_call.1} parent=5 // pred_check_branch
        %131 = sbr.rel (%p128) target = $region28
      $region27: #{tpu_custom_call.1} parent=5 // pred_region
        %s132 = ssub.s32 %s12, 1
        // Predicated region
        $region29: #{tpu_custom_call.1} parent=27 // pred_check
          %p133 = pneg %p59
        $region30: #{tpu_custom_call.1} parent=27 // pred_check_branch
          %135 = sbr.rel (%p133) target = $region32
        $region31: #{tpu_custom_call.1} parent=27 // pred_region
          %136 = dma.done [#allocation3], 3712
        $region32: #{tpu_custom_call.1} parent=27 // pred_fallthru
          _
        %s137 = smul.u32 8, %s17
        %p138 = scmp.lt.s32.totalorder %s137, 15
        %s139 = scalar_select %p138, %s137, 15
        %s140 = smul.addr %s139, 8
        %s141 = scalar_lea.vmem %s0, %s140
        %p142 = pneg %p38
        %p143 = pneg %p35
        %p144 = pneg %p59
        %p145 = pneg %p56
        %p146 = pneg %p85
        %p147 = pneg %p82
        %s148 = sand.u32 %s72, 1
        %s149 = scalar_lea.sflag [#allocation4], %s148
        %s150 = sand.u32 %s72, 1
        %s151 = smul.addr %s150, 8
        %s152 = scalar_lea.vmem [#allocation5], %s151
        %s153 = smul.u32 8, %s17
        %p154 = scmp.lt.s32.totalorder %s153, 15
        %s155 = scalar_select %p154, %s153, 15
        %s156 = smul.addr %s155, 8
        %s157 = scalar_lea.vmem %s0, %s156
        %s158 = smul.u32 8, %s17
        %v159 = vld [vmem:[%s157] sm:$0xff]
        %v160 = vld [vmem:[%s157 + $0x8] sm:$0xff]
        %v161 = vld [vmem:[%s157 + $0x10] sm:$0xff]
        %v162 = vld [vmem:[%s157 + $0x18] sm:$0xff]
        %v163 = vld [vmem:[%s157 + $0x20] sm:$0xff]
        %v164 = vld [vmem:[%s157 + $0x28] sm:$0xff]
        %v165 = vld [vmem:[%s157 + $0x30] sm:$0xff]
        %v166 = vld [vmem:[%s157 + $0x38] sm:$0xff]
        %vm167 = vcmask 261120
        %v168 = vsel %vm167, %v159, 0.0
        %169 = vadd.xlane.f32.xlu0 %v168
        %v170 = vpop.xlane.xlu0 %169
        %v171 = vsel %vm167, %v160, 0.0
        %172 = vadd.xlane.f32.xlu0 %v171
        %v173 = vpop.xlane.xlu0 %172
        %v174 = vsel %vm167, %v161, 0.0
        %175 = vadd.xlane.f32.xlu0 %v174
        %v176 = vpop.xlane.xlu0 %175
        %v177 = vsel %vm167, %v162, 0.0
        %178 = vadd.xlane.f32.xlu0 %v177
        %v179 = vpop.xlane.xlu0 %178
        %v180 = vsel %vm167, %v163, 0.0
        %181 = vadd.xlane.f32.xlu0 %v180
        %v182 = vpop.xlane.xlu0 %181
        %v183 = vsel %vm167, %v164, 0.0
        %184 = vadd.xlane.f32.xlu0 %v183
        %v185 = vpop.xlane.xlu0 %184
        %v186 = vsel %vm167, %v165, 0.0
        %187 = vadd.xlane.f32.xlu0 %v186
        %v188 = vpop.xlane.xlu0 %187
        %v189 = vsel %vm167, %v166, 0.0
        %190 = vadd.xlane.f32.xlu0 %v189
        %v191 = vpop.xlane.xlu0 %190
        %v192 = vrcp.pop 32.0
        %v193 = vmul.f32 %v170, %v192
        %v194 = vmul.f32 %v173, %v192
        %v195 = vmul.f32 %v176, %v192
        %v196 = vmul.f32 %v179, %v192
        %v197 = vmul.f32 %v182, %v192
        %v198 = vmul.f32 %v185, %v192
        %v199 = vmul.f32 %v188, %v192
        %v200 = vmul.f32 %v191, %v192
        %v201 = vsub.f32 %v159, %v193
        %v202 = vsub.f32 %v160, %v194
        %v203 = vsub.f32 %v161, %v195
        %v204 = vsub.f32 %v162, %v196
        %v205 = vsub.f32 %v163, %v197
        %v206 = vsub.f32 %v164, %v198
        %v207 = vsub.f32 %v165, %v199
        %v208 = vsub.f32 %v166, %v200
        %v209 = vmul.f32 %v201, %v201
        %v210 = vmul.f32 %v202, %v202
        %v211 = vmul.f32 %v203, %v203
        %v212 = vmul.f32 %v204, %v204
        %v213 = vmul.f32 %v205, %v205
        %v214 = vmul.f32 %v206, %v206
        %v215 = vmul.f32 %v207, %v207
        %v216 = vmul.f32 %v208, %v208
        %v217 = vsel %vm167, %v209, 0.0
        %218 = vadd.xlane.f32.xlu0 %v217
        %v219 = vpop.xlane.xlu0 %218
        %v220 = vsel %vm167, %v210, 0.0
        %221 = vadd.xlane.f32.xlu0 %v220
        %v222 = vpop.xlane.xlu0 %221
        %v223 = vsel %vm167, %v211, 0.0
        %224 = vadd.xlane.f32.xlu0 %v223
        %v225 = vpop.xlane.xlu0 %224
        %v226 = vsel %vm167, %v212, 0.0
        %227 = vadd.xlane.f32.xlu0 %v226
        %v228 = vpop.xlane.xlu0 %227
        %v229 = vsel %vm167, %v213, 0.0
        %230 = vadd.xlane.f32.xlu0 %v229
        %v231 = vpop.xlane.xlu0 %230
        %v232 = vsel %vm167, %v214, 0.0
        %233 = vadd.xlane.f32.xlu0 %v232
        %v234 = vpop.xlane.xlu0 %233
        %v235 = vsel %vm167, %v215, 0.0
        %236 = vadd.xlane.f32.xlu0 %v235
        %v237 = vpop.xlane.xlu0 %236
        %v238 = vsel %vm167, %v216, 0.0
        %239 = vadd.xlane.f32.xlu0 %v238
        %v240 = vpop.xlane.xlu0 %239
        %v241 = vmul.f32 %v219, %v192
        %v242 = vmul.f32 %v222, %v192
        %v243 = vmul.f32 %v225, %v192
        %v244 = vmul.f32 %v228, %v192
        %v245 = vmul.f32 %v231, %v192
        %v246 = vmul.f32 %v234, %v192
        %v247 = vmul.f32 %v237, %v192
        %v248 = vmul.f32 %v240, %v192
        %v249 = vadd.f32 %v241, 1e-05
        %v250 = vadd.f32 %v242, 1e-05
        %v251 = vadd.f32 %v243, 1e-05
        %v252 = vadd.f32 %v244, 1e-05
        %v253 = vadd.f32 %v245, 1e-05
        %v254 = vadd.f32 %v246, 1e-05
        %v255 = vadd.f32 %v247, 1e-05
        %v256 = vadd.f32 %v248, 1e-05
        %v257 = vrsqrt.pop %v249
        %v258 = vrsqrt.pop %v250
        %v259 = vrsqrt.pop %v251
        %v260 = vrsqrt.pop %v252
        %v261 = vrsqrt.pop %v253
        %v262 = vrsqrt.pop %v254
        %v263 = vrsqrt.pop %v255
        %v264 = vrsqrt.pop %v256
        %v265 = vmul.f32 %v201, %v257
        %v266 = vmul.f32 %v202, %v258
        %v267 = vmul.f32 %v203, %v259
        %v268 = vmul.f32 %v204, %v260
        %v269 = vmul.f32 %v205, %v261
        %v270 = vmul.f32 %v206, %v262
        %v271 = vmul.f32 %v207, %v263
        %v272 = vmul.f32 %v208, %v264
        %v273 = vld [vmem:[#allocation2] sm:$0x1]
        %v274 = vlaneseq
        %v275 = vshrl.u32 %v274, 7
        %v276 = vsub.s32 0, %v275
        %v277 = vrot.slane %v273, %v276
        %v278 = vmul.f32 %v265, %v277
        %v279 = vmul.f32 %v266, %v277
        %v280 = vmul.f32 %v267, %v277
        %v281 = vmul.f32 %v268, %v277
        %v282 = vmul.f32 %v269, %v277
        %v283 = vmul.f32 %v270, %v277
        %v284 = vmul.f32 %v271, %v277
        %v285 = vmul.f32 %v272, %v277
        %v286 = vld [vmem:[#allocation2 + $0x8] sm:$0xff]
        %v287 = vld [vmem:[#allocation2 + $0x10] sm:$0xff]
        %v288 = vld [vmem:[#allocation2 + $0x18] sm:$0xff]
        %v289 = vld [vmem:[#allocation2 + $0x20] sm:$0xff]
        %v290 = vld [vmem:[#allocation2 + $0x28] sm:$0xff]
        %v291 = vld [vmem:[#allocation2 + $0x30] sm:$0xff]
        %v292 = vld [vmem:[#allocation2 + $0x38] sm:$0xff]
        %v293 = vld [vmem:[#allocation2 + $0x40] sm:$0xff]
        %v294 = vadd.f32 %v278, %v286
        %v295 = vadd.f32 %v279, %v287
        %v296 = vadd.f32 %v280, %v288
        %v297 = vadd.f32 %v281, %v289
        %v298 = vadd.f32 %v282, %v290
        %v299 = vadd.f32 %v283, %v291
        %v300 = vadd.f32 %v284, %v292
        %v301 = vadd.f32 %v285, %v293
        %v302 = vld [vmem:[#allocation2 + $0x48] sm:$0xff]
        %v303 = vld [vmem:[#allocation2 + $0x50] sm:$0xff]
        %v304 = vld [vmem:[#allocation2 + $0x58] sm:$0xff]
        %v305 = vld [vmem:[#allocation2 + $0x60] sm:$0xff]
        %307 = vrot.lane.b32.xlu0 %v277, 64
        %v308 = vpop.permute.xlu0 %307
        %v311 = vsel %vm167, %v294, 0
        %v314 = vsel %vm167, %v295, 0
        %v317 = vsel %vm167, %v296, 0
        %v320 = vsel %vm167, %v297, 0
        %v323 = vsel %vm167, %v298, 0
        %v326 = vsel %vm167, %v299, 0
        %v329 = vsel %vm167, %v300, 0
        %v332 = vsel %vm167, %v301, 0
        %334 = vmatprep.subr.mxu0 0.0
        %335 = vmatpush1.msra.mxu0 %v302
        %336 = vmatprep.subr.mxu0 0.0
        %337 = vmatpush1.msra.mxu0 %v303
        %338 = vmatprep.subr.mxu0 0.0
        %339 = vmatpush1.msra.mxu0 %v304
        %340 = vmatprep.subr.mxu0 0.0
        %341 = vmatpush1.msra.mxu0 %v305
        %342 = vmatprep.subr.mxu0 0.0
        %343 = vmatpush1.msra.mxu0 0.0
        %344 = vmatprep.subr.mxu0 0.0
        %345 = vmatpush1.msra.mxu0 0.0
        %346 = vmatprep.subr.mxu0 0.0
        %347 = vmatpush1.msra.mxu0 0.0
        %348 = vmatprep.subr.mxu0 0.0
        %349 = vmatpush1.msra.mxu0 0.0
        %350 = vmatprep.subr.mxu0 0.0
        %351 = vmatpush1.msra.mxu0 0.0
        %352 = vmatprep.subr.mxu0 0.0
        %353 = vmatpush1.msra.mxu0 0.0
        %354 = vmatprep.subr.mxu0 0.0
        %355 = vmatpush1.msra.mxu0 0.0
        %356 = vmatprep.subr.mxu0 0.0
        %357 = vmatpush1.msra.mxu0 0.0
        %358 = vmatprep.subr.mxu0 0.0
        %359 = vmatpush1.msra.mxu0 0.0
        %360 = vmatprep.subr.mxu0 0.0
        %361 = vmatpush1.msra.mxu0 0.0
        %362 = vmatprep.subr.mxu0 0.0
        %363 = vmatpush1.msra.mxu0 0.0
        %364 = vmatprep.subr.mxu0 0.0
        %365 = vmatpush1.msra.mxu0 0.0
        %366 = vmatprep.subr.mxu0 0.0
        %367 = vmatpush1.msra.mxu0 0.0
        %368 = vmatprep.subr.mxu0 0.0
        %369 = vmatpush1.msra.mxu0 0.0
        %370 = vmatprep.subr.mxu0 0.0
        %371 = vmatpush1.msra.mxu0 0.0
        %372 = vmatprep.subr.mxu0 0.0
        %373 = vmatpush1.msra.mxu0 0.0
        %374 = vmatprep.subr.mxu0 0.0
        %375 = vmatpush1.msra.mxu0 0.0
        %376 = vmatprep.subr.mxu0 0.0
        %377 = vmatpush1.msra.mxu0 0.0
        %378 = vmatprep.subr.mxu0 0.0
        %379 = vmatpush1.msra.mxu0 0.0
        %380 = vmatprep.subr.mxu0 0.0
        %381 = vmatpush1.msra.mxu0 0.0
        %382 = vmatprep.subr.mxu0 0.0
        %383 = vmatpush1.msra.mxu0 0.0
        %384 = vmatprep.subr.mxu0 0.0
        %385 = vmatpush1.msra.mxu0 0.0
        %386 = vmatprep.subr.mxu0 0.0
        %387 = vmatpush1.msra.mxu0 0.0
        %388 = vmatprep.subr.mxu0 0.0
        %389 = vmatpush1.msra.mxu0 0.0
        %390 = vmatprep.subr.mxu0 0.0
        %391 = vmatpush1.msra.mxu0 0.0
        %392 = vmatprep.subr.mxu0 0.0
        %393 = vmatpush1.msra.mxu0 0.0
        %394 = vmatprep.subr.mxu0 0.0
        %395 = vmatpush1.msra.mxu0 0.0
        %396 = vmatprep.subr.mxu0 0.0
        %397 = vmatpush1.msra.mxu0 0.0
        %398 = vmatprep.mubr.f32.mxu0 0.0
        %399 = vmatmul.mubr.f32.gmra.mrb[0].mxu0 %v311
        %v400 = vpop.f32.mrb[0].mxu0
        %v401 = vadd.f32 %v308, %v400
        %v402 = vpop.f32.mrb[0].mxu0
        %403 = vmatprep.mubr.f32.mxu0 0.0
        %404 = vmatmul.mubr.f32.gmra.mrb[0].mxu0 %v314
        %v405 = vpop.f32.mrb[0].mxu0
        %v406 = vadd.f32 %v308, %v405
        %v407 = vpop.f32.mrb[0].mxu0
        %408 = vmatprep.mubr.f32.mxu0 0.0
        %409 = vmatmul.mubr.f32.gmra.mrb[0].mxu0 %v317
        %v410 = vpop.f32.mrb[0].mxu0
        %v411 = vadd.f32 %v308, %v410
        %v412 = vpop.f32.mrb[0].mxu0
        %413 = vmatprep.mubr.f32.mxu0 0.0
        %414 = vmatmul.mubr.f32.gmra.mrb[0].mxu0 %v320
        %v415 = vpop.f32.mrb[0].mxu0
        %v416 = vadd.f32 %v308, %v415
        %v417 = vpop.f32.mrb[0].mxu0
        %418 = vmatprep.mubr.f32.mxu0 0.0
        %419 = vmatmul.mubr.f32.gmra.mrb[0].mxu0 %v323
        %v420 = vpop.f32.mrb[0].mxu0
        %v421 = vadd.f32 %v308, %v420
        %v422 = vpop.f32.mrb[0].mxu0
        %423 = vmatprep.mubr.f32.mxu0 0.0
        %424 = vmatmul.mubr.f32.gmra.mrb[0].mxu0 %v326
        %v425 = vpop.f32.mrb[0].mxu0
        %v426 = vadd.f32 %v308, %v425
        %v427 = vpop.f32.mrb[0].mxu0
        %428 = vmatprep.mubr.f32.mxu0 0.0
        %429 = vmatmul.mubr.f32.gmra.mrb[0].mxu0 %v329
        %v430 = vpop.f32.mrb[0].mxu0
        %v431 = vadd.f32 %v308, %v430
        %v432 = vpop.f32.mrb[0].mxu0
        %433 = vmatprep.mubr.f32.mxu0 0.0
        %434 = vmatmul.mubr.f32.gmra.mrb[0].mxu0 %v332
        %v435 = vpop.f32.mrb[0].mxu0
        %v436 = vadd.f32 %v308, %v435
        %v437 = vpop.f32.mrb[0].mxu0
        %438 = vdwg.mxu0
        %v439 = vlaneseq
        %v440 = vand.u32 %v439, 127
        %v441 = vand.u32 %v440, 31
        %442 = vrot.lane.b32.xlu0 %v295, 32
        %v443 = vpop.permute.xlu0 %442
        %445 = vrot.lane.b32.xlu0 %v296, 64
        %v446 = vpop.permute.xlu0 %445
        %448 = vrot.lane.b32.xlu0 %v297, 96
        %v449 = vpop.permute.xlu0 %448
        %v451 = vsel %vm167, %v294, %v443
        %vm452 = vcmask 523264
        %v453 = vsel %vm452, %v451, %v446
        %vm454 = vcmask 785408
        %v455 = vsel %vm454, %v453, %v449
        %v456 = vld [vmem:[#allocation2 + $0x70] sm:$0xff]
        %v457 = vld [vmem:[#allocation2 + $0x78] sm:$0xff]
        %v458 = vld [vmem:[#allocation2 + $0x80] sm:$0xff]
        %v459 = vld [vmem:[#allocation2 + $0x88] sm:$0xff]
        %vm460 = vcmp.ge.s32.totalorder %v441, 3
        %461 = vrot.lane.b32.xlu0 %v455, 3
        %v462 = vpop.permute.xlu0 %461
        %v463 = vsel %vm460, 1, 0
        %vm464 = vcmp.eq.s32.totalorder %v463, 1
        %v465 = vsel %vm464, %v462, 0.0
        %vm466 = vcmp.ge.s32.totalorder %v441, 2
        %467 = vrot.lane.b32.xlu0 %v455, 2
        %v468 = vpop.permute.xlu0 %467
        %v469 = vsel %vm466, 1, 0
        %vm470 = vcmp.eq.s32.totalorder %v469, 1
        %v471 = vsel %vm470, %v468, 0.0
        %vm472 = vcmp.ge.s32.totalorder %v441, 1
        %473 = vrot.lane.b32.xlu0 %v455, 1
        %v474 = vpop.permute.xlu0 %473
        %v475 = vsel %vm472, 1, 0
        %vm476 = vcmp.eq.s32.totalorder %v475, 1
        %v477 = vsel %vm476, %v474, 0.0
        %479 = vset.pattern.permute.xlu0 32
        %480 = vperm.xlu0 %479, %v456
        %v481 = vpop.permute.xlu0 %480
        %484 = vset.pattern.permute.xlu0 32
        %485 = vperm.xlu0 %484, %v457
        %v486 = vpop.permute.xlu0 %485
        %489 = vset.pattern.permute.xlu0 32
        %490 = vperm.xlu0 %489, %v458
        %v491 = vpop.permute.xlu0 %490
        %494 = vset.pattern.permute.xlu0 32
        %495 = vperm.xlu0 %494, %v459
        %v496 = vpop.permute.xlu0 %495
        %v498 = vsel %vm167, %v456, 0
        %v500 = vsel %vm167, %v457, 0
        %v502 = vsel %vm167, %v458, 0
        %v504 = vsel %vm167, %v459, 0
        %506 = vmatprep.subr.mxu0 0.0
        %507 = vmatpush1.msra.mxu0 %v465
        %508 = vmatprep.subr.mxu0 0.0
        %509 = vmatpush1.msra.mxu0 %v471
        %510 = vmatprep.subr.mxu0 0.0
        %511 = vmatpush1.msra.mxu0 %v477
        %512 = vmatprep.subr.mxu0 0.0
        %513 = vmatpush1.msra.mxu0 %v455
        %514 = vmatprep.subr.mxu0 0.0
        %515 = vmatpush1.msra.mxu0 0.0
        %516 = vmatprep.subr.mxu0 0.0
        %517 = vmatpush1.msra.mxu0 0.0
        %518 = vmatprep.subr.mxu0 0.0
        %519 = vmatpush1.msra.mxu0 0.0
        %520 = vmatprep.subr.mxu0 0.0
        %521 = vmatpush1.msra.mxu0 0.0
        %522 = vmatprep.subr.mxu0 0.0
        %523 = vmatpush1.msra.mxu0 0.0
        %524 = vmatprep.subr.mxu0 0.0
        %525 = vmatpush1.msra.mxu0 0.0
        %526 = vmatprep.subr.mxu0 0.0
        %527 = vmatpush1.msra.mxu0 0.0
        %528 = vmatprep.subr.mxu0 0.0
        %529 = vmatpush1.msra.mxu0 0.0
        %530 = vmatprep.subr.mxu0 0.0
        %531 = vmatpush1.msra.mxu0 0.0
        %532 = vmatprep.subr.mxu0 0.0
        %533 = vmatpush1.msra.mxu0 0.0
        %534 = vmatprep.subr.mxu0 0.0
        %535 = vmatpush1.msra.mxu0 0.0
        %536 = vmatprep.subr.mxu0 0.0
        %537 = vmatpush1.msra.mxu0 0.0
        %538 = vmatprep.subr.mxu0 0.0
        %539 = vmatpush1.msra.mxu0 0.0
        %540 = vmatprep.subr.mxu0 0.0
        %541 = vmatpush1.msra.mxu0 0.0
        %542 = vmatprep.subr.mxu0 0.0
        %543 = vmatpush1.msra.mxu0 0.0
        %544 = vmatprep.subr.mxu0 0.0
        %545 = vmatpush1.msra.mxu0 0.0
        %546 = vmatprep.subr.mxu0 0.0
        %547 = vmatpush1.msra.mxu0 0.0
        %548 = vmatprep.subr.mxu0 0.0
        %549 = vmatpush1.msra.mxu0 0.0
        %550 = vmatprep.subr.mxu0 0.0
        %551 = vmatpush1.msra.mxu0 0.0
        %552 = vmatprep.subr.mxu0 0.0
        %553 = vmatpush1.msra.mxu0 0.0
        %554 = vmatprep.subr.mxu0 0.0
        %555 = vmatpush1.msra.mxu0 0.0
        %556 = vmatprep.subr.mxu0 0.0
        %557 = vmatpush1.msra.mxu0 0.0
        %558 = vmatprep.subr.mxu0 0.0
        %559 = vmatpush1.msra.mxu0 0.0
        %560 = vmatprep.subr.mxu0 0.0
        %561 = vmatpush1.msra.mxu0 0.0
        %562 = vmatprep.subr.mxu0 0.0
        %563 = vmatpush1.msra.mxu0 0.0
        %564 = vmatprep.subr.mxu0 0.0
        %565 = vmatpush1.msra.mxu0 0.0
        %566 = vmatprep.subr.mxu0 0.0
        %567 = vmatpush1.msra.mxu0 0.0
        %568 = vmatprep.subr.mxu0 0.0
        %569 = vmatpush1.msra.mxu0 0.0
        %570 = vmatprep.mubr.f32.mxu0 0.0
        %571 = vmatmul.mubr.f32.gmra.mrb[0].mxu0 %v498
        %v572 = vpop.f32.mrb[0].mxu0
        %v573 = vadd.f32 %v481, %v572
        %v574 = vpop.f32.mrb[0].mxu0
        %575 = vmatprep.mubr.f32.mxu0 0.0
        %576 = vmatmul.mubr.f32.gmra.mrb[0].mxu0 %v500
        %v577 = vpop.f32.mrb[0].mxu0
        %v578 = vadd.f32 %v486, %v577
        %v579 = vpop.f32.mrb[0].mxu0
        %580 = vmatprep.mubr.f32.mxu0 0.0
        %581 = vmatmul.mubr.f32.gmra.mrb[0].mxu0 %v502
        %v582 = vpop.f32.mrb[0].mxu0
        %v583 = vadd.f32 %v491, %v582
        %v584 = vpop.f32.mrb[0].mxu0
        %585 = vmatprep.mubr.f32.mxu0 0.0
        %586 = vmatmul.mubr.f32.gmra.mrb[0].mxu0 %v504
        %v587 = vpop.f32.mrb[0].mxu0
        %v588 = vadd.f32 %v496, %v587
        %v589 = vpop.f32.mrb[0].mxu0
        %590 = vdwg.mxu0
        %v591 = vmax.f32 %v573, 0.0
        %v592 = vmax.f32 %v578, 0.0
        %v593 = vld [vmem:[#allocation2 + $0x90] sm:$0xff]
        %v594 = vld [vmem:[#allocation2 + $0x98] sm:$0xff]
        %595 = vrot.lane.b32.xlu0 %v591, 3
        %v596 = vpop.permute.xlu0 %595
        %597 = vrot.lane.b32.xlu0 %v592, 3
        %v598 = vpop.permute.xlu0 %597
        %v599 = vsel %vm464, %v596, 0.0
        %v600 = vsel %vm464, %v598, 0.0
        %601 = vrot.lane.b32.xlu0 %v591, 2
        %v602 = vpop.permute.xlu0 %601
        %603 = vrot.lane.b32.xlu0 %v592, 2
        %v604 = vpop.permute.xlu0 %603
        %v605 = vsel %vm470, %v602, 0.0
        %v606 = vsel %vm470, %v604, 0.0
        %607 = vrot.lane.b32.xlu0 %v591, 1
        %v608 = vpop.permute.xlu0 %607
        %609 = vrot.lane.b32.xlu0 %v592, 1
        %v610 = vpop.permute.xlu0 %609
        %v611 = vsel %vm476, %v608, 0.0
        %v612 = vsel %vm476, %v610, 0.0
        %614 = vset.pattern.permute.xlu0 64
        %615 = vperm.xlu0 %614, %v593
        %v616 = vpop.permute.xlu0 %615
        %619 = vset.pattern.permute.xlu0 64
        %620 = vperm.xlu0 %619, %v594
        %v621 = vpop.permute.xlu0 %620
        %v623 = vsel %vm452, %v593, 0
        %v625 = vsel %vm452, %v594, 0
        %627 = vmatprep.subr.mxu0 0.0
        %628 = vmatpush1.msra.mxu0 %v599
        %629 = vmatprep.subr.mxu0 0.0
        %630 = vmatpush1.msra.mxu0 %v600
        %631 = vmatprep.subr.mxu0 0.0
        %632 = vmatpush1.msra.mxu0 %v605
        %633 = vmatprep.subr.mxu0 0.0
        %634 = vmatpush1.msra.mxu0 %v606
        %635 = vmatprep.subr.mxu0 0.0
        %636 = vmatpush1.msra.mxu0 %v611
        %637 = vmatprep.subr.mxu0 0.0
        %638 = vmatpush1.msra.mxu0 %v612
        %639 = vmatprep.subr.mxu0 0.0
        %640 = vmatpush1.msra.mxu0 %v591
        %641 = vmatprep.subr.mxu0 0.0
        %642 = vmatpush1.msra.mxu0 %v592
        %643 = vmatprep.subr.mxu0 0.0
        %644 = vmatpush1.msra.mxu0 0.0
        %645 = vmatprep.subr.mxu0 0.0
        %646 = vmatpush1.msra.mxu0 0.0
        %647 = vmatprep.subr.mxu0 0.0
        %648 = vmatpush1.msra.mxu0 0.0
        %649 = vmatprep.subr.mxu0 0.0
        %650 = vmatpush1.msra.mxu0 0.0
        %651 = vmatprep.subr.mxu0 0.0
        %652 = vmatpush1.msra.mxu0 0.0
        %653 = vmatprep.subr.mxu0 0.0
        %654 = vmatpush1.msra.mxu0 0.0
        %655 = vmatprep.subr.mxu0 0.0
        %656 = vmatpush1.msra.mxu0 0.0
        %657 = vmatprep.subr.mxu0 0.0
        %658 = vmatpush1.msra.mxu0 0.0
        %659 = vmatprep.subr.mxu0 0.0
        %660 = vmatpush1.msra.mxu0 0.0
        %661 = vmatprep.subr.mxu0 0.0
        %662 = vmatpush1.msra.mxu0 0.0
        %663 = vmatprep.subr.mxu0 0.0
        %664 = vmatpush1.msra.mxu0 0.0
        %665 = vmatprep.subr.mxu0 0.0
        %666 = vmatpush1.msra.mxu0 0.0
        %667 = vmatprep.subr.mxu0 0.0
        %668 = vmatpush1.msra.mxu0 0.0
        %669 = vmatprep.subr.mxu0 0.0
        %670 = vmatpush1.msra.mxu0 0.0
        %671 = vmatprep.subr.mxu0 0.0
        %672 = vmatpush1.msra.mxu0 0.0
        %673 = vmatprep.subr.mxu0 0.0
        %674 = vmatpush1.msra.mxu0 0.0
        %675 = vmatprep.subr.mxu0 0.0
        %676 = vmatpush1.msra.mxu0 0.0
        %677 = vmatprep.subr.mxu0 0.0
        %678 = vmatpush1.msra.mxu0 0.0
        %679 = vmatprep.subr.mxu0 0.0
        %680 = vmatpush1.msra.mxu0 0.0
        %681 = vmatprep.subr.mxu0 0.0
        %682 = vmatpush1.msra.mxu0 0.0
        %683 = vmatprep.subr.mxu0 0.0
        %684 = vmatpush1.msra.mxu0 0.0
        %685 = vmatprep.subr.mxu0 0.0
        %686 = vmatpush1.msra.mxu0 0.0
        %687 = vmatprep.subr.mxu0 0.0
        %688 = vmatpush1.msra.mxu0 0.0
        %689 = vmatprep.subr.mxu0 0.0
        %690 = vmatpush1.msra.mxu0 0.0
        %691 = vmatprep.mubr.f32.mxu0 0.0
        %692 = vmatmul.mubr.f32.gmra.mrb[0].mxu0 %v623
        %v693 = vpop.f32.mrb[0].mxu0
        %v694 = vadd.f32 %v616, %v693
        %v695 = vpop.f32.mrb[0].mxu0
        %696 = vmatprep.mubr.f32.mxu0 0.0
        %697 = vmatmul.mubr.f32.gmra.mrb[0].mxu0 %v625
        %v698 = vpop.f32.mrb[0].mxu0
        %v699 = vadd.f32 %v621, %v698
        %v700 = vpop.f32.mrb[0].mxu0
        %701 = vdwg.mxu0
        %v702 = vmax.f32 %v694, 0.0
        %v703 = vmax.f32 %v699, 0.0
        %v704 = vadd.f32 %v702, %v583
        %v705 = vadd.f32 %v703, %v588
        %v706 = vmax.f32 %v704, 0.0
        %v707 = vmax.f32 %v705, 0.0
        %v708 = vld [vmem:[#allocation2 + $0xa0] sm:$0xff]
        %v709 = vld [vmem:[#allocation2 + $0xa8] sm:$0xff]
        %vm710 = vcmp.ge.s32.totalorder %v441, 6
        %711 = vrot.lane.b32.xlu0 %v706, 6
        %v712 = vpop.permute.xlu0 %711
        %713 = vrot.lane.b32.xlu0 %v707, 6
        %v714 = vpop.permute.xlu0 %713
        %v715 = vsel %vm710, 1, 0
        %vm716 = vcmp.eq.s32.totalorder %v715, 1
        %v717 = vsel %vm716, %v712, 0.0
        %v718 = vsel %vm716, %v714, 0.0
        %vm719 = vcmp.ge.s32.totalorder %v441, 4
        %720 = vrot.lane.b32.xlu0 %v706, 4
        %v721 = vpop.permute.xlu0 %720
        %722 = vrot.lane.b32.xlu0 %v707, 4
        %v723 = vpop.permute.xlu0 %722
        %v724 = vsel %vm719, 1, 0
        %vm725 = vcmp.eq.s32.totalorder %v724, 1
        %v726 = vsel %vm725, %v721, 0.0
        %v727 = vsel %vm725, %v723, 0.0
        %728 = vrot.lane.b32.xlu0 %v706, 2
        %v729 = vpop.permute.xlu0 %728
        %730 = vrot.lane.b32.xlu0 %v707, 2
        %v731 = vpop.permute.xlu0 %730
        %v732 = vsel %vm470, %v729, 0.0
        %v733 = vsel %vm470, %v731, 0.0
        %735 = vset.pattern.permute.xlu0 64
        %736 = vperm.xlu0 %735, %v708
        %v737 = vpop.permute.xlu0 %736
        %740 = vset.pattern.permute.xlu0 64
        %741 = vperm.xlu0 %740, %v709
        %v742 = vpop.permute.xlu0 %741
        %v744 = vsel %vm452, %v708, 0
        %v746 = vsel %vm452, %v709, 0
        %748 = vmatprep.subr.mxu0 0.0
        %749 = vmatpush1.msra.mxu0 %v717
        %750 = vmatprep.subr.mxu0 0.0
        %751 = vmatpush1.msra.mxu0 %v718
        %752 = vmatprep.subr.mxu0 0.0
        %753 = vmatpush1.msra.mxu0 %v726
        %754 = vmatprep.subr.mxu0 0.0
        %755 = vmatpush1.msra.mxu0 %v727
        %756 = vmatprep.subr.mxu0 0.0
        %757 = vmatpush1.msra.mxu0 %v732
        %758 = vmatprep.subr.mxu0 0.0
        %759 = vmatpush1.msra.mxu0 %v733
        %760 = vmatprep.subr.mxu0 0.0
        %761 = vmatpush1.msra.mxu0 %v706
        %762 = vmatprep.subr.mxu0 0.0
        %763 = vmatpush1.msra.mxu0 %v707
        %764 = vmatprep.subr.mxu0 0.0
        %765 = vmatpush1.msra.mxu0 0.0
        %766 = vmatprep.subr.mxu0 0.0
        %767 = vmatpush1.msra.mxu0 0.0
        %768 = vmatprep.subr.mxu0 0.0
        %769 = vmatpush1.msra.mxu0 0.0
        %770 = vmatprep.subr.mxu0 0.0
        %771 = vmatpush1.msra.mxu0 0.0
        %772 = vmatprep.subr.mxu0 0.0
        %773 = vmatpush1.msra.mxu0 0.0
        %774 = vmatprep.subr.mxu0 0.0
        %775 = vmatpush1.msra.mxu0 0.0
        %776 = vmatprep.subr.mxu0 0.0
        %777 = vmatpush1.msra.mxu0 0.0
        %778 = vmatprep.subr.mxu0 0.0
        %779 = vmatpush1.msra.mxu0 0.0
        %780 = vmatprep.subr.mxu0 0.0
        %781 = vmatpush1.msra.mxu0 0.0
        %782 = vmatprep.subr.mxu0 0.0
        %783 = vmatpush1.msra.mxu0 0.0
        %784 = vmatprep.subr.mxu0 0.0
        %785 = vmatpush1.msra.mxu0 0.0
        %786 = vmatprep.subr.mxu0 0.0
        %787 = vmatpush1.msra.mxu0 0.0
        %788 = vmatprep.subr.mxu0 0.0
        %789 = vmatpush1.msra.mxu0 0.0
        %790 = vmatprep.subr.mxu0 0.0
        %791 = vmatpush1.msra.mxu0 0.0
        %792 = vmatprep.subr.mxu0 0.0
        %793 = vmatpush1.msra.mxu0 0.0
        %794 = vmatprep.subr.mxu0 0.0
        %795 = vmatpush1.msra.mxu0 0.0
        %796 = vmatprep.subr.mxu0 0.0
        %797 = vmatpush1.msra.mxu0 0.0
        %798 = vmatprep.subr.mxu0 0.0
        %799 = vmatpush1.msra.mxu0 0.0
        %800 = vmatprep.subr.mxu0 0.0
        %801 = vmatpush1.msra.mxu0 0.0
        %802 = vmatprep.subr.mxu0 0.0
        %803 = vmatpush1.msra.mxu0 0.0
        %804 = vmatprep.subr.mxu0 0.0
        %805 = vmatpush1.msra.mxu0 0.0
        %806 = vmatprep.subr.mxu0 0.0
        %807 = vmatpush1.msra.mxu0 0.0
        %808 = vmatprep.subr.mxu0 0.0
        %809 = vmatpush1.msra.mxu0 0.0
        %810 = vmatprep.subr.mxu0 0.0
        %811 = vmatpush1.msra.mxu0 0.0
        %812 = vmatprep.mubr.f32.mxu0 0.0
        %813 = vmatmul.mubr.f32.gmra.mrb[0].mxu0 %v744
        %v814 = vpop.f32.mrb[0].mxu0
        %v815 = vadd.f32 %v737, %v814
        %v816 = vpop.f32.mrb[0].mxu0
        %817 = vmatprep.mubr.f32.mxu0 0.0
        %818 = vmatmul.mubr.f32.gmra.mrb[0].mxu0 %v746
        %v819 = vpop.f32.mrb[0].mxu0
        %v820 = vadd.f32 %v742, %v819
        %v821 = vpop.f32.mrb[0].mxu0
        %822 = vdwg.mxu0
        %v823 = vmax.f32 %v815, 0.0
        %v824 = vld [vmem:[#allocation2 + $0xb0] sm:$0xff]
        %825 = vrot.lane.b32.xlu0 %v823, 6
        %v826 = vpop.permute.xlu0 %825
        %v827 = vsel %vm716, %v826, 0.0
        %828 = vrot.lane.b32.xlu0 %v823, 4
        %v829 = vpop.permute.xlu0 %828
        %v830 = vsel %vm725, %v829, 0.0
        %831 = vrot.lane.b32.xlu0 %v823, 2
        %v832 = vpop.permute.xlu0 %831
        %v833 = vsel %vm470, %v832, 0.0
        %835 = vset.pattern.permute.xlu0 32
        %836 = vperm.xlu0 %835, %v824
        %v837 = vpop.permute.xlu0 %836
        %v839 = vsel %vm167, %v824, 0
        %841 = vmatprep.subr.mxu0 0.0
        %842 = vmatpush1.msra.mxu0 %v827
        %843 = vmatprep.subr.mxu0 0.0
        %844 = vmatpush1.msra.mxu0 %v830
        %845 = vmatprep.subr.mxu0 0.0
        %846 = vmatpush1.msra.mxu0 %v833
        %847 = vmatprep.subr.mxu0 0.0
        %848 = vmatpush1.msra.mxu0 %v823
        %849 = vmatprep.subr.mxu0 0.0
        %850 = vmatpush1.msra.mxu0 0.0
        %851 = vmatprep.subr.mxu0 0.0
        %852 = vmatpush1.msra.mxu0 0.0
        %853 = vmatprep.subr.mxu0 0.0
        %854 = vmatpush1.msra.mxu0 0.0
        %855 = vmatprep.subr.mxu0 0.0
        %856 = vmatpush1.msra.mxu0 0.0
        %857 = vmatprep.subr.mxu0 0.0
        %858 = vmatpush1.msra.mxu0 0.0
        %859 = vmatprep.subr.mxu0 0.0
        %860 = vmatpush1.msra.mxu0 0.0
        %861 = vmatprep.subr.mxu0 0.0
        %862 = vmatpush1.msra.mxu0 0.0
        %863 = vmatprep.subr.mxu0 0.0
        %864 = vmatpush1.msra.mxu0 0.0
        %865 = vmatprep.subr.mxu0 0.0
        %866 = vmatpush1.msra.mxu0 0.0
        %867 = vmatprep.subr.mxu0 0.0
        %868 = vmatpush1.msra.mxu0 0.0
        %869 = vmatprep.subr.mxu0 0.0
        %870 = vmatpush1.msra.mxu0 0.0
        %871 = vmatprep.subr.mxu0 0.0
        %872 = vmatpush1.msra.mxu0 0.0
        %873 = vmatprep.subr.mxu0 0.0
        %874 = vmatpush1.msra.mxu0 0.0
        %875 = vmatprep.subr.mxu0 0.0
        %876 = vmatpush1.msra.mxu0 0.0
        %877 = vmatprep.subr.mxu0 0.0
        %878 = vmatpush1.msra.mxu0 0.0
        %879 = vmatprep.subr.mxu0 0.0
        %880 = vmatpush1.msra.mxu0 0.0
        %881 = vmatprep.subr.mxu0 0.0
        %882 = vmatpush1.msra.mxu0 0.0
        %883 = vmatprep.subr.mxu0 0.0
        %884 = vmatpush1.msra.mxu0 0.0
        %885 = vmatprep.subr.mxu0 0.0
        %886 = vmatpush1.msra.mxu0 0.0
        %887 = vmatprep.subr.mxu0 0.0
        %888 = vmatpush1.msra.mxu0 0.0
        %889 = vmatprep.subr.mxu0 0.0
        %890 = vmatpush1.msra.mxu0 0.0
        %891 = vmatprep.subr.mxu0 0.0
        %892 = vmatpush1.msra.mxu0 0.0
        %893 = vmatprep.subr.mxu0 0.0
        %894 = vmatpush1.msra.mxu0 0.0
        %895 = vmatprep.subr.mxu0 0.0
        %896 = vmatpush1.msra.mxu0 0.0
        %897 = vmatprep.subr.mxu0 0.0
        %898 = vmatpush1.msra.mxu0 0.0
        %899 = vmatprep.subr.mxu0 0.0
        %900 = vmatpush1.msra.mxu0 0.0
        %901 = vmatprep.subr.mxu0 0.0
        %902 = vmatpush1.msra.mxu0 0.0
        %903 = vmatprep.subr.mxu0 0.0
        %904 = vmatpush1.msra.mxu0 0.0
        %905 = vmatprep.mubr.f32.mxu0 0.0
        %906 = vmatmul.mubr.f32.gmra.mrb[0].mxu0 %v839
        %v907 = vpop.f32.mrb[0].mxu0
        %v908 = vadd.f32 %v837, %v907
        %v909 = vpop.f32.mrb[0].mxu0
        %910 = vdwg.mxu0
        %v911 = vmax.f32 %v908, 0.0
        %v912 = vadd.f32 %v911, %v820
        %v913 = vmax.f32 %v912, 0.0
        %v914 = vld [vmem:[#allocation2 + $0xb8] sm:$0xff]
        %v915 = vld [vmem:[#allocation2 + $0xc0] sm:$0xff]
        %vm916 = vcmp.ge.s32.totalorder %v441, 12
        %917 = vrot.lane.b32.xlu0 %v913, 12
        %v918 = vpop.permute.xlu0 %917
        %v919 = vsel %vm916, 1, 0
        %vm920 = vcmp.eq.s32.totalorder %v919, 1
        %v921 = vsel %vm920, %v918, 0.0
        %vm922 = vcmp.ge.s32.totalorder %v441, 8
        %923 = vrot.lane.b32.xlu0 %v913, 8
        %v924 = vpop.permute.xlu0 %923
        %v925 = vsel %vm922, 1, 0
        %vm926 = vcmp.eq.s32.totalorder %v925, 1
        %v927 = vsel %vm926, %v924, 0.0
        %928 = vrot.lane.b32.xlu0 %v913, 4
        %v929 = vpop.permute.xlu0 %928
        %v930 = vsel %vm725, %v929, 0.0
        %932 = vset.pattern.permute.xlu0 32
        %933 = vperm.xlu0 %932, %v914
        %v934 = vpop.permute.xlu0 %933
        %937 = vset.pattern.permute.xlu0 32
        %938 = vperm.xlu0 %937, %v915
        %v939 = vpop.permute.xlu0 %938
        %v941 = vsel %vm167, %v914, 0
        %v943 = vsel %vm167, %v915, 0
        %945 = vmatprep.subr.mxu0 0.0
        %946 = vmatpush1.msra.mxu0 %v921
        %947 = vmatprep.subr.mxu0 0.0
        %948 = vmatpush1.msra.mxu0 %v927
        %949 = vmatprep.subr.mxu0 0.0
        %950 = vmatpush1.msra.mxu0 %v930
        %951 = vmatprep.subr.mxu0 0.0
        %952 = vmatpush1.msra.mxu0 %v913
        %953 = vmatprep.subr.mxu0 0.0
        %954 = vmatpush1.msra.mxu0 0.0
        %955 = vmatprep.subr.mxu0 0.0
        %956 = vmatpush1.msra.mxu0 0.0
        %957 = vmatprep.subr.mxu0 0.0
        %958 = vmatpush1.msra.mxu0 0.0
        %959 = vmatprep.subr.mxu0 0.0
        %960 = vmatpush1.msra.mxu0 0.0
        %961 = vmatprep.subr.mxu0 0.0
        %962 = vmatpush1.msra.mxu0 0.0
        %963 = vmatprep.subr.mxu0 0.0
        %964 = vmatpush1.msra.mxu0 0.0
        %965 = vmatprep.subr.mxu0 0.0
        %966 = vmatpush1.msra.mxu0 0.0
        %967 = vmatprep.subr.mxu0 0.0
        %968 = vmatpush1.msra.mxu0 0.0
        %969 = vmatprep.subr.mxu0 0.0
        %970 = vmatpush1.msra.mxu0 0.0
        %971 = vmatprep.subr.mxu0 0.0
        %972 = vmatpush1.msra.mxu0 0.0
        %973 = vmatprep.subr.mxu0 0.0
        %974 = vmatpush1.msra.mxu0 0.0
        %975 = vmatprep.subr.mxu0 0.0
        %976 = vmatpush1.msra.mxu0 0.0
        %977 = vmatprep.subr.mxu0 0.0
        %978 = vmatpush1.msra.mxu0 0.0
        %979 = vmatprep.subr.mxu0 0.0
        %980 = vmatpush1.msra.mxu0 0.0
        %981 = vmatprep.subr.mxu0 0.0
        %982 = vmatpush1.msra.mxu0 0.0
        %983 = vmatprep.subr.mxu0 0.0
        %984 = vmatpush1.msra.mxu0 0.0
        %985 = vmatprep.subr.mxu0 0.0
        %986 = vmatpush1.msra.mxu0 0.0
        %987 = vmatprep.subr.mxu0 0.0
        %988 = vmatpush1.msra.mxu0 0.0
        %989 = vmatprep.subr.mxu0 0.0
        %990 = vmatpush1.msra.mxu0 0.0
        %991 = vmatprep.subr.mxu0 0.0
        %992 = vmatpush1.msra.mxu0 0.0
        %993 = vmatprep.subr.mxu0 0.0
        %994 = vmatpush1.msra.mxu0 0.0
        %995 = vmatprep.subr.mxu0 0.0
        %996 = vmatpush1.msra.mxu0 0.0
        %997 = vmatprep.subr.mxu0 0.0
        %998 = vmatpush1.msra.mxu0 0.0
        %999 = vmatprep.subr.mxu0 0.0
        %1000 = vmatpush1.msra.mxu0 0.0
        %1001 = vmatprep.subr.mxu0 0.0
        %1002 = vmatpush1.msra.mxu0 0.0
        %1003 = vmatprep.subr.mxu0 0.0
        %1004 = vmatpush1.msra.mxu0 0.0
        %1005 = vmatprep.subr.mxu0 0.0
        %1006 = vmatpush1.msra.mxu0 0.0
        %1007 = vmatprep.subr.mxu0 0.0
        %1008 = vmatpush1.msra.mxu0 0.0
        %1009 = vmatprep.mubr.f32.mxu0 0.0
        %1010 = vmatmul.mubr.f32.gmra.mrb[0].mxu0 %v941
        %v1011 = vpop.f32.mrb[0].mxu0
        %v1012 = vadd.f32 %v934, %v1011
        %v1013 = vpop.f32.mrb[0].mxu0
        %1014 = vmatprep.mubr.f32.mxu0 0.0
        %1015 = vmatmul.mubr.f32.gmra.mrb[0].mxu0 %v943
        %v1016 = vpop.f32.mrb[0].mxu0
        %v1017 = vadd.f32 %v939, %v1016
        %v1018 = vpop.f32.mrb[0].mxu0
        %1019 = vdwg.mxu0
        %v1020 = vmax.f32 %v1012, 0.0
        %v1021 = vld [vmem:[#allocation2 + $0xc8] sm:$0xff]
        %1022 = vrot.lane.b32.xlu0 %v1020, 12
        %v1023 = vpop.permute.xlu0 %1022
        %v1024 = vsel %vm920, %v1023, 0.0
        %1025 = vrot.lane.b32.xlu0 %v1020, 8
        %v1026 = vpop.permute.xlu0 %1025
        %v1027 = vsel %vm926, %v1026, 0.0
        %1028 = vrot.lane.b32.xlu0 %v1020, 4
        %v1029 = vpop.permute.xlu0 %1028
        %v1030 = vsel %vm725, %v1029, 0.0
        %1032 = vset.pattern.permute.xlu0 32
        %1033 = vperm.xlu0 %1032, %v1021
        %v1034 = vpop.permute.xlu0 %1033
        %v1036 = vsel %vm167, %v1021, 0
        %1038 = vmatprep.subr.mxu0 0.0
        %1039 = vmatpush1.msra.mxu0 %v1024
        %1040 = vmatprep.subr.mxu0 0.0
        %1041 = vmatpush1.msra.mxu0 %v1027
        %1042 = vmatprep.subr.mxu0 0.0
        %1043 = vmatpush1.msra.mxu0 %v1030
        %1044 = vmatprep.subr.mxu0 0.0
        %1045 = vmatpush1.msra.mxu0 %v1020
        %1046 = vmatprep.subr.mxu0 0.0
        %1047 = vmatpush1.msra.mxu0 0.0
        %1048 = vmatprep.subr.mxu0 0.0
        %1049 = vmatpush1.msra.mxu0 0.0
        %1050 = vmatprep.subr.mxu0 0.0
        %1051 = vmatpush1.msra.mxu0 0.0
        %1052 = vmatprep.subr.mxu0 0.0
        %1053 = vmatpush1.msra.mxu0 0.0
        %1054 = vmatprep.subr.mxu0 0.0
        %1055 = vmatpush1.msra.mxu0 0.0
        %1056 = vmatprep.subr.mxu0 0.0
        %1057 = vmatpush1.msra.mxu0 0.0
        %1058 = vmatprep.subr.mxu0 0.0
        %1059 = vmatpush1.msra.mxu0 0.0
        %1060 = vmatprep.subr.mxu0 0.0
        %1061 = vmatpush1.msra.mxu0 0.0
        %1062 = vmatprep.subr.mxu0 0.0
        %1063 = vmatpush1.msra.mxu0 0.0
        %1064 = vmatprep.subr.mxu0 0.0
        %1065 = vmatpush1.msra.mxu0 0.0
        %1066 = vmatprep.subr.mxu0 0.0
        %1067 = vmatpush1.msra.mxu0 0.0
        %1068 = vmatprep.subr.mxu0 0.0
        %1069 = vmatpush1.msra.mxu0 0.0
        %1070 = vmatprep.subr.mxu0 0.0
        %1071 = vmatpush1.msra.mxu0 0.0
        %1072 = vmatprep.subr.mxu0 0.0
        %1073 = vmatpush1.msra.mxu0 0.0
        %1074 = vmatprep.subr.mxu0 0.0
        %1075 = vmatpush1.msra.mxu0 0.0
        %1076 = vmatprep.subr.mxu0 0.0
        %1077 = vmatpush1.msra.mxu0 0.0
        %1078 = vmatprep.subr.mxu0 0.0
        %1079 = vmatpush1.msra.mxu0 0.0
        %1080 = vmatprep.subr.mxu0 0.0
        %1081 = vmatpush1.msra.mxu0 0.0
        %1082 = vmatprep.subr.mxu0 0.0
        %1083 = vmatpush1.msra.mxu0 0.0
        %1084 = vmatprep.subr.mxu0 0.0
        %1085 = vmatpush1.msra.mxu0 0.0
        %1086 = vmatprep.subr.mxu0 0.0
        %1087 = vmatpush1.msra.mxu0 0.0
        %1088 = vmatprep.subr.mxu0 0.0
        %1089 = vmatpush1.msra.mxu0 0.0
        %1090 = vmatprep.subr.mxu0 0.0
        %1091 = vmatpush1.msra.mxu0 0.0
        %1092 = vmatprep.subr.mxu0 0.0
        %1093 = vmatpush1.msra.mxu0 0.0
        %1094 = vmatprep.subr.mxu0 0.0
        %1095 = vmatpush1.msra.mxu0 0.0
        %1096 = vmatprep.subr.mxu0 0.0
        %1097 = vmatpush1.msra.mxu0 0.0
        %1098 = vmatprep.subr.mxu0 0.0
        %1099 = vmatpush1.msra.mxu0 0.0
        %1100 = vmatprep.subr.mxu0 0.0
        %1101 = vmatpush1.msra.mxu0 0.0
        %1102 = vmatprep.mubr.f32.mxu0 0.0
        %1103 = vmatmul.mubr.f32.gmra.mrb[0].mxu0 %v1036
        %v1104 = vpop.f32.mrb[0].mxu0
        %v1105 = vadd.f32 %v1034, %v1104
        %v1106 = vpop.f32.mrb[0].mxu0
        %1107 = vdwg.mxu0
        %v1108 = vmax.f32 %v1105, 0.0
        %v1109 = vadd.f32 %v1108, %v1017
        %v1110 = vmax.f32 %v1109, 0.0
        %v1111 = vld [vmem:[#allocation2 + $0xd0] sm:$0xff]
        %v1112 = vld [vmem:[#allocation2 + $0xd8] sm:$0xff]
        %vm1113 = vcmp.ge.s32.totalorder %v441, 24
        %1114 = vrot.lane.b32.xlu0 %v1110, 24
        %v1115 = vpop.permute.xlu0 %1114
        %v1116 = vsel %vm1113, 1, 0
        %vm1117 = vcmp.eq.s32.totalorder %v1116, 1
        %v1118 = vsel %vm1117, %v1115, 0.0
        %vm1119 = vcmp.ge.s32.totalorder %v441, 16
        %1120 = vrot.lane.b32.xlu0 %v1110, 16
        %v1121 = vpop.permute.xlu0 %1120
        %v1122 = vsel %vm1119, 1, 0
        %vm1123 = vcmp.eq.s32.totalorder %v1122, 1
        %v1124 = vsel %vm1123, %v1121, 0.0
        %1125 = vrot.lane.b32.xlu0 %v1110, 8
        %v1126 = vpop.permute.xlu0 %1125
        %v1127 = vsel %vm926, %v1126, 0.0
        %1129 = vset.pattern.permute.xlu0 32
        %1130 = vperm.xlu0 %1129, %v1111
        %v1131 = vpop.permute.xlu0 %1130
        %1134 = vset.pattern.permute.xlu0 32
        %1135 = vperm.xlu0 %1134, %v1112
        %v1136 = vpop.permute.xlu0 %1135
        %v1138 = vsel %vm167, %v1111, 0
        %v1140 = vsel %vm167, %v1112, 0
        %1142 = vmatprep.subr.mxu0 0.0
        %1143 = vmatpush1.msra.mxu0 %v1118
        %1144 = vmatprep.subr.mxu0 0.0
        %1145 = vmatpush1.msra.mxu0 %v1124
        %1146 = vmatprep.subr.mxu0 0.0
        %1147 = vmatpush1.msra.mxu0 %v1127
        %1148 = vmatprep.subr.mxu0 0.0
        %1149 = vmatpush1.msra.mxu0 %v1110
        %1150 = vmatprep.subr.mxu0 0.0
        %1151 = vmatpush1.msra.mxu0 0.0
        %1152 = vmatprep.subr.mxu0 0.0
        %1153 = vmatpush1.msra.mxu0 0.0
        %1154 = vmatprep.subr.mxu0 0.0
        %1155 = vmatpush1.msra.mxu0 0.0
        %1156 = vmatprep.subr.mxu0 0.0
        %1157 = vmatpush1.msra.mxu0 0.0
        %1158 = vmatprep.subr.mxu0 0.0
        %1159 = vmatpush1.msra.mxu0 0.0
        %1160 = vmatprep.subr.mxu0 0.0
        %1161 = vmatpush1.msra.mxu0 0.0
        %1162 = vmatprep.subr.mxu0 0.0
        %1163 = vmatpush1.msra.mxu0 0.0
        %1164 = vmatprep.subr.mxu0 0.0
        %1165 = vmatpush1.msra.mxu0 0.0
        %1166 = vmatprep.subr.mxu0 0.0
        %1167 = vmatpush1.msra.mxu0 0.0
        %1168 = vmatprep.subr.mxu0 0.0
        %1169 = vmatpush1.msra.mxu0 0.0
        %1170 = vmatprep.subr.mxu0 0.0
        %1171 = vmatpush1.msra.mxu0 0.0
        %1172 = vmatprep.subr.mxu0 0.0
        %1173 = vmatpush1.msra.mxu0 0.0
        %1174 = vmatprep.subr.mxu0 0.0
        %1175 = vmatpush1.msra.mxu0 0.0
        %1176 = vmatprep.subr.mxu0 0.0
        %1177 = vmatpush1.msra.mxu0 0.0
        %1178 = vmatprep.subr.mxu0 0.0
        %1179 = vmatpush1.msra.mxu0 0.0
        %1180 = vmatprep.subr.mxu0 0.0
        %1181 = vmatpush1.msra.mxu0 0.0
        %1182 = vmatprep.subr.mxu0 0.0
        %1183 = vmatpush1.msra.mxu0 0.0
        %1184 = vmatprep.subr.mxu0 0.0
        %1185 = vmatpush1.msra.mxu0 0.0
        %1186 = vmatprep.subr.mxu0 0.0
        %1187 = vmatpush1.msra.mxu0 0.0
        %1188 = vmatprep.subr.mxu0 0.0
        %1189 = vmatpush1.msra.mxu0 0.0
        %1190 = vmatprep.subr.mxu0 0.0
        %1191 = vmatpush1.msra.mxu0 0.0
        %1192 = vmatprep.subr.mxu0 0.0
        %1193 = vmatpush1.msra.mxu0 0.0
        %1194 = vmatprep.subr.mxu0 0.0
        %1195 = vmatpush1.msra.mxu0 0.0
        %1196 = vmatprep.subr.mxu0 0.0
        %1197 = vmatpush1.msra.mxu0 0.0
        %1198 = vmatprep.subr.mxu0 0.0
        %1199 = vmatpush1.msra.mxu0 0.0
        %1200 = vmatprep.subr.mxu0 0.0
        %1201 = vmatpush1.msra.mxu0 0.0
        %1202 = vmatprep.subr.mxu0 0.0
        %1203 = vmatpush1.msra.mxu0 0.0
        %1204 = vmatprep.subr.mxu0 0.0
        %1205 = vmatpush1.msra.mxu0 0.0
        %1206 = vmatprep.mubr.f32.mxu0 0.0
        %1207 = vmatmul.mubr.f32.gmra.mrb[0].mxu0 %v1138
        %v1208 = vpop.f32.mrb[0].mxu0
        %v1209 = vadd.f32 %v1131, %v1208
        %v1210 = vpop.f32.mrb[0].mxu0
        %1211 = vmatprep.mubr.f32.mxu0 0.0
        %1212 = vmatmul.mubr.f32.gmra.mrb[0].mxu0 %v1140
        %v1213 = vpop.f32.mrb[0].mxu0
        %v1214 = vadd.f32 %v1136, %v1213
        %v1215 = vpop.f32.mrb[0].mxu0
        %1216 = vdwg.mxu0
        %v1217 = vmax.f32 %v1209, 0.0
        %v1218 = vld [vmem:[#allocation2 + $0xe0] sm:$0xff]
        %1219 = vrot.lane.b32.xlu0 %v1217, 24
        %v1220 = vpop.permute.xlu0 %1219
        %v1221 = vsel %vm1117, %v1220, 0.0
        %1222 = vrot.lane.b32.xlu0 %v1217, 16
        %v1223 = vpop.permute.xlu0 %1222
        %v1224 = vsel %vm1123, %v1223, 0.0
        %1225 = vrot.lane.b32.xlu0 %v1217, 8
        %v1226 = vpop.permute.xlu0 %1225
        %v1227 = vsel %vm926, %v1226, 0.0
        %1229 = vset.pattern.permute.xlu0 32
        %1230 = vperm.xlu0 %1229, %v1218
        %v1231 = vpop.permute.xlu0 %1230
        %v1233 = vsel %vm167, %v1218, 0
        %1235 = vmatprep.subr.mxu0 0.0
        %1236 = vmatpush1.msra.mxu0 %v1221
        %1237 = vmatprep.subr.mxu0 0.0
        %1238 = vmatpush1.msra.mxu0 %v1224
        %1239 = vmatprep.subr.mxu0 0.0
        %1240 = vmatpush1.msra.mxu0 %v1227
        %1241 = vmatprep.subr.mxu0 0.0
        %1242 = vmatpush1.msra.mxu0 %v1217
        %1243 = vmatprep.subr.mxu0 0.0
        %1244 = vmatpush1.msra.mxu0 0.0
        %1245 = vmatprep.subr.mxu0 0.0
        %1246 = vmatpush1.msra.mxu0 0.0
        %1247 = vmatprep.subr.mxu0 0.0
        %1248 = vmatpush1.msra.mxu0 0.0
        %1249 = vmatprep.subr.mxu0 0.0
        %1250 = vmatpush1.msra.mxu0 0.0
        %1251 = vmatprep.subr.mxu0 0.0
        %1252 = vmatpush1.msra.mxu0 0.0
        %1253 = vmatprep.subr.mxu0 0.0
        %1254 = vmatpush1.msra.mxu0 0.0
        %1255 = vmatprep.subr.mxu0 0.0
        %1256 = vmatpush1.msra.mxu0 0.0
        %1257 = vmatprep.subr.mxu0 0.0
        %1258 = vmatpush1.msra.mxu0 0.0
        %1259 = vmatprep.subr.mxu0 0.0
        %1260 = vmatpush1.msra.mxu0 0.0
        %1261 = vmatprep.subr.mxu0 0.0
        %1262 = vmatpush1.msra.mxu0 0.0
        %1263 = vmatprep.subr.mxu0 0.0
        %1264 = vmatpush1.msra.mxu0 0.0
        %1265 = vmatprep.subr.mxu0 0.0
        %1266 = vmatpush1.msra.mxu0 0.0
        %1267 = vmatprep.subr.mxu0 0.0
        %1268 = vmatpush1.msra.mxu0 0.0
        %1269 = vmatprep.subr.mxu0 0.0
        %1270 = vmatpush1.msra.mxu0 0.0
        %1271 = vmatprep.subr.mxu0 0.0
        %1272 = vmatpush1.msra.mxu0 0.0
        %1273 = vmatprep.subr.mxu0 0.0
        %1274 = vmatpush1.msra.mxu0 0.0
        %1275 = vmatprep.subr.mxu0 0.0
        %1276 = vmatpush1.msra.mxu0 0.0
        %1277 = vmatprep.subr.mxu0 0.0
        %1278 = vmatpush1.msra.mxu0 0.0
        %1279 = vmatprep.subr.mxu0 0.0
        %1280 = vmatpush1.msra.mxu0 0.0
        %1281 = vmatprep.subr.mxu0 0.0
        %1282 = vmatpush1.msra.mxu0 0.0
        %1283 = vmatprep.subr.mxu0 0.0
        %1284 = vmatpush1.msra.mxu0 0.0
        %1285 = vmatprep.subr.mxu0 0.0
        %1286 = vmatpush1.msra.mxu0 0.0
        %1287 = vmatprep.subr.mxu0 0.0
        %1288 = vmatpush1.msra.mxu0 0.0
        %1289 = vmatprep.subr.mxu0 0.0
        %1290 = vmatpush1.msra.mxu0 0.0
        %1291 = vmatprep.subr.mxu0 0.0
        %1292 = vmatpush1.msra.mxu0 0.0
        %1293 = vmatprep.subr.mxu0 0.0
        %1294 = vmatpush1.msra.mxu0 0.0
        %1295 = vmatprep.subr.mxu0 0.0
        %1296 = vmatpush1.msra.mxu0 0.0
        %1297 = vmatprep.subr.mxu0 0.0
        %1298 = vmatpush1.msra.mxu0 0.0
        %1299 = vmatprep.mubr.f32.mxu0 0.0
        %1300 = vmatmul.mubr.f32.gmra.mrb[0].mxu0 %v1233
        %v1301 = vpop.f32.mrb[0].mxu0
        %v1302 = vadd.f32 %v1231, %v1301
        %v1303 = vpop.f32.mrb[0].mxu0
        %1304 = vdwg.mxu0
        %v1305 = vmax.f32 %v1302, 0.0
        %v1306 = vadd.f32 %v1305, %v1214
        %v1307 = vmax.f32 %v1306, 0.0
        %1308 = vrot.lane.b32.xlu0 %v299, 32
        %v1309 = vpop.permute.xlu0 %1308
        %1311 = vrot.lane.b32.xlu0 %v300, 64
        %v1312 = vpop.permute.xlu0 %1311
        %1314 = vrot.lane.b32.xlu0 %v301, 96
        %v1315 = vpop.permute.xlu0 %1314
        %v1317 = vsel %vm167, %v298, %v1309
        %v1318 = vsel %vm452, %v1317, %v1312
        %v1319 = vsel %vm454, %v1318, %v1315
        %1320 = vrot.lane.b32.xlu0 %v1319, 3
        %v1321 = vpop.permute.xlu0 %1320
        %v1322 = vsel %vm464, %v1321, 0.0
        %1323 = vrot.lane.b32.xlu0 %v1319, 2
        %v1324 = vpop.permute.xlu0 %1323
        %v1325 = vsel %vm470, %v1324, 0.0
        %1326 = vrot.lane.b32.xlu0 %v1319, 1
        %v1327 = vpop.permute.xlu0 %1326
        %v1328 = vsel %vm476, %v1327, 0.0
        %1329 = vmatprep.subr.mxu0 0.0
        %1330 = vmatpush1.msra.mxu0 %v1322
        %1331 = vmatprep.subr.mxu0 0.0
        %1332 = vmatpush1.msra.mxu0 %v1325
        %1333 = vmatprep.subr.mxu0 0.0
        %1334 = vmatpush1.msra.mxu0 %v1328
        %1335 = vmatprep.subr.mxu0 0.0
        %1336 = vmatpush1.msra.mxu0 %v1319
        %1337 = vmatprep.subr.mxu0 0.0
        %1338 = vmatpush1.msra.mxu0 0.0
        %1339 = vmatprep.subr.mxu0 0.0
        %1340 = vmatpush1.msra.mxu0 0.0
        %1341 = vmatprep.subr.mxu0 0.0
        %1342 = vmatpush1.msra.mxu0 0.0
        %1343 = vmatprep.subr.mxu0 0.0
        %1344 = vmatpush1.msra.mxu0 0.0
        %1345 = vmatprep.subr.mxu0 0.0
        %1346 = vmatpush1.msra.mxu0 0.0
        %1347 = vmatprep.subr.mxu0 0.0
        %1348 = vmatpush1.msra.mxu0 0.0
        %1349 = vmatprep.subr.mxu0 0.0
        %1350 = vmatpush1.msra.mxu0 0.0
        %1351 = vmatprep.subr.mxu0 0.0
        %1352 = vmatpush1.msra.mxu0 0.0
        %1353 = vmatprep.subr.mxu0 0.0
        %1354 = vmatpush1.msra.mxu0 0.0
        %1355 = vmatprep.subr.mxu0 0.0
        %1356 = vmatpush1.msra.mxu0 0.0
        %1357 = vmatprep.subr.mxu0 0.0
        %1358 = vmatpush1.msra.mxu0 0.0
        %1359 = vmatprep.subr.mxu0 0.0
        %1360 = vmatpush1.msra.mxu0 0.0
        %1361 = vmatprep.subr.mxu0 0.0
        %1362 = vmatpush1.msra.mxu0 0.0
        %1363 = vmatprep.subr.mxu0 0.0
        %1364 = vmatpush1.msra.mxu0 0.0
        %1365 = vmatprep.subr.mxu0 0.0
        %1366 = vmatpush1.msra.mxu0 0.0
        %1367 = vmatprep.subr.mxu0 0.0
        %1368 = vmatpush1.msra.mxu0 0.0
        %1369 = vmatprep.subr.mxu0 0.0
        %1370 = vmatpush1.msra.mxu0 0.0
        %1371 = vmatprep.subr.mxu0 0.0
        %1372 = vmatpush1.msra.mxu0 0.0
        %1373 = vmatprep.subr.mxu0 0.0
        %1374 = vmatpush1.msra.mxu0 0.0
        %1375 = vmatprep.subr.mxu0 0.0
        %1376 = vmatpush1.msra.mxu0 0.0
        %1377 = vmatprep.subr.mxu0 0.0
        %1378 = vmatpush1.msra.mxu0 0.0
        %1379 = vmatprep.subr.mxu0 0.0
        %1380 = vmatpush1.msra.mxu0 0.0
        %1381 = vmatprep.subr.mxu0 0.0
        %1382 = vmatpush1.msra.mxu0 0.0
        %1383 = vmatprep.subr.mxu0 0.0
        %1384 = vmatpush1.msra.mxu0 0.0
        %1385 = vmatprep.subr.mxu0 0.0
        %1386 = vmatpush1.msra.mxu0 0.0
        %1387 = vmatprep.subr.mxu0 0.0
        %1388 = vmatpush1.msra.mxu0 0.0
        %1389 = vmatprep.subr.mxu0 0.0
        %1390 = vmatpush1.msra.mxu0 0.0
        %1391 = vmatprep.subr.mxu0 0.0
        %1392 = vmatpush1.msra.mxu0 0.0
        %1393 = vmatprep.mubr.f32.mxu0 0.0
        %1394 = vmatmul.mubr.f32.gmra.mrb[0].mxu0 %v498
        %v1395 = vpop.f32.mrb[0].mxu0
        %v1396 = vadd.f32 %v481, %v1395
        %v1397 = vpop.f32.mrb[0].mxu0
        %1398 = vmatprep.mubr.f32.mxu0 0.0
        %1399 = vmatmul.mubr.f32.gmra.mrb[0].mxu0 %v500
        %v1400 = vpop.f32.mrb[0].mxu0
        %v1401 = vadd.f32 %v486, %v1400
        %v1402 = vpop.f32.mrb[0].mxu0
        %1403 = vmatprep.mubr.f32.mxu0 0.0
        %1404 = vmatmul.mubr.f32.gmra.mrb[0].mxu0 %v502
        %v1405 = vpop.f32.mrb[0].mxu0
        %v1406 = vadd.f32 %v491, %v1405
        %v1407 = vpop.f32.mrb[0].mxu0
        %1408 = vmatprep.mubr.f32.mxu0 0.0
        %1409 = vmatmul.mubr.f32.gmra.mrb[0].mxu0 %v504
        %v1410 = vpop.f32.mrb[0].mxu0
        %v1411 = vadd.f32 %v496, %v1410
        %v1412 = vpop.f32.mrb[0].mxu0
        %1413 = vdwg.mxu0
        %v1414 = vmax.f32 %v1396, 0.0
        %v1415 = vmax.f32 %v1401, 0.0
        %1416 = vrot.lane.b32.xlu0 %v1414, 3
        %v1417 = vpop.permute.xlu0 %1416
        %1418 = vrot.lane.b32.xlu0 %v1415, 3
        %v1419 = vpop.permute.xlu0 %1418
        %v1420 = vsel %vm464, %v1417, 0.0
        %v1421 = vsel %vm464, %v1419, 0.0
        %1422 = vrot.lane.b32.xlu0 %v1414, 2
        %v1423 = vpop.permute.xlu0 %1422
        %1424 = vrot.lane.b32.xlu0 %v1415, 2
        %v1425 = vpop.permute.xlu0 %1424
        %v1426 = vsel %vm470, %v1423, 0.0
        %v1427 = vsel %vm470, %v1425, 0.0
        %1428 = vrot.lane.b32.xlu0 %v1414, 1
        %v1429 = vpop.permute.xlu0 %1428
        %1430 = vrot.lane.b32.xlu0 %v1415, 1
        %v1431 = vpop.permute.xlu0 %1430
        %v1432 = vsel %vm476, %v1429, 0.0
        %v1433 = vsel %vm476, %v1431, 0.0
        %1434 = vmatprep.subr.mxu0 0.0
        %1435 = vmatpush1.msra.mxu0 %v1420
        %1436 = vmatprep.subr.mxu0 0.0
        %1437 = vmatpush1.msra.mxu0 %v1421
        %1438 = vmatprep.subr.mxu0 0.0
        %1439 = vmatpush1.msra.mxu0 %v1426
        %1440 = vmatprep.subr.mxu0 0.0
        %1441 = vmatpush1.msra.mxu0 %v1427
        %1442 = vmatprep.subr.mxu0 0.0
        %1443 = vmatpush1.msra.mxu0 %v1432
        %1444 = vmatprep.subr.mxu0 0.0
        %1445 = vmatpush1.msra.mxu0 %v1433
        %1446 = vmatprep.subr.mxu0 0.0
        %1447 = vmatpush1.msra.mxu0 %v1414
        %1448 = vmatprep.subr.mxu0 0.0
        %1449 = vmatpush1.msra.mxu0 %v1415
        %1450 = vmatprep.subr.mxu0 0.0
        %1451 = vmatpush1.msra.mxu0 0.0
        %1452 = vmatprep.subr.mxu0 0.0
        %1453 = vmatpush1.msra.mxu0 0.0
        %1454 = vmatprep.subr.mxu0 0.0
        %1455 = vmatpush1.msra.mxu0 0.0
        %1456 = vmatprep.subr.mxu0 0.0
        %1457 = vmatpush1.msra.mxu0 0.0
        %1458 = vmatprep.subr.mxu0 0.0
        %1459 = vmatpush1.msra.mxu0 0.0
        %1460 = vmatprep.subr.mxu0 0.0
        %1461 = vmatpush1.msra.mxu0 0.0
        %1462 = vmatprep.subr.mxu0 0.0
        %1463 = vmatpush1.msra.mxu0 0.0
        %1464 = vmatprep.subr.mxu0 0.0
        %1465 = vmatpush1.msra.mxu0 0.0
        %1466 = vmatprep.subr.mxu0 0.0
        %1467 = vmatpush1.msra.mxu0 0.0
        %1468 = vmatprep.subr.mxu0 0.0
        %1469 = vmatpush1.msra.mxu0 0.0
        %1470 = vmatprep.subr.mxu0 0.0
        %1471 = vmatpush1.msra.mxu0 0.0
        %1472 = vmatprep.subr.mxu0 0.0
        %1473 = vmatpush1.msra.mxu0 0.0
        %1474 = vmatprep.subr.mxu0 0.0
        %1475 = vmatpush1.msra.mxu0 0.0
        %1476 = vmatprep.subr.mxu0 0.0
        %1477 = vmatpush1.msra.mxu0 0.0
        %1478 = vmatprep.subr.mxu0 0.0
        %1479 = vmatpush1.msra.mxu0 0.0
        %1480 = vmatprep.subr.mxu0 0.0
        %1481 = vmatpush1.msra.mxu0 0.0
        %1482 = vmatprep.subr.mxu0 0.0
        %1483 = vmatpush1.msra.mxu0 0.0
        %1484 = vmatprep.subr.mxu0 0.0
        %1485 = vmatpush1.msra.mxu0 0.0
        %1486 = vmatprep.subr.mxu0 0.0
        %1487 = vmatpush1.msra.mxu0 0.0
        %1488 = vmatprep.subr.mxu0 0.0
        %1489 = vmatpush1.msra.mxu0 0.0
        %1490 = vmatprep.subr.mxu0 0.0
        %1491 = vmatpush1.msra.mxu0 0.0
        %1492 = vmatprep.subr.mxu0 0.0
        %1493 = vmatpush1.msra.mxu0 0.0
        %1494 = vmatprep.subr.mxu0 0.0
        %1495 = vmatpush1.msra.mxu0 0.0
        %1496 = vmatprep.subr.mxu0 0.0
        %1497 = vmatpush1.msra.mxu0 0.0
        %1498 = vmatprep.mubr.f32.mxu0 0.0
        %1499 = vmatmul.mubr.f32.gmra.mrb[0].mxu0 %v623
        %v1500 = vpop.f32.mrb[0].mxu0
        %v1501 = vadd.f32 %v616, %v1500
        %v1502 = vpop.f32.mrb[0].mxu0
        %1503 = vmatprep.mubr.f32.mxu0 0.0
        %1504 = vmatmul.mubr.f32.gmra.mrb[0].mxu0 %v625
        %v1505 = vpop.f32.mrb[0].mxu0
        %v1506 = vadd.f32 %v621, %v1505
        %v1507 = vpop.f32.mrb[0].mxu0
        %1508 = vdwg.mxu0
        %v1509 = vmax.f32 %v1501, 0.0
        %v1510 = vmax.f32 %v1506, 0.0
        %v1511 = vadd.f32 %v1509, %v1406
        %v1512 = vadd.f32 %v1510, %v1411
        %v1513 = vmax.f32 %v1511, 0.0
        %v1514 = vmax.f32 %v1512, 0.0
        %1515 = vrot.lane.b32.xlu0 %v1513, 6
        %v1516 = vpop.permute.xlu0 %1515
        %1517 = vrot.lane.b32.xlu0 %v1514, 6
        %v1518 = vpop.permute.xlu0 %1517
        %v1519 = vsel %vm716, %v1516, 0.0
        %v1520 = vsel %vm716, %v1518, 0.0
        %1521 = vrot.lane.b32.xlu0 %v1513, 4
        %v1522 = vpop.permute.xlu0 %1521
        %1523 = vrot.lane.b32.xlu0 %v1514, 4
        %v1524 = vpop.permute.xlu0 %1523
        %v1525 = vsel %vm725, %v1522, 0.0
        %v1526 = vsel %vm725, %v1524, 0.0
        %1527 = vrot.lane.b32.xlu0 %v1513, 2
        %v1528 = vpop.permute.xlu0 %1527
        %1529 = vrot.lane.b32.xlu0 %v1514, 2
        %v1530 = vpop.permute.xlu0 %1529
        %v1531 = vsel %vm470, %v1528, 0.0
        %v1532 = vsel %vm470, %v1530, 0.0
        %1533 = vmatprep.subr.mxu0 0.0
        %1534 = vmatpush1.msra.mxu0 %v1519
        %1535 = vmatprep.subr.mxu0 0.0
        %1536 = vmatpush1.msra.mxu0 %v1520
        %1537 = vmatprep.subr.mxu0 0.0
        %1538 = vmatpush1.msra.mxu0 %v1525
        %1539 = vmatprep.subr.mxu0 0.0
        %1540 = vmatpush1.msra.mxu0 %v1526
        %1541 = vmatprep.subr.mxu0 0.0
        %1542 = vmatpush1.msra.mxu0 %v1531
        %1543 = vmatprep.subr.mxu0 0.0
        %1544 = vmatpush1.msra.mxu0 %v1532
        %1545 = vmatprep.subr.mxu0 0.0
        %1546 = vmatpush1.msra.mxu0 %v1513
        %1547 = vmatprep.subr.mxu0 0.0
        %1548 = vmatpush1.msra.mxu0 %v1514
        %1549 = vmatprep.subr.mxu0 0.0
        %1550 = vmatpush1.msra.mxu0 0.0
        %1551 = vmatprep.subr.mxu0 0.0
        %1552 = vmatpush1.msra.mxu0 0.0
        %1553 = vmatprep.subr.mxu0 0.0
        %1554 = vmatpush1.msra.mxu0 0.0
        %1555 = vmatprep.subr.mxu0 0.0
        %1556 = vmatpush1.msra.mxu0 0.0
        %1557 = vmatprep.subr.mxu0 0.0
        %1558 = vmatpush1.msra.mxu0 0.0
        %1559 = vmatprep.subr.mxu0 0.0
        %1560 = vmatpush1.msra.mxu0 0.0
        %1561 = vmatprep.subr.mxu0 0.0
        %1562 = vmatpush1.msra.mxu0 0.0
        %1563 = vmatprep.subr.mxu0 0.0
        %1564 = vmatpush1.msra.mxu0 0.0
        %1565 = vmatprep.subr.mxu0 0.0
        %1566 = vmatpush1.msra.mxu0 0.0
        %1567 = vmatprep.subr.mxu0 0.0
        %1568 = vmatpush1.msra.mxu0 0.0
        %1569 = vmatprep.subr.mxu0 0.0
        %1570 = vmatpush1.msra.mxu0 0.0
        %1571 = vmatprep.subr.mxu0 0.0
        %1572 = vmatpush1.msra.mxu0 0.0
        %1573 = vmatprep.subr.mxu0 0.0
        %1574 = vmatpush1.msra.mxu0 0.0
        %1575 = vmatprep.subr.mxu0 0.0
        %1576 = vmatpush1.msra.mxu0 0.0
        %1577 = vmatprep.subr.mxu0 0.0
        %1578 = vmatpush1.msra.mxu0 0.0
        %1579 = vmatprep.subr.mxu0 0.0
        %1580 = vmatpush1.msra.mxu0 0.0
        %1581 = vmatprep.subr.mxu0 0.0
        %1582 = vmatpush1.msra.mxu0 0.0
        %1583 = vmatprep.subr.mxu0 0.0
        %1584 = vmatpush1.msra.mxu0 0.0
        %1585 = vmatprep.subr.mxu0 0.0
        %1586 = vmatpush1.msra.mxu0 0.0
        %1587 = vmatprep.subr.mxu0 0.0
        %1588 = vmatpush1.msra.mxu0 0.0
        %1589 = vmatprep.subr.mxu0 0.0
        %1590 = vmatpush1.msra.mxu0 0.0
        %1591 = vmatprep.subr.mxu0 0.0
        %1592 = vmatpush1.msra.mxu0 0.0
        %1593 = vmatprep.subr.mxu0 0.0
        %1594 = vmatpush1.msra.mxu0 0.0
        %1595 = vmatprep.subr.mxu0 0.0
        %1596 = vmatpush1.msra.mxu0 0.0
        %1597 = vmatprep.mubr.f32.mxu0 0.0
        %1598 = vmatmul.mubr.f32.gmra.mrb[0].mxu0 %v744
        %v1599 = vpop.f32.mrb[0].mxu0
        %v1600 = vadd.f32 %v737, %v1599
        %v1601 = vpop.f32.mrb[0].mxu0
        %1602 = vmatprep.mubr.f32.mxu0 0.0
        %1603 = vmatmul.mubr.f32.gmra.mrb[0].mxu0 %v746
        %v1604 = vpop.f32.mrb[0].mxu0
        %v1605 = vadd.f32 %v742, %v1604
        %v1606 = vpop.f32.mrb[0].mxu0
        %1607 = vdwg.mxu0
        %v1608 = vmax.f32 %v1600, 0.0
        %1609 = vrot.lane.b32.xlu0 %v1608, 6
        %v1610 = vpop.permute.xlu0 %1609
        %v1611 = vsel %vm716, %v1610, 0.0
        %1612 = vrot.lane.b32.xlu0 %v1608, 4
        %v1613 = vpop.permute.xlu0 %1612
        %v1614 = vsel %vm725, %v1613, 0.0
        %1615 = vrot.lane.b32.xlu0 %v1608, 2
        %v1616 = vpop.permute.xlu0 %1615
        %v1617 = vsel %vm470, %v1616, 0.0
        %1618 = vmatprep.subr.mxu0 0.0
        %1619 = vmatpush1.msra.mxu0 %v1611
        %1620 = vmatprep.subr.mxu0 0.0
        %1621 = vmatpush1.msra.mxu0 %v1614
        %1622 = vmatprep.subr.mxu0 0.0
        %1623 = vmatpush1.msra.mxu0 %v1617
        %1624 = vmatprep.subr.mxu0 0.0
        %1625 = vmatpush1.msra.mxu0 %v1608
        %1626 = vmatprep.subr.mxu0 0.0
        %1627 = vmatpush1.msra.mxu0 0.0
        %1628 = vmatprep.subr.mxu0 0.0
        %1629 = vmatpush1.msra.mxu0 0.0
        %1630 = vmatprep.subr.mxu0 0.0
        %1631 = vmatpush1.msra.mxu0 0.0
        %1632 = vmatprep.subr.mxu0 0.0
        %1633 = vmatpush1.msra.mxu0 0.0
        %1634 = vmatprep.subr.mxu0 0.0
        %1635 = vmatpush1.msra.mxu0 0.0
        %1636 = vmatprep.subr.mxu0 0.0
        %1637 = vmatpush1.msra.mxu0 0.0
        %1638 = vmatprep.subr.mxu0 0.0
        %1639 = vmatpush1.msra.mxu0 0.0
        %1640 = vmatprep.subr.mxu0 0.0
        %1641 = vmatpush1.msra.mxu0 0.0
        %1642 = vmatprep.subr.mxu0 0.0
        %1643 = vmatpush1.msra.mxu0 0.0
        %1644 = vmatprep.subr.mxu0 0.0
        %1645 = vmatpush1.msra.mxu0 0.0
        %1646 = vmatprep.subr.mxu0 0.0
        %1647 = vmatpush1.msra.mxu0 0.0
        %1648 = vmatprep.subr.mxu0 0.0
        %1649 = vmatpush1.msra.mxu0 0.0
        %1650 = vmatprep.subr.mxu0 0.0
        %1651 = vmatpush1.msra.mxu0 0.0
        %1652 = vmatprep.subr.mxu0 0.0
        %1653 = vmatpush1.msra.mxu0 0.0
        %1654 = vmatprep.subr.mxu0 0.0
        %1655 = vmatpush1.msra.mxu0 0.0
        %1656 = vmatprep.subr.mxu0 0.0
        %1657 = vmatpush1.msra.mxu0 0.0
        %1658 = vmatprep.subr.mxu0 0.0
        %1659 = vmatpush1.msra.mxu0 0.0
        %1660 = vmatprep.subr.mxu0 0.0
        %1661 = vmatpush1.msra.mxu0 0.0
        %1662 = vmatprep.subr.mxu0 0.0
        %1663 = vmatpush1.msra.mxu0 0.0
        %1664 = vmatprep.subr.mxu0 0.0
        %1665 = vmatpush1.msra.mxu0 0.0
        %1666 = vmatprep.subr.mxu0 0.0
        %1667 = vmatpush1.msra.mxu0 0.0
        %1668 = vmatprep.subr.mxu0 0.0
        %1669 = vmatpush1.msra.mxu0 0.0
        %1670 = vmatprep.subr.mxu0 0.0
        %1671 = vmatpush1.msra.mxu0 0.0
        %1672 = vmatprep.subr.mxu0 0.0
        %1673 = vmatpush1.msra.mxu0 0.0
        %1674 = vmatprep.subr.mxu0 0.0
        %1675 = vmatpush1.msra.mxu0 0.0
        %1676 = vmatprep.subr.mxu0 0.0
        %1677 = vmatpush1.msra.mxu0 0.0
        %1678 = vmatprep.subr.mxu0 0.0
        %1679 = vmatpush1.msra.mxu0 0.0
        %1680 = vmatprep.subr.mxu0 0.0
        %1681 = vmatpush1.msra.mxu0 0.0
        %1682 = vmatprep.mubr.f32.mxu0 0.0
        %1683 = vmatmul.mubr.f32.gmra.mrb[0].mxu0 %v839
        %v1684 = vpop.f32.mrb[0].mxu0
        %v1685 = vadd.f32 %v837, %v1684
        %v1686 = vpop.f32.mrb[0].mxu0
        %1687 = vdwg.mxu0
        %v1688 = vmax.f32 %v1685, 0.0
        %v1689 = vadd.f32 %v1688, %v1605
        %v1690 = vmax.f32 %v1689, 0.0
        %1691 = vrot.lane.b32.xlu0 %v1690, 12
        %v1692 = vpop.permute.xlu0 %1691
        %v1693 = vsel %vm920, %v1692, 0.0
        %1694 = vrot.lane.b32.xlu0 %v1690, 8
        %v1695 = vpop.permute.xlu0 %1694
        %v1696 = vsel %vm926, %v1695, 0.0
        %1697 = vrot.lane.b32.xlu0 %v1690, 4
        %v1698 = vpop.permute.xlu0 %1697
        %v1699 = vsel %vm725, %v1698, 0.0
        %1700 = vmatprep.subr.mxu0 0.0
        %1701 = vmatpush1.msra.mxu0 %v1693
        %1702 = vmatprep.subr.mxu0 0.0
        %1703 = vmatpush1.msra.mxu0 %v1696
        %1704 = vmatprep.subr.mxu0 0.0
        %1705 = vmatpush1.msra.mxu0 %v1699
        %1706 = vmatprep.subr.mxu0 0.0
        %1707 = vmatpush1.msra.mxu0 %v1690
        %1708 = vmatprep.subr.mxu0 0.0
        %1709 = vmatpush1.msra.mxu0 0.0
        %1710 = vmatprep.subr.mxu0 0.0
        %1711 = vmatpush1.msra.mxu0 0.0
        %1712 = vmatprep.subr.mxu0 0.0
        %1713 = vmatpush1.msra.mxu0 0.0
        %1714 = vmatprep.subr.mxu0 0.0
        %1715 = vmatpush1.msra.mxu0 0.0
        %1716 = vmatprep.subr.mxu0 0.0
        %1717 = vmatpush1.msra.mxu0 0.0
        %1718 = vmatprep.subr.mxu0 0.0
        %1719 = vmatpush1.msra.mxu0 0.0
        %1720 = vmatprep.subr.mxu0 0.0
        %1721 = vmatpush1.msra.mxu0 0.0
        %1722 = vmatprep.subr.mxu0 0.0
        %1723 = vmatpush1.msra.mxu0 0.0
        %1724 = vmatprep.subr.mxu0 0.0
        %1725 = vmatpush1.msra.mxu0 0.0
        %1726 = vmatprep.subr.mxu0 0.0
        %1727 = vmatpush1.msra.mxu0 0.0
        %1728 = vmatprep.subr.mxu0 0.0
        %1729 = vmatpush1.msra.mxu0 0.0
        %1730 = vmatprep.subr.mxu0 0.0
        %1731 = vmatpush1.msra.mxu0 0.0
        %1732 = vmatprep.subr.mxu0 0.0
        %1733 = vmatpush1.msra.mxu0 0.0
        %1734 = vmatprep.subr.mxu0 0.0
        %1735 = vmatpush1.msra.mxu0 0.0
        %1736 = vmatprep.subr.mxu0 0.0
        %1737 = vmatpush1.msra.mxu0 0.0
        %1738 = vmatprep.subr.mxu0 0.0
        %1739 = vmatpush1.msra.mxu0 0.0
        %1740 = vmatprep.subr.mxu0 0.0
        %1741 = vmatpush1.msra.mxu0 0.0
        %1742 = vmatprep.subr.mxu0 0.0
        %1743 = vmatpush1.msra.mxu0 0.0
        %1744 = vmatprep.subr.mxu0 0.0
        %1745 = vmatpush1.msra.mxu0 0.0
        %1746 = vmatprep.subr.mxu0 0.0
        %1747 = vmatpush1.msra.mxu0 0.0
        %1748 = vmatprep.subr.mxu0 0.0
        %1749 = vmatpush1.msra.mxu0 0.0
        %1750 = vmatprep.subr.mxu0 0.0
        %1751 = vmatpush1.msra.mxu0 0.0
        %1752 = vmatprep.subr.mxu0 0.0
        %1753 = vmatpush1.msra.mxu0 0.0
        %1754 = vmatprep.subr.mxu0 0.0
        %1755 = vmatpush1.msra.mxu0 0.0
        %1756 = vmatprep.subr.mxu0 0.0
        %1757 = vmatpush1.msra.mxu0 0.0
        %1758 = vmatprep.subr.mxu0 0.0
        %1759 = vmatpush1.msra.mxu0 0.0
        %1760 = vmatprep.subr.mxu0 0.0
        %1761 = vmatpush1.msra.mxu0 0.0
        %1762 = vmatprep.subr.mxu0 0.0
        %1763 = vmatpush1.msra.mxu0 0.0
        %1764 = vmatprep.mubr.f32.mxu0 0.0
        %1765 = vmatmul.mubr.f32.gmra.mrb[0].mxu0 %v941
        %v1766 = vpop.f32.mrb[0].mxu0
        %v1767 = vadd.f32 %v934, %v1766
        %v1768 = vpop.f32.mrb[0].mxu0
        %1769 = vmatprep.mubr.f32.mxu0 0.0
        %1770 = vmatmul.mubr.f32.gmra.mrb[0].mxu0 %v943
        %v1771 = vpop.f32.mrb[0].mxu0
        %v1772 = vadd.f32 %v939, %v1771
        %v1773 = vpop.f32.mrb[0].mxu0
        %1774 = vdwg.mxu0
        %v1775 = vmax.f32 %v1767, 0.0
        %1776 = vrot.lane.b32.xlu0 %v1775, 12
        %v1777 = vpop.permute.xlu0 %1776
        %v1778 = vsel %vm920, %v1777, 0.0
        %1779 = vrot.lane.b32.xlu0 %v1775, 8
        %v1780 = vpop.permute.xlu0 %1779
        %v1781 = vsel %vm926, %v1780, 0.0
        %1782 = vrot.lane.b32.xlu0 %v1775, 4
        %v1783 = vpop.permute.xlu0 %1782
        %v1784 = vsel %vm725, %v1783, 0.0
        %1785 = vmatprep.subr.mxu0 0.0
        %1786 = vmatpush1.msra.mxu0 %v1778
        %1787 = vmatprep.subr.mxu0 0.0
        %1788 = vmatpush1.msra.mxu0 %v1781
        %1789 = vmatprep.subr.mxu0 0.0
        %1790 = vmatpush1.msra.mxu0 %v1784
        %1791 = vmatprep.subr.mxu0 0.0
        %1792 = vmatpush1.msra.mxu0 %v1775
        %1793 = vmatprep.subr.mxu0 0.0
        %1794 = vmatpush1.msra.mxu0 0.0
        %1795 = vmatprep.subr.mxu0 0.0
        %1796 = vmatpush1.msra.mxu0 0.0
        %1797 = vmatprep.subr.mxu0 0.0
        %1798 = vmatpush1.msra.mxu0 0.0
        %1799 = vmatprep.subr.mxu0 0.0
        %1800 = vmatpush1.msra.mxu0 0.0
        %1801 = vmatprep.subr.mxu0 0.0
        %1802 = vmatpush1.msra.mxu0 0.0
        %1803 = vmatprep.subr.mxu0 0.0
        %1804 = vmatpush1.msra.mxu0 0.0
        %1805 = vmatprep.subr.mxu0 0.0
        %1806 = vmatpush1.msra.mxu0 0.0
        %1807 = vmatprep.subr.mxu0 0.0
        %1808 = vmatpush1.msra.mxu0 0.0
        %1809 = vmatprep.subr.mxu0 0.0
        %1810 = vmatpush1.msra.mxu0 0.0
        %1811 = vmatprep.subr.mxu0 0.0
        %1812 = vmatpush1.msra.mxu0 0.0
        %1813 = vmatprep.subr.mxu0 0.0
        %1814 = vmatpush1.msra.mxu0 0.0
        %1815 = vmatprep.subr.mxu0 0.0
        %1816 = vmatpush1.msra.mxu0 0.0
        %1817 = vmatprep.subr.mxu0 0.0
        %1818 = vmatpush1.msra.mxu0 0.0
        %1819 = vmatprep.subr.mxu0 0.0
        %1820 = vmatpush1.msra.mxu0 0.0
        %1821 = vmatprep.subr.mxu0 0.0
        %1822 = vmatpush1.msra.mxu0 0.0
        %1823 = vmatprep.subr.mxu0 0.0
        %1824 = vmatpush1.msra.mxu0 0.0
        %1825 = vmatprep.subr.mxu0 0.0
        %1826 = vmatpush1.msra.mxu0 0.0
        %1827 = vmatprep.subr.mxu0 0.0
        %1828 = vmatpush1.msra.mxu0 0.0
        %1829 = vmatprep.subr.mxu0 0.0
        %1830 = vmatpush1.msra.mxu0 0.0
        %1831 = vmatprep.subr.mxu0 0.0
        %1832 = vmatpush1.msra.mxu0 0.0
        %1833 = vmatprep.subr.mxu0 0.0
        %1834 = vmatpush1.msra.mxu0 0.0
        %1835 = vmatprep.subr.mxu0 0.0
        %1836 = vmatpush1.msra.mxu0 0.0
        %1837 = vmatprep.subr.mxu0 0.0
        %1838 = vmatpush1.msra.mxu0 0.0
        %1839 = vmatprep.subr.mxu0 0.0
        %1840 = vmatpush1.msra.mxu0 0.0
        %1841 = vmatprep.subr.mxu0 0.0
        %1842 = vmatpush1.msra.mxu0 0.0
        %1843 = vmatprep.subr.mxu0 0.0
        %1844 = vmatpush1.msra.mxu0 0.0
        %1845 = vmatprep.subr.mxu0 0.0
        %1846 = vmatpush1.msra.mxu0 0.0
        %1847 = vmatprep.subr.mxu0 0.0
        %1848 = vmatpush1.msra.mxu0 0.0
        %1849 = vmatprep.mubr.f32.mxu0 0.0
        %1850 = vmatmul.mubr.f32.gmra.mrb[0].mxu0 %v1036
        %v1851 = vpop.f32.mrb[0].mxu0
        %v1852 = vadd.f32 %v1034, %v1851
        %v1853 = vpop.f32.mrb[0].mxu0
        %1854 = vdwg.mxu0
        %v1855 = vmax.f32 %v1852, 0.0
        %v1856 = vadd.f32 %v1855, %v1772
        %v1857 = vmax.f32 %v1856, 0.0
        %1858 = vrot.lane.b32.xlu0 %v1857, 24
        %v1859 = vpop.permute.xlu0 %1858
        %v1860 = vsel %vm1117, %v1859, 0.0
        %1861 = vrot.lane.b32.xlu0 %v1857, 16
        %v1862 = vpop.permute.xlu0 %1861
        %v1863 = vsel %vm1123, %v1862, 0.0
        %1864 = vrot.lane.b32.xlu0 %v1857, 8
        %v1865 = vpop.permute.xlu0 %1864
        %v1866 = vsel %vm926, %v1865, 0.0
        %1867 = vmatprep.subr.mxu0 0.0
        %1868 = vmatpush1.msra.mxu0 %v1860
        %1869 = vmatprep.subr.mxu0 0.0
        %1870 = vmatpush1.msra.mxu0 %v1863
        %1871 = vmatprep.subr.mxu0 0.0
        %1872 = vmatpush1.msra.mxu0 %v1866
        %1873 = vmatprep.subr.mxu0 0.0
        %1874 = vmatpush1.msra.mxu0 %v1857
        %1875 = vmatprep.subr.mxu0 0.0
        %1876 = vmatpush1.msra.mxu0 0.0
        %1877 = vmatprep.subr.mxu0 0.0
        %1878 = vmatpush1.msra.mxu0 0.0
        %1879 = vmatprep.subr.mxu0 0.0
        %1880 = vmatpush1.msra.mxu0 0.0
        %1881 = vmatprep.subr.mxu0 0.0
        %1882 = vmatpush1.msra.mxu0 0.0
        %1883 = vmatprep.subr.mxu0 0.0
        %1884 = vmatpush1.msra.mxu0 0.0
        %1885 = vmatprep.subr.mxu0 0.0
        %1886 = vmatpush1.msra.mxu0 0.0
        %1887 = vmatprep.subr.mxu0 0.0
        %1888 = vmatpush1.msra.mxu0 0.0
        %1889 = vmatprep.subr.mxu0 0.0
        %1890 = vmatpush1.msra.mxu0 0.0
        %1891 = vmatprep.subr.mxu0 0.0
        %1892 = vmatpush1.msra.mxu0 0.0
        %1893 = vmatprep.subr.mxu0 0.0
        %1894 = vmatpush1.msra.mxu0 0.0
        %1895 = vmatprep.subr.mxu0 0.0
        %1896 = vmatpush1.msra.mxu0 0.0
        %1897 = vmatprep.subr.mxu0 0.0
        %1898 = vmatpush1.msra.mxu0 0.0
        %1899 = vmatprep.subr.mxu0 0.0
        %1900 = vmatpush1.msra.mxu0 0.0
        %1901 = vmatprep.subr.mxu0 0.0
        %1902 = vmatpush1.msra.mxu0 0.0
        %1903 = vmatprep.subr.mxu0 0.0
        %1904 = vmatpush1.msra.mxu0 0.0
        %1905 = vmatprep.subr.mxu0 0.0
        %1906 = vmatpush1.msra.mxu0 0.0
        %1907 = vmatprep.subr.mxu0 0.0
        %1908 = vmatpush1.msra.mxu0 0.0
        %1909 = vmatprep.subr.mxu0 0.0
        %1910 = vmatpush1.msra.mxu0 0.0
        %1911 = vmatprep.subr.mxu0 0.0
        %1912 = vmatpush1.msra.mxu0 0.0
        %1913 = vmatprep.subr.mxu0 0.0
        %1914 = vmatpush1.msra.mxu0 0.0
        %1915 = vmatprep.subr.mxu0 0.0
        %1916 = vmatpush1.msra.mxu0 0.0
        %1917 = vmatprep.subr.mxu0 0.0
        %1918 = vmatpush1.msra.mxu0 0.0
        %1919 = vmatprep.subr.mxu0 0.0
        %1920 = vmatpush1.msra.mxu0 0.0
        %1921 = vmatprep.subr.mxu0 0.0
        %1922 = vmatpush1.msra.mxu0 0.0
        %1923 = vmatprep.subr.mxu0 0.0
        %1924 = vmatpush1.msra.mxu0 0.0
        %1925 = vmatprep.subr.mxu0 0.0
        %1926 = vmatpush1.msra.mxu0 0.0
        %1927 = vmatprep.subr.mxu0 0.0
        %1928 = vmatpush1.msra.mxu0 0.0
        %1929 = vmatprep.subr.mxu0 0.0
        %1930 = vmatpush1.msra.mxu0 0.0
        %1931 = vmatprep.mubr.f32.mxu0 0.0
        %1932 = vmatmul.mubr.f32.gmra.mrb[0].mxu0 %v1138
        %v1933 = vpop.f32.mrb[0].mxu0
        %v1934 = vadd.f32 %v1131, %v1933
        %v1935 = vpop.f32.mrb[0].mxu0
        %1936 = vmatprep.mubr.f32.mxu0 0.0
        %1937 = vmatmul.mubr.f32.gmra.mrb[0].mxu0 %v1140
        %v1938 = vpop.f32.mrb[0].mxu0
        %v1939 = vadd.f32 %v1136, %v1938
        %v1940 = vpop.f32.mrb[0].mxu0
        %1941 = vdwg.mxu0
        %v1942 = vmax.f32 %v1934, 0.0
        %1943 = vrot.lane.b32.xlu0 %v1942, 24
        %v1944 = vpop.permute.xlu0 %1943
        %v1945 = vsel %vm1117, %v1944, 0.0
        %1946 = vrot.lane.b32.xlu0 %v1942, 16
        %v1947 = vpop.permute.xlu0 %1946
        %v1948 = vsel %vm1123, %v1947, 0.0
        %1949 = vrot.lane.b32.xlu0 %v1942, 8
        %v1950 = vpop.permute.xlu0 %1949
        %v1951 = vsel %vm926, %v1950, 0.0
        %1952 = vmatprep.subr.mxu0 0.0
        %1953 = vmatpush1.msra.mxu0 %v1945
        %1954 = vmatprep.subr.mxu0 0.0
        %1955 = vmatpush1.msra.mxu0 %v1948
        %1956 = vmatprep.subr.mxu0 0.0
        %1957 = vmatpush1.msra.mxu0 %v1951
        %1958 = vmatprep.subr.mxu0 0.0
        %1959 = vmatpush1.msra.mxu0 %v1942
        %1960 = vmatprep.subr.mxu0 0.0
        %1961 = vmatpush1.msra.mxu0 0.0
        %1962 = vmatprep.subr.mxu0 0.0
        %1963 = vmatpush1.msra.mxu0 0.0
        %1964 = vmatprep.subr.mxu0 0.0
        %1965 = vmatpush1.msra.mxu0 0.0
        %1966 = vmatprep.subr.mxu0 0.0
        %1967 = vmatpush1.msra.mxu0 0.0
        %1968 = vmatprep.subr.mxu0 0.0
        %1969 = vmatpush1.msra.mxu0 0.0
        %1970 = vmatprep.subr.mxu0 0.0
        %1971 = vmatpush1.msra.mxu0 0.0
        %1972 = vmatprep.subr.mxu0 0.0
        %1973 = vmatpush1.msra.mxu0 0.0
        %1974 = vmatprep.subr.mxu0 0.0
        %1975 = vmatpush1.msra.mxu0 0.0
        %1976 = vmatprep.subr.mxu0 0.0
        %1977 = vmatpush1.msra.mxu0 0.0
        %1978 = vmatprep.subr.mxu0 0.0
        %1979 = vmatpush1.msra.mxu0 0.0
        %1980 = vmatprep.subr.mxu0 0.0
        %1981 = vmatpush1.msra.mxu0 0.0
        %1982 = vmatprep.subr.mxu0 0.0
        %1983 = vmatpush1.msra.mxu0 0.0
        %1984 = vmatprep.subr.mxu0 0.0
        %1985 = vmatpush1.msra.mxu0 0.0
        %1986 = vmatprep.subr.mxu0 0.0
        %1987 = vmatpush1.msra.mxu0 0.0
        %1988 = vmatprep.subr.mxu0 0.0
        %1989 = vmatpush1.msra.mxu0 0.0
        %1990 = vmatprep.subr.mxu0 0.0
        %1991 = vmatpush1.msra.mxu0 0.0
        %1992 = vmatprep.subr.mxu0 0.0
        %1993 = vmatpush1.msra.mxu0 0.0
        %1994 = vmatprep.subr.mxu0 0.0
        %1995 = vmatpush1.msra.mxu0 0.0
        %1996 = vmatprep.subr.mxu0 0.0
        %1997 = vmatpush1.msra.mxu0 0.0
        %1998 = vmatprep.subr.mxu0 0.0
        %1999 = vmatpush1.msra.mxu0 0.0
        %2000 = vmatprep.subr.mxu0 0.0
        %2001 = vmatpush1.msra.mxu0 0.0
        %2002 = vmatprep.subr.mxu0 0.0
        %2003 = vmatpush1.msra.mxu0 0.0
        %2004 = vmatprep.subr.mxu0 0.0
        %2005 = vmatpush1.msra.mxu0 0.0
        %2006 = vmatprep.subr.mxu0 0.0
        %2007 = vmatpush1.msra.mxu0 0.0
        %2008 = vmatprep.subr.mxu0 0.0
        %2009 = vmatpush1.msra.mxu0 0.0
        %2010 = vmatprep.subr.mxu0 0.0
        %2011 = vmatpush1.msra.mxu0 0.0
        %2012 = vmatprep.subr.mxu0 0.0
        %2013 = vmatpush1.msra.mxu0 0.0
        %2014 = vmatprep.subr.mxu0 0.0
        %2015 = vmatpush1.msra.mxu0 0.0
        %2016 = vmatprep.mubr.f32.mxu0 0.0
        %2017 = vmatmul.mubr.f32.gmra.mrb[0].mxu0 %v1233
        %v2018 = vpop.f32.mrb[0].mxu0
        %v2019 = vadd.f32 %v1231, %v2018
        %v2020 = vpop.f32.mrb[0].mxu0
        %2021 = vdwg.mxu0
        %v2022 = vmax.f32 %v2019, 0.0
        %v2023 = vadd.f32 %v2022, %v1939
        %v2024 = vmax.f32 %v2023, 0.0
        %v2026 = vrot.slane %v1307, 7
        %2027 = vrot.lane.b32.xlu0 %v2026, 96
        %v2028 = vpop.permute.xlu0 %2027
        %v2030 = vrot.slane %v1307, 6
        %2031 = vrot.lane.b32.xlu0 %v2030, 64
        %v2032 = vpop.permute.xlu0 %2031
        %v2034 = vrot.slane %v1307, 5
        %2035 = vrot.lane.b32.xlu0 %v2034, 32
        %v2036 = vpop.permute.xlu0 %2035
        %v2039 = vrot.slane %v2024, 4
        %v2041 = vrot.slane %v2024, 3
        %2042 = vrot.lane.b32.xlu0 %v2041, 96
        %v2043 = vpop.permute.xlu0 %2042
        %v2045 = vrot.slane %v2024, 2
        %2046 = vrot.lane.b32.xlu0 %v2045, 64
        %v2047 = vpop.permute.xlu0 %2046
        %v2049 = vrot.slane %v2024, 1
        %2050 = vrot.lane.b32.xlu0 %v2049, 32
        %v2051 = vpop.permute.xlu0 %2050
        %vm2053 = vcmask 1040384
        %v2054 = vsel %vm2053, %v1307, %v2028
        %vm2055 = vcmask 1041408
        %v2056 = vsel %vm2055, %v2054, %v2032
        %vm2057 = vcmask 1042432
        %v2058 = vsel %vm2057, %v2056, %v2036
        %vm2059 = vcmask 1043456
        %v2060 = vsel %vm2059, %v2058, %v2039
        %vm2061 = vcmask 1044480
        %v2062 = vsel %vm2061, %v2060, %v2043
        %vm2063 = vcmask 1045504
        %v2064 = vsel %vm2063, %v2062, %v2047
        %vm2065 = vcmask 1046528
        %v2066 = vsel %vm2065, %v2064, %v2051
        %2071 = vrot.lane.b32.xlu0 %v302, 96
        %v2072 = vpop.permute.xlu0 %2071
        %2073 = vrot.lane.b32.xlu0 %v303, 96
        %v2074 = vpop.permute.xlu0 %2073
        %2075 = vrot.lane.b32.xlu0 %v304, 96
        %v2076 = vpop.permute.xlu0 %2075
        %2077 = vrot.lane.b32.xlu0 %v305, 96
        %v2078 = vpop.permute.xlu0 %2077
        %2083 = vrot.lane.b32.xlu0 %v277, 96
        %v2084 = vpop.permute.xlu0 %2083
        %v2087 = vsel %vm167, %v2066, 0
        %2089 = vmatprep.subr.mxu0 0.0
        %2090 = vmatpush1.msra.mxu0 %v2072
        %2091 = vmatprep.subr.mxu0 0.0
        %2092 = vmatpush1.msra.mxu0 %v2074
        %2093 = vmatprep.subr.mxu0 0.0
        %2094 = vmatpush1.msra.mxu0 %v2076
        %2095 = vmatprep.subr.mxu0 0.0
        %2096 = vmatpush1.msra.mxu0 %v2078
        %2097 = vmatprep.subr.mxu0 0.0
        %2098 = vmatpush1.msra.mxu0 0.0
        %2099 = vmatprep.subr.mxu0 0.0
        %2100 = vmatpush1.msra.mxu0 0.0
        %2101 = vmatprep.subr.mxu0 0.0
        %2102 = vmatpush1.msra.mxu0 0.0
        %2103 = vmatprep.subr.mxu0 0.0
        %2104 = vmatpush1.msra.mxu0 0.0
        %2105 = vmatprep.subr.mxu0 0.0
        %2106 = vmatpush1.msra.mxu0 0.0
        %2107 = vmatprep.subr.mxu0 0.0
        %2108 = vmatpush1.msra.mxu0 0.0
        %2109 = vmatprep.subr.mxu0 0.0
        %2110 = vmatpush1.msra.mxu0 0.0
        %2111 = vmatprep.subr.mxu0 0.0
        %2112 = vmatpush1.msra.mxu0 0.0
        %2113 = vmatprep.subr.mxu0 0.0
        %2114 = vmatpush1.msra.mxu0 0.0
        %2115 = vmatprep.subr.mxu0 0.0
        %2116 = vmatpush1.msra.mxu0 0.0
        %2117 = vmatprep.subr.mxu0 0.0
        %2118 = vmatpush1.msra.mxu0 0.0
        %2119 = vmatprep.subr.mxu0 0.0
        %2120 = vmatpush1.msra.mxu0 0.0
        %2121 = vmatprep.subr.mxu0 0.0
        %2122 = vmatpush1.msra.mxu0 0.0
        %2123 = vmatprep.subr.mxu0 0.0
        %2124 = vmatpush1.msra.mxu0 0.0
        %2125 = vmatprep.subr.mxu0 0.0
        %2126 = vmatpush1.msra.mxu0 0.0
        %2127 = vmatprep.subr.mxu0 0.0
        %2128 = vmatpush1.msra.mxu0 0.0
        %2129 = vmatprep.subr.mxu0 0.0
        %2130 = vmatpush1.msra.mxu0 0.0
        %2131 = vmatprep.subr.mxu0 0.0
        %2132 = vmatpush1.msra.mxu0 0.0
        %2133 = vmatprep.subr.mxu0 0.0
        %2134 = vmatpush1.msra.mxu0 0.0
        %2135 = vmatprep.subr.mxu0 0.0
        %2136 = vmatpush1.msra.mxu0 0.0
        %2137 = vmatprep.subr.mxu0 0.0
        %2138 = vmatpush1.msra.mxu0 0.0
        %2139 = vmatprep.subr.mxu0 0.0
        %2140 = vmatpush1.msra.mxu0 0.0
        %2141 = vmatprep.subr.mxu0 0.0
        %2142 = vmatpush1.msra.mxu0 0.0
        %2143 = vmatprep.subr.mxu0 0.0
        %2144 = vmatpush1.msra.mxu0 0.0
        %2145 = vmatprep.subr.mxu0 0.0
        %2146 = vmatpush1.msra.mxu0 0.0
        %2147 = vmatprep.subr.mxu0 0.0
        %2148 = vmatpush1.msra.mxu0 0.0
        %2149 = vmatprep.subr.mxu0 0.0
        %2150 = vmatpush1.msra.mxu0 0.0
        %2151 = vmatprep.subr.mxu0 0.0
        %2152 = vmatpush1.msra.mxu0 0.0
        %2153 = vmatprep.mubr.f32.mxu0 0.0
        %2154 = vmatmul.mubr.f32.gmra.mrb[0].mxu0 %v2087
        %v2155 = vpop.f32.mrb[0].mxu0
        %v2156 = vadd.f32 %v2084, %v2155
        %v2157 = vpop.f32.mrb[0].mxu0
        %2158 = vdwg.mxu0
        %2167 = vrot.lane.b32.xlu0 %v286, 96
        %v2168 = vpop.permute.xlu0 %2167
        %2169 = vrot.lane.b32.xlu0 %v287, 96
        %v2170 = vpop.permute.xlu0 %2169
        %2171 = vrot.lane.b32.xlu0 %v288, 96
        %v2172 = vpop.permute.xlu0 %2171
        %2173 = vrot.lane.b32.xlu0 %v289, 96
        %v2174 = vpop.permute.xlu0 %2173
        %2175 = vrot.lane.b32.xlu0 %v290, 96
        %v2176 = vpop.permute.xlu0 %2175
        %2177 = vrot.lane.b32.xlu0 %v291, 96
        %v2178 = vpop.permute.xlu0 %2177
        %2179 = vrot.lane.b32.xlu0 %v292, 96
        %v2180 = vpop.permute.xlu0 %2179
        %2181 = vrot.lane.b32.xlu0 %v293, 96
        %v2182 = vpop.permute.xlu0 %2181
        %vm2183 = vcmask 64512
        %v2184 = vsel %vm2183, %v2168, 0
        %v2186 = vsel %vm2183, %v2170, 0
        %v2188 = vsel %vm2183, %v2172, 0
        %v2190 = vsel %vm2183, %v2174, 0
        %v2192 = vsel %vm2183, %v2176, 0
        %v2194 = vsel %vm2183, %v2178, 0
        %v2196 = vsel %vm2183, %v2180, 0
        %v2198 = vsel %vm2183, %v2182, 0
        %2200 = vmatprep.subr.mxu0 0.0
        %2201 = vmatpush1.msra.mxu0 %v2156
        %2202 = vmatprep.subr.mxu0 0.0
        %2203 = vmatpush1.msra.mxu0 0.0
        %2204 = vmatprep.subr.mxu0 0.0
        %2205 = vmatpush1.msra.mxu0 0.0
        %2206 = vmatprep.subr.mxu0 0.0
        %2207 = vmatpush1.msra.mxu0 0.0
        %2208 = vmatprep.subr.mxu0 0.0
        %2209 = vmatpush1.msra.mxu0 0.0
        %2210 = vmatprep.subr.mxu0 0.0
        %2211 = vmatpush1.msra.mxu0 0.0
        %2212 = vmatprep.subr.mxu0 0.0
        %2213 = vmatpush1.msra.mxu0 0.0
        %2214 = vmatprep.subr.mxu0 0.0
        %2215 = vmatpush1.msra.mxu0 0.0
        %2216 = vmatprep.subr.mxu0 0.0
        %2217 = vmatpush1.msra.mxu0 0.0
        %2218 = vmatprep.subr.mxu0 0.0
        %2219 = vmatpush1.msra.mxu0 0.0
        %2220 = vmatprep.subr.mxu0 0.0
        %2221 = vmatpush1.msra.mxu0 0.0
        %2222 = vmatprep.subr.mxu0 0.0
        %2223 = vmatpush1.msra.mxu0 0.0
        %2224 = vmatprep.subr.mxu0 0.0
        %2225 = vmatpush1.msra.mxu0 0.0
        %2226 = vmatprep.subr.mxu0 0.0
        %2227 = vmatpush1.msra.mxu0 0.0
        %2228 = vmatprep.subr.mxu0 0.0
        %2229 = vmatpush1.msra.mxu0 0.0
        %2230 = vmatprep.subr.mxu0 0.0
        %2231 = vmatpush1.msra.mxu0 0.0
        %2232 = vmatprep.subr.mxu0 0.0
        %2233 = vmatpush1.msra.mxu0 0.0
        %2234 = vmatprep.subr.mxu0 0.0
        %2235 = vmatpush1.msra.mxu0 0.0
        %2236 = vmatprep.subr.mxu0 0.0
        %2237 = vmatpush1.msra.mxu0 0.0
        %2238 = vmatprep.subr.mxu0 0.0
        %2239 = vmatpush1.msra.mxu0 0.0
        %2240 = vmatprep.subr.mxu0 0.0
        %2241 = vmatpush1.msra.mxu0 0.0
        %2242 = vmatprep.subr.mxu0 0.0
        %2243 = vmatpush1.msra.mxu0 0.0
        %2244 = vmatprep.subr.mxu0 0.0
        %2245 = vmatpush1.msra.mxu0 0.0
        %2246 = vmatprep.subr.mxu0 0.0
        %2247 = vmatpush1.msra.mxu0 0.0
        %2248 = vmatprep.subr.mxu0 0.0
        %2249 = vmatpush1.msra.mxu0 0.0
        %2250 = vmatprep.subr.mxu0 0.0
        %2251 = vmatpush1.msra.mxu0 0.0
        %2252 = vmatprep.subr.mxu0 0.0
        %2253 = vmatpush1.msra.mxu0 0.0
        %2254 = vmatprep.subr.mxu0 0.0
        %2255 = vmatpush1.msra.mxu0 0.0
        %2256 = vmatprep.subr.mxu0 0.0
        %2257 = vmatpush1.msra.mxu0 0.0
        %2258 = vmatprep.subr.mxu0 0.0
        %2259 = vmatpush1.msra.mxu0 0.0
        %2260 = vmatprep.subr.mxu0 0.0
        %2261 = vmatpush1.msra.mxu0 0.0
        %2262 = vmatprep.subr.mxu0 0.0
        %2263 = vmatpush1.msra.mxu0 0.0
        %2264 = vmatprep.mubr.f32.mxu0 0.0
        %2265 = vmatmul.mubr.f32.gmra.mrb[0].mxu0 %v2184
        %v2266 = vpop.f32.mrb[0].mxu0
        %v2267 = vadd.f32 0.0, %v2266
        %v2268 = vpop.f32.mrb[0].mxu0
        %2269 = vmatprep.mubr.f32.mxu0 0.0
        %2270 = vmatmul.mubr.f32.gmra.mrb[0].mxu0 %v2186
        %v2271 = vpop.f32.mrb[0].mxu0
        %v2272 = vadd.f32 0.0, %v2271
        %v2273 = vpop.f32.mrb[0].mxu0
        %2274 = vmatprep.mubr.f32.mxu0 0.0
        %2275 = vmatmul.mubr.f32.gmra.mrb[0].mxu0 %v2188
        %v2276 = vpop.f32.mrb[0].mxu0
        %v2277 = vadd.f32 0.0, %v2276
        %v2278 = vpop.f32.mrb[0].mxu0
        %2279 = vmatprep.mubr.f32.mxu0 0.0
        %2280 = vmatmul.mubr.f32.gmra.mrb[0].mxu0 %v2190
        %v2281 = vpop.f32.mrb[0].mxu0
        %v2282 = vadd.f32 0.0, %v2281
        %v2283 = vpop.f32.mrb[0].mxu0
        %2284 = vmatprep.mubr.f32.mxu0 0.0
        %2285 = vmatmul.mubr.f32.gmra.mrb[0].mxu0 %v2192
        %v2286 = vpop.f32.mrb[0].mxu0
        %v2287 = vadd.f32 0.0, %v2286
        %v2288 = vpop.f32.mrb[0].mxu0
        %2289 = vmatprep.mubr.f32.mxu0 0.0
        %2290 = vmatmul.mubr.f32.gmra.mrb[0].mxu0 %v2194
        %v2291 = vpop.f32.mrb[0].mxu0
        %v2292 = vadd.f32 0.0, %v2291
        %v2293 = vpop.f32.mrb[0].mxu0
        %2294 = vmatprep.mubr.f32.mxu0 0.0
        %2295 = vmatmul.mubr.f32.gmra.mrb[0].mxu0 %v2196
        %v2296 = vpop.f32.mrb[0].mxu0
        %v2297 = vadd.f32 0.0, %v2296
        %v2298 = vpop.f32.mrb[0].mxu0
        %2299 = vmatprep.mubr.f32.mxu0 0.0
        %2300 = vmatmul.mubr.f32.gmra.mrb[0].mxu0 %v2198
        %v2301 = vpop.f32.mrb[0].mxu0
        %v2302 = vadd.f32 0.0, %v2301
        %v2303 = vpop.f32.mrb[0].mxu0
        %2304 = vdwg.mxu0
        %v2305 = vmul.f32 %v401, %v2267
        %v2306 = vmul.f32 %v406, %v2272
        %v2307 = vmul.f32 %v411, %v2277
        %v2308 = vmul.f32 %v416, %v2282
        %v2309 = vmul.f32 %v421, %v2287
        %v2310 = vmul.f32 %v426, %v2292
        %v2311 = vmul.f32 %v431, %v2297
        %v2312 = vmul.f32 %v436, %v2302
        %2313 = vrot.lane.b32.xlu0 %v302, 64
        %v2314 = vpop.permute.xlu0 %2313
        %2315 = vrot.lane.b32.xlu0 %v303, 64
        %v2316 = vpop.permute.xlu0 %2315
        %2317 = vrot.lane.b32.xlu0 %v304, 64
        %v2318 = vpop.permute.xlu0 %2317
        %2319 = vrot.lane.b32.xlu0 %v305, 64
        %v2320 = vpop.permute.xlu0 %2319
        %v2326 = vsel %vm167, %v2305, 0
        %v2329 = vsel %vm167, %v2306, 0
        %v2332 = vsel %vm167, %v2307, 0
        %v2335 = vsel %vm167, %v2308, 0
        %v2338 = vsel %vm167, %v2309, 0
        %v2341 = vsel %vm167, %v2310, 0
        %v2344 = vsel %vm167, %v2311, 0
        %v2347 = vsel %vm167, %v2312, 0
        %2349 = vmatprep.subr.mxu0 0.0
        %2350 = vmatpush1.msra.mxu0 %v2314
        %2351 = vmatprep.subr.mxu0 0.0
        %2352 = vmatpush1.msra.mxu0 %v2316
        %2353 = vmatprep.subr.mxu0 0.0
        %2354 = vmatpush1.msra.mxu0 %v2318
        %2355 = vmatprep.subr.mxu0 0.0
        %2356 = vmatpush1.msra.mxu0 %v2320
        %2357 = vmatprep.subr.mxu0 0.0
        %2358 = vmatpush1.msra.mxu0 0.0
        %2359 = vmatprep.subr.mxu0 0.0
        %2360 = vmatpush1.msra.mxu0 0.0
        %2361 = vmatprep.subr.mxu0 0.0
        %2362 = vmatpush1.msra.mxu0 0.0
        %2363 = vmatprep.subr.mxu0 0.0
        %2364 = vmatpush1.msra.mxu0 0.0
        %2365 = vmatprep.subr.mxu0 0.0
        %2366 = vmatpush1.msra.mxu0 0.0
        %2367 = vmatprep.subr.mxu0 0.0
        %2368 = vmatpush1.msra.mxu0 0.0
        %2369 = vmatprep.subr.mxu0 0.0
        %2370 = vmatpush1.msra.mxu0 0.0
        %2371 = vmatprep.subr.mxu0 0.0
        %2372 = vmatpush1.msra.mxu0 0.0
        %2373 = vmatprep.subr.mxu0 0.0
        %2374 = vmatpush1.msra.mxu0 0.0
        %2375 = vmatprep.subr.mxu0 0.0
        %2376 = vmatpush1.msra.mxu0 0.0
        %2377 = vmatprep.subr.mxu0 0.0
        %2378 = vmatpush1.msra.mxu0 0.0
        %2379 = vmatprep.subr.mxu0 0.0
        %2380 = vmatpush1.msra.mxu0 0.0
        %2381 = vmatprep.subr.mxu0 0.0
        %2382 = vmatpush1.msra.mxu0 0.0
        %2383 = vmatprep.subr.mxu0 0.0
        %2384 = vmatpush1.msra.mxu0 0.0
        %2385 = vmatprep.subr.mxu0 0.0
        %2386 = vmatpush1.msra.mxu0 0.0
        %2387 = vmatprep.subr.mxu0 0.0
        %2388 = vmatpush1.msra.mxu0 0.0
        %2389 = vmatprep.subr.mxu0 0.0
        %2390 = vmatpush1.msra.mxu0 0.0
        %2391 = vmatprep.subr.mxu0 0.0
        %2392 = vmatpush1.msra.mxu0 0.0
        %2393 = vmatprep.subr.mxu0 0.0
        %2394 = vmatpush1.msra.mxu0 0.0
        %2395 = vmatprep.subr.mxu0 0.0
        %2396 = vmatpush1.msra.mxu0 0.0
        %2397 = vmatprep.subr.mxu0 0.0
        %2398 = vmatpush1.msra.mxu0 0.0
        %2399 = vmatprep.subr.mxu0 0.0
        %2400 = vmatpush1.msra.mxu0 0.0
        %2401 = vmatprep.subr.mxu0 0.0
        %2402 = vmatpush1.msra.mxu0 0.0
        %2403 = vmatprep.subr.mxu0 0.0
        %2404 = vmatpush1.msra.mxu0 0.0
        %2405 = vmatprep.subr.mxu0 0.0
        %2406 = vmatpush1.msra.mxu0 0.0
        %2407 = vmatprep.subr.mxu0 0.0
        %2408 = vmatpush1.msra.mxu0 0.0
        %2409 = vmatprep.subr.mxu0 0.0
        %2410 = vmatpush1.msra.mxu0 0.0
        %2411 = vmatprep.subr.mxu0 0.0
        %2412 = vmatpush1.msra.mxu0 0.0
        %2413 = vmatprep.mubr.f32.mxu0 0.0
        %2414 = vmatmul.mubr.f32.gmra.mrb[0].mxu0 %v2326
        %v2415 = vpop.f32.mrb[0].mxu0
        %v2416 = vadd.f32 0.0, %v2415
        %v2417 = vpop.f32.mrb[0].mxu0
        %2418 = vmatprep.mubr.f32.mxu0 0.0
        %2419 = vmatmul.mubr.f32.gmra.mrb[0].mxu0 %v2329
        %v2420 = vpop.f32.mrb[0].mxu0
        %v2421 = vadd.f32 0.0, %v2420
        %v2422 = vpop.f32.mrb[0].mxu0
        %2423 = vmatprep.mubr.f32.mxu0 0.0
        %2424 = vmatmul.mubr.f32.gmra.mrb[0].mxu0 %v2332
        %v2425 = vpop.f32.mrb[0].mxu0
        %v2426 = vadd.f32 0.0, %v2425
        %v2427 = vpop.f32.mrb[0].mxu0
        %2428 = vmatprep.mubr.f32.mxu0 0.0
        %2429 = vmatmul.mubr.f32.gmra.mrb[0].mxu0 %v2335
        %v2430 = vpop.f32.mrb[0].mxu0
        %v2431 = vadd.f32 0.0, %v2430
        %v2432 = vpop.f32.mrb[0].mxu0
        %2433 = vmatprep.mubr.f32.mxu0 0.0
        %2434 = vmatmul.mubr.f32.gmra.mrb[0].mxu0 %v2338
        %v2435 = vpop.f32.mrb[0].mxu0
        %v2436 = vadd.f32 0.0, %v2435
        %v2437 = vpop.f32.mrb[0].mxu0
        %2438 = vmatprep.mubr.f32.mxu0 0.0
        %2439 = vmatmul.mubr.f32.gmra.mrb[0].mxu0 %v2341
        %v2440 = vpop.f32.mrb[0].mxu0
        %v2441 = vadd.f32 0.0, %v2440
        %v2442 = vpop.f32.mrb[0].mxu0
        %2443 = vmatprep.mubr.f32.mxu0 0.0
        %2444 = vmatmul.mubr.f32.gmra.mrb[0].mxu0 %v2344
        %v2445 = vpop.f32.mrb[0].mxu0
        %v2446 = vadd.f32 0.0, %v2445
        %v2447 = vpop.f32.mrb[0].mxu0
        %2448 = vmatprep.mubr.f32.mxu0 0.0
        %2449 = vmatmul.mubr.f32.gmra.mrb[0].mxu0 %v2347
        %v2450 = vpop.f32.mrb[0].mxu0
        %v2451 = vadd.f32 0.0, %v2450
        %v2452 = vpop.f32.mrb[0].mxu0
        %2453 = vdwg.mxu0
        %vm2454 = vcmask 31744
        %v2455 = vsel %vm2454, %v2416, -inf
        %v2456 = vrot.slane %v2455, 4
        %v2457 = vmax.f32 %v2455, %v2456
        %v2458 = vrot.slane %v2457, 2
        %v2459 = vmax.f32 %v2457, %v2458
        %v2460 = vrot.slane %v2459, 1
        %v2461 = vmax.f32 %v2459, %v2460
        %v2462 = vsel %vm2454, %v2421, -inf
        %v2463 = vrot.slane %v2462, 4
        %v2464 = vmax.f32 %v2462, %v2463
        %v2465 = vrot.slane %v2464, 2
        %v2466 = vmax.f32 %v2464, %v2465
        %v2467 = vrot.slane %v2466, 1
        %v2468 = vmax.f32 %v2466, %v2467
        %v2469 = vsel %vm2454, %v2426, -inf
        %v2470 = vrot.slane %v2469, 4
        %v2471 = vmax.f32 %v2469, %v2470
        %v2472 = vrot.slane %v2471, 2
        %v2473 = vmax.f32 %v2471, %v2472
        %v2474 = vrot.slane %v2473, 1
        %v2475 = vmax.f32 %v2473, %v2474
        %v2476 = vsel %vm2454, %v2431, -inf
        %v2477 = vrot.slane %v2476, 4
        %v2478 = vmax.f32 %v2476, %v2477
        %v2479 = vrot.slane %v2478, 2
        %v2480 = vmax.f32 %v2478, %v2479
        %v2481 = vrot.slane %v2480, 1
        %v2482 = vmax.f32 %v2480, %v2481
        %v2483 = vsel %vm2454, %v2436, -inf
        %v2484 = vrot.slane %v2483, 4
        %v2485 = vmax.f32 %v2483, %v2484
        %v2486 = vrot.slane %v2485, 2
        %v2487 = vmax.f32 %v2485, %v2486
        %v2488 = vrot.slane %v2487, 1
        %v2489 = vmax.f32 %v2487, %v2488
        %v2490 = vsel %vm2454, %v2441, -inf
        %v2491 = vrot.slane %v2490, 4
        %v2492 = vmax.f32 %v2490, %v2491
        %v2493 = vrot.slane %v2492, 2
        %v2494 = vmax.f32 %v2492, %v2493
        %v2495 = vrot.slane %v2494, 1
        %v2496 = vmax.f32 %v2494, %v2495
        %v2497 = vsel %vm2454, %v2446, -inf
        %v2498 = vrot.slane %v2497, 4
        %v2499 = vmax.f32 %v2497, %v2498
        %v2500 = vrot.slane %v2499, 2
        %v2501 = vmax.f32 %v2499, %v2500
        %v2502 = vrot.slane %v2501, 1
        %v2503 = vmax.f32 %v2501, %v2502
        %v2504 = vsel %vm2454, %v2451, -inf
        %v2505 = vrot.slane %v2504, 4
        %v2506 = vmax.f32 %v2504, %v2505
        %v2507 = vrot.slane %v2506, 2
        %v2508 = vmax.f32 %v2506, %v2507
        %v2509 = vrot.slane %v2508, 1
        %v2510 = vmax.f32 %v2508, %v2509
        %vm2519 = vcmask 1041409
        %v2520 = vsel %vm2519, %v2468, %v2461
        %vm2521 = vcmask 1042434
        %v2522 = vsel %vm2521, %v2475, %v2520
        %vm2523 = vcmask 1043459
        %v2524 = vsel %vm2523, %v2482, %v2522
        %vm2525 = vcmask 1044484
        %v2526 = vsel %vm2525, %v2489, %v2524
        %vm2527 = vcmask 1045509
        %v2528 = vsel %vm2527, %v2496, %v2526
        %vm2529 = vcmask 1046534
        %v2530 = vsel %vm2529, %v2503, %v2528
        %vm2531 = vcmask 1047559
        %v2532 = vsel %vm2531, %v2510, %v2530
        %2534 = vmatprep.subr.mxu0 0.0
        %2535 = vmatpush1.msra.mxu0 %v2532
        %2536 = vmatprep.subr.mxu0 0.0
        %2537 = vmatpush1.msra.mxu0 0.0
        %2538 = vmatprep.subr.mxu0 0.0
        %2539 = vmatpush1.msra.mxu0 0.0
        %2540 = vmatprep.subr.mxu0 0.0
        %2541 = vmatpush1.msra.mxu0 0.0
        %2542 = vmatprep.subr.mxu0 0.0
        %2543 = vmatpush1.msra.mxu0 0.0
        %2544 = vmatprep.subr.mxu0 0.0
        %2545 = vmatpush1.msra.mxu0 0.0
        %2546 = vmatprep.subr.mxu0 0.0
        %2547 = vmatpush1.msra.mxu0 0.0
        %2548 = vmatprep.subr.mxu0 0.0
        %2549 = vmatpush1.msra.mxu0 0.0
        %2550 = vmatprep.subr.mxu0 0.0
        %2551 = vmatpush1.msra.mxu0 0.0
        %2552 = vmatprep.subr.mxu0 0.0
        %2553 = vmatpush1.msra.mxu0 0.0
        %2554 = vmatprep.subr.mxu0 0.0
        %2555 = vmatpush1.msra.mxu0 0.0
        %2556 = vmatprep.subr.mxu0 0.0
        %2557 = vmatpush1.msra.mxu0 0.0
        %2558 = vmatprep.subr.mxu0 0.0
        %2559 = vmatpush1.msra.mxu0 0.0
        %2560 = vmatprep.subr.mxu0 0.0
        %2561 = vmatpush1.msra.mxu0 0.0
        %2562 = vmatprep.subr.mxu0 0.0
        %2563 = vmatpush1.msra.mxu0 0.0
        %2564 = vmatprep.subr.mxu0 0.0
        %2565 = vmatpush1.msra.mxu0 0.0
        %2566 = vmatprep.subr.mxu0 0.0
        %2567 = vmatpush1.msra.mxu0 0.0
        %2568 = vmatprep.subr.mxu0 0.0
        %2569 = vmatpush1.msra.mxu0 0.0
        %2570 = vmatprep.subr.mxu0 0.0
        %2571 = vmatpush1.msra.mxu0 0.0
        %2572 = vmatprep.subr.mxu0 0.0
        %2573 = vmatpush1.msra.mxu0 0.0
        %2574 = vmatprep.subr.mxu0 0.0
        %2575 = vmatpush1.msra.mxu0 0.0
        %2576 = vmatprep.subr.mxu0 0.0
        %2577 = vmatpush1.msra.mxu0 0.0
        %2578 = vmatprep.subr.mxu0 0.0
        %2579 = vmatpush1.msra.mxu0 0.0
        %2580 = vmatprep.subr.mxu0 0.0
        %2581 = vmatpush1.msra.mxu0 0.0
        %2582 = vmatprep.subr.mxu0 0.0
        %2583 = vmatpush1.msra.mxu0 0.0
        %2584 = vmatprep.subr.mxu0 0.0
        %2585 = vmatpush1.msra.mxu0 0.0
        %2586 = vmatprep.subr.mxu0 0.0
        %2587 = vmatpush1.msra.mxu0 0.0
        %2588 = vmatprep.subr.mxu0 0.0
        %2589 = vmatpush1.msra.mxu0 0.0
        %2590 = vmatprep.subr.mxu0 0.0
        %2591 = vmatpush1.msra.mxu0 0.0
        %2592 = vmatprep.subr.mxu0 0.0
        %2593 = vmatpush1.msra.mxu0 0.0
        %2594 = vmatprep.subr.mxu0 0.0
        %2595 = vmatpush1.msra.mxu0 0.0
        %2596 = vmatprep.subr.mxu0 0.0
        %2597 = vmatpush1.msra.mxu0 0.0
        %2598 = vmatprep.mubr.f32.mxu0 0.0
        %2599 = vmatmul.mubr.f32.gmra.mrb[0].mxu0 %v2184
        %v2600 = vpop.f32.mrb[0].mxu0
        %v2601 = vadd.f32 0.0, %v2600
        %v2602 = vpop.f32.mrb[0].mxu0
        %2603 = vmatprep.mubr.f32.mxu0 0.0
        %2604 = vmatmul.mubr.f32.gmra.mrb[0].mxu0 %v2186
        %v2605 = vpop.f32.mrb[0].mxu0
        %v2606 = vadd.f32 0.0, %v2605
        %v2607 = vpop.f32.mrb[0].mxu0
        %2608 = vmatprep.mubr.f32.mxu0 0.0
        %2609 = vmatmul.mubr.f32.gmra.mrb[0].mxu0 %v2188
        %v2610 = vpop.f32.mrb[0].mxu0
        %v2611 = vadd.f32 0.0, %v2610
        %v2612 = vpop.f32.mrb[0].mxu0
        %2613 = vmatprep.mubr.f32.mxu0 0.0
        %2614 = vmatmul.mubr.f32.gmra.mrb[0].mxu0 %v2190
        %v2615 = vpop.f32.mrb[0].mxu0
        %v2616 = vadd.f32 0.0, %v2615
        %v2617 = vpop.f32.mrb[0].mxu0
        %2618 = vmatprep.mubr.f32.mxu0 0.0
        %2619 = vmatmul.mubr.f32.gmra.mrb[0].mxu0 %v2192
        %v2620 = vpop.f32.mrb[0].mxu0
        %v2621 = vadd.f32 0.0, %v2620
        %v2622 = vpop.f32.mrb[0].mxu0
        %2623 = vmatprep.mubr.f32.mxu0 0.0
        %2624 = vmatmul.mubr.f32.gmra.mrb[0].mxu0 %v2194
        %v2625 = vpop.f32.mrb[0].mxu0
        %v2626 = vadd.f32 0.0, %v2625
        %v2627 = vpop.f32.mrb[0].mxu0
        %2628 = vmatprep.mubr.f32.mxu0 0.0
        %2629 = vmatmul.mubr.f32.gmra.mrb[0].mxu0 %v2196
        %v2630 = vpop.f32.mrb[0].mxu0
        %v2631 = vadd.f32 0.0, %v2630
        %v2632 = vpop.f32.mrb[0].mxu0
        %2633 = vmatprep.mubr.f32.mxu0 0.0
        %2634 = vmatmul.mubr.f32.gmra.mrb[0].mxu0 %v2198
        %v2635 = vpop.f32.mrb[0].mxu0
        %v2636 = vadd.f32 0.0, %v2635
        %v2637 = vpop.f32.mrb[0].mxu0
        %2638 = vdwg.mxu0
        %v2639 = vsub.f32 %v2416, %v2601
        %v2640 = vsub.f32 %v2421, %v2606
        %v2641 = vsub.f32 %v2426, %v2611
        %v2642 = vsub.f32 %v2431, %v2616
        %v2643 = vsub.f32 %v2436, %v2621
        %v2644 = vsub.f32 %v2441, %v2626
        %v2645 = vsub.f32 %v2446, %v2631
        %v2646 = vsub.f32 %v2451, %v2636
        %v2647 = vmul.f32 %v2639, 1.442695
        %v2648 = vpow.pop %v2647
        %v2649 = vmul.f32 %v2640, 1.442695
        %v2650 = vpow.pop %v2649
        %v2651 = vmul.f32 %v2641, 1.442695
        %v2652 = vpow.pop %v2651
        %v2653 = vmul.f32 %v2642, 1.442695
        %v2654 = vpow.pop %v2653
        %v2655 = vmul.f32 %v2643, 1.442695
        %v2656 = vpow.pop %v2655
        %v2657 = vmul.f32 %v2644, 1.442695
        %v2658 = vpow.pop %v2657
        %v2659 = vmul.f32 %v2645, 1.442695
        %v2660 = vpow.pop %v2659
        %v2661 = vmul.f32 %v2646, 1.442695
        %v2662 = vpow.pop %v2661
        %v2663 = vld [vmem:[#allocation2 + $0x68] sm:$0xf]
        %2665 = vrot.lane.b32.xlu0 %v2663, 64
        %v2666 = vpop.permute.xlu0 %2665
        %v2668 = vsel %vm2454, %v2648, 0
        %v2671 = vsel %vm2454, %v2650, 0
        %v2674 = vsel %vm2454, %v2652, 0
        %v2677 = vsel %vm2454, %v2654, 0
        %v2680 = vsel %vm2454, %v2656, 0
        %v2683 = vsel %vm2454, %v2658, 0
        %v2686 = vsel %vm2454, %v2660, 0
        %v2689 = vsel %vm2454, %v2662, 0
        %v2691 = vsel %vm2059, %v2666, 0
        %2693 = vmatprep.subr.mxu0 0.0
        %2694 = vmatpush1.msra.mxu0 %v2691
        %2695 = vmatprep.subr.mxu0 0.0
        %2696 = vmatpush1.msra.mxu0 0.0
        %2697 = vmatprep.subr.mxu0 0.0
        %2698 = vmatpush1.msra.mxu0 0.0
        %2699 = vmatprep.subr.mxu0 0.0
        %2700 = vmatpush1.msra.mxu0 0.0
        %2701 = vmatprep.subr.mxu0 0.0
        %2702 = vmatpush1.msra.mxu0 0.0
        %2703 = vmatprep.subr.mxu0 0.0
        %2704 = vmatpush1.msra.mxu0 0.0
        %2705 = vmatprep.subr.mxu0 0.0
        %2706 = vmatpush1.msra.mxu0 0.0
        %2707 = vmatprep.subr.mxu0 0.0
        %2708 = vmatpush1.msra.mxu0 0.0
        %2709 = vmatprep.subr.mxu0 0.0
        %2710 = vmatpush1.msra.mxu0 0.0
        %2711 = vmatprep.subr.mxu0 0.0
        %2712 = vmatpush1.msra.mxu0 0.0
        %2713 = vmatprep.subr.mxu0 0.0
        %2714 = vmatpush1.msra.mxu0 0.0
        %2715 = vmatprep.subr.mxu0 0.0
        %2716 = vmatpush1.msra.mxu0 0.0
        %2717 = vmatprep.subr.mxu0 0.0
        %2718 = vmatpush1.msra.mxu0 0.0
        %2719 = vmatprep.subr.mxu0 0.0
        %2720 = vmatpush1.msra.mxu0 0.0
        %2721 = vmatprep.subr.mxu0 0.0
        %2722 = vmatpush1.msra.mxu0 0.0
        %2723 = vmatprep.subr.mxu0 0.0
        %2724 = vmatpush1.msra.mxu0 0.0
        %2725 = vmatprep.subr.mxu0 0.0
        %2726 = vmatpush1.msra.mxu0 0.0
        %2727 = vmatprep.subr.mxu0 0.0
        %2728 = vmatpush1.msra.mxu0 0.0
        %2729 = vmatprep.subr.mxu0 0.0
        %2730 = vmatpush1.msra.mxu0 0.0
        %2731 = vmatprep.subr.mxu0 0.0
        %2732 = vmatpush1.msra.mxu0 0.0
        %2733 = vmatprep.subr.mxu0 0.0
        %2734 = vmatpush1.msra.mxu0 0.0
        %2735 = vmatprep.subr.mxu0 0.0
        %2736 = vmatpush1.msra.mxu0 0.0
        %2737 = vmatprep.subr.mxu0 0.0
        %2738 = vmatpush1.msra.mxu0 0.0
        %2739 = vmatprep.subr.mxu0 0.0
        %2740 = vmatpush1.msra.mxu0 0.0
        %2741 = vmatprep.subr.mxu0 0.0
        %2742 = vmatpush1.msra.mxu0 0.0
        %2743 = vmatprep.subr.mxu0 0.0
        %2744 = vmatpush1.msra.mxu0 0.0
        %2745 = vmatprep.subr.mxu0 0.0
        %2746 = vmatpush1.msra.mxu0 0.0
        %2747 = vmatprep.subr.mxu0 0.0
        %2748 = vmatpush1.msra.mxu0 0.0
        %2749 = vmatprep.subr.mxu0 0.0
        %2750 = vmatpush1.msra.mxu0 0.0
        %2751 = vmatprep.subr.mxu0 0.0
        %2752 = vmatpush1.msra.mxu0 0.0
        %2753 = vmatprep.subr.mxu0 0.0
        %2754 = vmatpush1.msra.mxu0 0.0
        %2755 = vmatprep.subr.mxu0 0.0
        %2756 = vmatpush1.msra.mxu0 0.0
        %2757 = vmatprep.mubr.f32.mxu0 0.0
        %2758 = vmatmul.mubr.f32.gmra.mrb[0].mxu0 %v2668
        %v2759 = vpop.f32.mrb[0].mxu0
        %v2760 = vadd.f32 0.0, %v2759
        %v2761 = vpop.f32.mrb[0].mxu0
        %2762 = vmatprep.mubr.f32.mxu0 0.0
        %2763 = vmatmul.mubr.f32.gmra.mrb[0].mxu0 %v2671
        %v2764 = vpop.f32.mrb[0].mxu0
        %v2765 = vadd.f32 0.0, %v2764
        %v2766 = vpop.f32.mrb[0].mxu0
        %2767 = vmatprep.mubr.f32.mxu0 0.0
        %2768 = vmatmul.mubr.f32.gmra.mrb[0].mxu0 %v2674
        %v2769 = vpop.f32.mrb[0].mxu0
        %v2770 = vadd.f32 0.0, %v2769
        %v2771 = vpop.f32.mrb[0].mxu0
        %2772 = vmatprep.mubr.f32.mxu0 0.0
        %2773 = vmatmul.mubr.f32.gmra.mrb[0].mxu0 %v2677
        %v2774 = vpop.f32.mrb[0].mxu0
        %v2775 = vadd.f32 0.0, %v2774
        %v2776 = vpop.f32.mrb[0].mxu0
        %2777 = vmatprep.mubr.f32.mxu0 0.0
        %2778 = vmatmul.mubr.f32.gmra.mrb[0].mxu0 %v2680
        %v2779 = vpop.f32.mrb[0].mxu0
        %v2780 = vadd.f32 0.0, %v2779
        %v2781 = vpop.f32.mrb[0].mxu0
        %2782 = vmatprep.mubr.f32.mxu0 0.0
        %2783 = vmatmul.mubr.f32.gmra.mrb[0].mxu0 %v2683
        %v2784 = vpop.f32.mrb[0].mxu0
        %v2785 = vadd.f32 0.0, %v2784
        %v2786 = vpop.f32.mrb[0].mxu0
        %2787 = vmatprep.mubr.f32.mxu0 0.0
        %2788 = vmatmul.mubr.f32.gmra.mrb[0].mxu0 %v2686
        %v2789 = vpop.f32.mrb[0].mxu0
        %v2790 = vadd.f32 0.0, %v2789
        %v2791 = vpop.f32.mrb[0].mxu0
        %2792 = vmatprep.mubr.f32.mxu0 0.0
        %2793 = vmatmul.mubr.f32.gmra.mrb[0].mxu0 %v2689
        %v2794 = vpop.f32.mrb[0].mxu0
        %v2795 = vadd.f32 0.0, %v2794
        %v2796 = vpop.f32.mrb[0].mxu0
        %2797 = vdwg.mxu0
        %v2798 = vld [vmem:[#allocation2 + $0x68] sm:$0xff]
        %v2799 = vmul.f32 %v2760, %v294
        %v2800 = vmul.f32 %v2765, %v295
        %v2801 = vmul.f32 %v2770, %v296
        %v2802 = vmul.f32 %v2775, %v297
        %v2803 = vmul.f32 %v2780, %v298
        %v2804 = vmul.f32 %v2785, %v299
        %v2805 = vmul.f32 %v2790, %v300
        %v2806 = vmul.f32 %v2795, %v301
        %2815 = vrot.lane.b32.xlu0 %v2760, 32
        %v2816 = vpop.permute.xlu0 %2815
        %2817 = vrot.lane.b32.xlu0 %v2765, 32
        %v2818 = vpop.permute.xlu0 %2817
        %2819 = vrot.lane.b32.xlu0 %v2770, 32
        %v2820 = vpop.permute.xlu0 %2819
        %2821 = vrot.lane.b32.xlu0 %v2775, 32
        %v2822 = vpop.permute.xlu0 %2821
        %2823 = vrot.lane.b32.xlu0 %v2780, 32
        %v2824 = vpop.permute.xlu0 %2823
        %2825 = vrot.lane.b32.xlu0 %v2785, 32
        %v2826 = vpop.permute.xlu0 %2825
        %2827 = vrot.lane.b32.xlu0 %v2790, 32
        %v2828 = vpop.permute.xlu0 %2827
        %2829 = vrot.lane.b32.xlu0 %v2795, 32
        %v2830 = vpop.permute.xlu0 %2829
        %v2839 = vsel %vm167, %v2799, %v2816
        %v2840 = vsel %vm167, %v2800, %v2818
        %v2841 = vsel %vm167, %v2801, %v2820
        %v2842 = vsel %vm167, %v2802, %v2822
        %v2843 = vsel %vm167, %v2803, %v2824
        %v2844 = vsel %vm167, %v2804, %v2826
        %v2845 = vsel %vm167, %v2805, %v2828
        %v2846 = vsel %vm167, %v2806, %v2830
        %v2848 = vsel %vm452, %v2798, 0
        %2850 = vmatprep.subr.mxu0 0.0
        %2851 = vmatpush1.msra.mxu0 %v2839
        %2852 = vmatprep.subr.mxu0 0.0
        %2853 = vmatpush1.msra.mxu0 %v2840
        %2854 = vmatprep.subr.mxu0 0.0
        %2855 = vmatpush1.msra.mxu0 %v2841
        %2856 = vmatprep.subr.mxu0 0.0
        %2857 = vmatpush1.msra.mxu0 %v2842
        %2858 = vmatprep.subr.mxu0 0.0
        %2859 = vmatpush1.msra.mxu0 %v2843
        %2860 = vmatprep.subr.mxu0 0.0
        %2861 = vmatpush1.msra.mxu0 %v2844
        %2862 = vmatprep.subr.mxu0 0.0
        %2863 = vmatpush1.msra.mxu0 %v2845
        %2864 = vmatprep.subr.mxu0 0.0
        %2865 = vmatpush1.msra.mxu0 %v2846
        %2866 = vmatprep.subr.mxu0 0.0
        %2867 = vmatpush1.msra.mxu0 0.0
        %2868 = vmatprep.subr.mxu0 0.0
        %2869 = vmatpush1.msra.mxu0 0.0
        %2870 = vmatprep.subr.mxu0 0.0
        %2871 = vmatpush1.msra.mxu0 0.0
        %2872 = vmatprep.subr.mxu0 0.0
        %2873 = vmatpush1.msra.mxu0 0.0
        %2874 = vmatprep.subr.mxu0 0.0
        %2875 = vmatpush1.msra.mxu0 0.0
        %2876 = vmatprep.subr.mxu0 0.0
        %2877 = vmatpush1.msra.mxu0 0.0
        %2878 = vmatprep.subr.mxu0 0.0
        %2879 = vmatpush1.msra.mxu0 0.0
        %2880 = vmatprep.subr.mxu0 0.0
        %2881 = vmatpush1.msra.mxu0 0.0
        %2882 = vmatprep.subr.mxu0 0.0
        %2883 = vmatpush1.msra.mxu0 0.0
        %2884 = vmatprep.subr.mxu0 0.0
        %2885 = vmatpush1.msra.mxu0 0.0
        %2886 = vmatprep.subr.mxu0 0.0
        %2887 = vmatpush1.msra.mxu0 0.0
        %2888 = vmatprep.subr.mxu0 0.0
        %2889 = vmatpush1.msra.mxu0 0.0
        %2890 = vmatprep.subr.mxu0 0.0
        %2891 = vmatpush1.msra.mxu0 0.0
        %2892 = vmatprep.subr.mxu0 0.0
        %2893 = vmatpush1.msra.mxu0 0.0
        %2894 = vmatprep.subr.mxu0 0.0
        %2895 = vmatpush1.msra.mxu0 0.0
        %2896 = vmatprep.subr.mxu0 0.0
        %2897 = vmatpush1.msra.mxu0 0.0
        %2898 = vmatprep.subr.mxu0 0.0
        %2899 = vmatpush1.msra.mxu0 0.0
        %2900 = vmatprep.subr.mxu0 0.0
        %2901 = vmatpush1.msra.mxu0 0.0
        %2902 = vmatprep.subr.mxu0 0.0
        %2903 = vmatpush1.msra.mxu0 0.0
        %2904 = vmatprep.subr.mxu0 0.0
        %2905 = vmatpush1.msra.mxu0 0.0
        %2906 = vmatprep.subr.mxu0 0.0
        %2907 = vmatpush1.msra.mxu0 0.0
        %2908 = vmatprep.subr.mxu0 0.0
        %2909 = vmatpush1.msra.mxu0 0.0
        %2910 = vmatprep.subr.mxu0 0.0
        %2911 = vmatpush1.msra.mxu0 0.0
        %2912 = vmatprep.subr.mxu0 0.0
        %2913 = vmatpush1.msra.mxu0 0.0
        %2914 = vmatprep.mubr.f32.mxu0 0.0
        %2915 = vmatmul.mubr.f32.gmra.mrb[0].mxu0 %v2848
        %v2916 = vpop.f32.mrb[0].mxu0
        %v2917 = vadd.f32 0.0, %v2916
        %v2918 = vpop.f32.mrb[0].mxu0
        %2919 = vdwg.mxu0
        %2921 = vrot.lane.b32.xlu0 %v2917, 96
        %v2922 = vpop.permute.xlu0 %2921
        %v2924 = vrcp.pop %v2922
        %v2925 = vmul.f32 %v2917, %v2924
        %2927 = vrot.lane.b32.xlu0 %v2156, 32
        %v2928 = vpop.permute.xlu0 %2927
        %v2930 = vsel %vm167, %v2925, %v2928
        %v2931 = vsel %vm452, %v2930, 0.0
        %2932 = vst [vmem:[%s152] sm:$0xff] %v2931
        %s2933 = sand.u32 %s72, 1
        %s2934 = scalar_lea.sflag [#allocation4], %s2933
        %s2935 = sand.u32 %s72, 1
        %s2936 = smul.addr %s2935, 8
        %s2937 = scalar_lea.vmem [#allocation5], %s2936
        // Predicated region
        $region33: #{tpu_custom_call.1} parent=27 // pred_check
          %p2938 = pneg %p82
        $region34: #{tpu_custom_call.1} parent=27 // pred_check_branch
          %2940 = sbr.rel (%p2938) target = $region36
        $region35: #{tpu_custom_call.1} parent=27 // pred_region
          %s2942 = ssub.s32 128, 128
          %2943 = vsyncadd %s2934, %s2942
          %s2944 = smul.addr %s17, 128
          %s2945 = scalar_lea.hbm %s2, %s2944
          %s2947 = sshll.u32 %s2937, 4
          %s2948 = int_to_ptr.vmem [resolvable:$true] %s2947
          %2950 = dma.vmem_to_hbm [thread:$0]  %s2948, 128, %s2945, %s2934
        $region36: #{tpu_custom_call.1} parent=27 // pred_fallthru
          _
      $region28: #{tpu_custom_call.1} parent=5 // pred_fallthru
        _
      %p2951 = scmp.le.s32.totalorder 2, %s12
      // Predicated region
      $region37: #{tpu_custom_call.1} parent=5 // pred_check
        %p2952 = pneg %p2951
      $region38: #{tpu_custom_call.1} parent=5 // pred_check_branch
        %2954 = sbr.rel (%p2952) target = $region40
      $region39: #{tpu_custom_call.1} parent=5 // pred_region
        %s2955 = ssub.s32 %s12, 2
        // Predicated region
        $region41: #{tpu_custom_call.1} parent=39 // pred_check
          %p2956 = pneg %p88
        $region42: #{tpu_custom_call.1} parent=39 // pred_check_branch
          %2958 = sbr.rel (%p2956) target = $region44
        $region43: #{tpu_custom_call.1} parent=39 // pred_region
          %s2959 = sand.u32 %s73, 1
          %s2960 = scalar_lea.sflag [#allocation4], %s2959
          %s2961 = sand.u32 %s73, 1
          %s2962 = smul.addr %s2961, 8
          %s2963 = scalar_lea.vmem [#allocation5], %s2962
          %2964 = dma.done %s2960, 128
        $region44: #{tpu_custom_call.1} parent=39 // pred_fallthru
          _
      $region40: #{tpu_custom_call.1} parent=5 // pred_fallthru
        _
    $region6: #{tpu_custom_call.1} parent=1 // loop_footer
      %s16 = sadd.s32 1, %s12
    $region7: #{tpu_custom_call.1} parent=1 // loop_footer_branch
      %11 = sbr.rel target = $region3
    $region8: #{tpu_custom_call.1} parent=1 // loop_exit
      _
    %2965 = vsyncpa [#allocation3], 1
    %s2966 = scalar_lea.sflag [#allocation3], 1
    %2967 = vsyncpa %s2966, 1
    %2968 = vsyncpa [#allocation4], 1
    %s2969 = scalar_lea.sflag [#allocation4], 1
    %2970 = vsyncpa %s2969, 1

</llo_original>
